<compile_context>
chip_gen: v7x
topology: tpu7x:2x2x1
jax: 0.10.0
libtpu: 0.0.40
codegen_flags: <defaults>
</compile_context>

<pallas_src>
import functools

import jax
import jax.numpy as jnp
from jax.experimental import pallas as pl
from jax.experimental.pallas import tpu as pltpu

EPS = 1e-5


# ----------------------------- phase decomposition -------------------------- #

def _phase_plan(K, stride, padding):
    """plan[a][b] = list of (tap_index, dy, dx) for output phase (a, b).

    Derived from the ConvTranspose2d scatter definition
        out[s*iy - p + ky, s*ix - p + kx] += x[iy, ix] @ w[:, :, ky, kx],
    i.e. output row oy = s*m + a gathers kernel row ky from input row m + dy
    with dy = (a + p - ky)/s whenever (a + p - ky) is divisible by s.
    """
    plan = []
    for a in range(stride):
        row = []
        for b in range(stride):
            taps = []
            for ky in range(K):
                ty = a + padding - ky
                if ty % stride:
                    continue
                for kx in range(K):
                    tx = b + padding - kx
                    if tx % stride:
                        continue
                    taps.append((ky * K + kx, ty // stride, tx // stride))
            row.append(taps)
        plan.append(row)
    return plan


def _phase_layout(plan, mid, stride):
    """Per-phase (row_offset, shift list) for the phase-major weight layout."""
    info = []
    off = 0
    for a in range(stride):
        for b in range(stride):
            shifts = tuple((dy, dx) for (_, dy, dx) in plan[a][b])
            info.append((off, shifts))
            off += len(shifts) * mid
    return tuple(info)


# --------------------------------- kernel ----------------------------------- #

def _decoder_link_kernel(x_ref, w1_ref, b1_ref, wt_ref, b2_ref, w2_ref, b3_ref,
                         o_ref, h1_ref, *, H, W, mid, cout, stride, lo_y, lo_x,
                         phase_info):
    """One batch element: conv1x1 -> ConvT(phase GEMMs) -> conv1x1, all in VMEM."""
    HW = H * W
    bf = jnp.bfloat16

    # ---- conv1 (1x1) + folded BN + ReLU; result kept as bf16 in VMEM scratch --
    x = x_ref[0].reshape(HW, x_ref.shape[-1]).astype(bf)
    h1 = jnp.dot(x, w1_ref[...], preferred_element_type=jnp.float32)
    h1 = jnp.maximum(h1 + b1_ref[...], 0.0).astype(bf)

    Hs, Ws = h1_ref.shape[0], h1_ref.shape[1]
    hi_y = Hs - H - lo_y
    hi_x = Ws - W - lo_x
    # Zero only the thin halo strips (the interior is fully overwritten below).
    if lo_y:
        h1_ref[0:lo_y, :, :] = jnp.zeros((lo_y, Ws, mid), h1_ref.dtype)
    if hi_y:
        h1_ref[lo_y + H:lo_y + H + hi_y, :, :] = jnp.zeros((hi_y, Ws, mid),
                                                           h1_ref.dtype)
    if lo_x:
        h1_ref[:, 0:lo_x, :] = jnp.zeros((Hs, lo_x, mid), h1_ref.dtype)
    if hi_x:
        h1_ref[:, lo_x + W:lo_x + W + hi_x, :] = jnp.zeros((Hs, hi_x, mid),
                                                           h1_ref.dtype)
    h1_ref[lo_y:lo_y + H, lo_x:lo_x + W, :] = h1.reshape(H, W, mid)

    # ---- hoist bias / weight reads out of the unrolled phase loops ----
    b2 = b2_ref[...]
    b3 = b3_ref[...]
    w2 = w2_ref[...]

    # ---- tp_conv sub-pixel phases (one GEMM each) + conv2, direct stores ----
    for a in range(stride):
        for b in range(stride):
            off, shifts = phase_info[a * stride + b]
            if shifts:
                slabs = [h1_ref[lo_y + dy:lo_y + dy + H,
                                lo_x + dx:lo_x + dx + W, :].reshape(HW, mid)
                         for (dy, dx) in shifts]
                operand = (slabs[0] if len(slabs) == 1
                           else jnp.concatenate(slabs, axis=-1))
                nk = len(shifts) * mid
                acc = jnp.dot(operand, wt_ref[off:off + nk, :],
                              preferred_element_type=jnp.float32)
            else:
                acc = jnp.zeros((HW, mid), jnp.float32)
            h2 = jnp.maximum(acc + b2, 0.0).astype(jnp.bfloat16)
            y = jnp.dot(h2, w2, preferred_element_type=jnp.float32)
            y = jnp.maximum(y + b3, 0.0)
            # lane-aligned direct store of this phase (cout-wide at lane b*cout)
            o_ref[0, :, a, :, b * cout:(b + 1) * cout] = (
                y.reshape(H, W, cout).astype(o_ref.dtype))


def decoder_link_pallas(x_nhwc, folded, *, kernel_size, stride, padding,
                        output_padding):
    """Fused Decoder_link forward on NHWC input, returns NHWC output (f32)."""
    N, H, W, Cin = x_nhwc.shape
    K, s = kernel_size, stride
    mid = folded["w1"].shape[1]
    cout = folded["w2"].shape[1]
    Ho = (H - 1) * s - 2 * padding + K + output_padding
    Wo = (W - 1) * s - 2 * padding + K + output_padding
    # TODO(synk): support configs where the ConvTranspose2d output size is not
    # exactly stride*input (e.g. padding=0): the per-phase outputs become ragged.
    assert Ho == s * H and Wo == s * W, (Ho, Wo, s, H, W)

    plan = _phase_plan(K, s, padding)
    phase_info = _phase_layout(plan, mid, s)
    dys = [dy for row in plan for taps in row for (_, dy, _) in taps] or [0]
    dxs = [dx for row in plan for taps in row for (_, _, dx) in taps] or [0]
    lo_y, hi_y = max(0, -min(dys)), max(0, max(dys))
    lo_x, hi_x = max(0, -min(dxs)), max(0, max(dxs))

    kernel = functools.partial(
        _decoder_link_kernel, H=H, W=W, mid=mid, cout=cout,
        stride=s, lo_y=lo_y, lo_x=lo_x, phase_info=phase_info)

    def whole(a):  # full-array block, resident across all grid steps
        return pl.BlockSpec(a.shape, lambda n, _nd=a.ndim: (0,) * _nd)

    # Cast the activations to bf16 at the HBM boundary (kernel used bf16 anyway).
    x_bf = x_nhwc.astype(jnp.bfloat16)

    out = pl.pallas_call(
        kernel,
        out_shape=jax.ShapeDtypeStruct((N, H, s, W, s * cout), jnp.float32),
        grid=(N,),
        in_specs=[
            pl.BlockSpec((1, H, W, Cin), lambda n: (n, 0, 0, 0)),
            whole(folded["w1"]), whole(folded["b1"]),
            whole(folded["wt"]), whole(folded["b2"]),
            whole(folded["w2"]), whole(folded["b3"]),
        ],
        out_specs=pl.BlockSpec((1, H, s, W, s * cout),
                               lambda n: (n, 0, 0, 0, 0)),
        scratch_shapes=[
            pltpu.VMEM((H + lo_y + hi_y, W + lo_x + hi_x, mid), jnp.bfloat16)],
        compiler_params=pltpu.CompilerParams(
            dimension_semantics=("parallel",)),
    )(x_bf, folded["w1"], folded["b1"], folded["wt"],
      folded["b2"], folded["w2"], folded["b3"])

    # metadata-only reshape: (N, H, s, W, s*Cout) -> (N, s*H, s*W, Cout)
    return out.reshape(N, s * H, s * W, cout)


def decoder_link_forward(x_nchw, folded, *, kernel_size, stride, padding,
                         output_padding):
    """NCHW in / NCHW out, matching the PyTorch module boundary."""
    x = jnp.transpose(x_nchw, (0, 2, 3, 1))
    y = decoder_link_pallas(x, folded, kernel_size=kernel_size, stride=stride,
                            padding=padding, output_padding=output_padding)
    return jnp.transpose(y, (0, 3, 1, 2))


# ------------------------------ parameter prep ------------------------------ #

def _randn(key, shape, scale=0.05):
    return scale * jax.random.normal(key, shape, jnp.float32)


def _init_bn(key, C):
    k1, k2, k3, k4 = jax.random.split(key, 4)
    return dict(
        gamma=1.0 + 0.1 * jax.random.normal(k1, (C,), jnp.float32),
        beta=0.1 * jax.random.normal(k2, (C,), jnp.float32),
        mean=0.1 * jax.random.normal(k3, (C,), jnp.float32),
        var=1.0 + 0.1 * jax.random.uniform(k4, (C,), jnp.float32),
    )


def init_decoder_link_params(key, in_planes, out_planes, kernel_size):
    """Raw PyTorch-layout weights + eval-mode BN stats (bias=False, as in LinkNet)."""
    mid = in_planes // 4
    ks = jax.random.split(key, 6)
    return dict(
        conv1_w=_randn(ks[0], (mid, in_planes, 1, 1)),              # (Cout,Cin,1,1)
        bn1=_init_bn(ks[1], mid),
        tp_w=_randn(ks[2], (mid, mid, kernel_size, kernel_size)),   # (Cin,Cout,K,K)
        bn2=_init_bn(ks[3], mid),
        conv2_w=_randn(ks[4], (out_planes, mid, 1, 1)),
        bn3=_init_bn(ks[5], out_planes),
    )


def _bn_scale_shift(bn):
    scale = bn["gamma"] / jnp.sqrt(bn["var"] + EPS)
    shift = bn["beta"] - bn["mean"] * scale
    return scale, shift


def fold_decoder_link_params(p, *, kernel_size, stride, padding):
    """Fold eval-mode BN into bf16 GEMM weights; lay tp_conv weight out phase-major.

    The transposed-conv weight rows are ordered (phase-raster, tap-in-phase, ci)
    so that each output phase's GEMM reads one contiguous row slice.
    """
    K = kernel_size
    mid = p["tp_w"].shape[0]
    bf = jnp.bfloat16
    plan = _phase_plan(K, stride, padding)

    s1, sh1 = _bn_scale_shift(p["bn1"])
    w1 = (p["conv1_w"][:, :, 0, 0] * s1[:, None]).T                 # (Cin, mid)

    s2, sh2 = _bn_scale_shift(p["bn2"])
    wt = p["tp_w"] * s2[None, :, None, None]                        # scale out-channels
    wt = jnp.transpose(wt, (2, 3, 0, 1))                            # (ky, kx, ci, co)
    blocks = []
    for a in range(stride):
        for b in range(stride):
            for (tap, _dy, _dx) in plan[a][b]:
                ky, kx = tap // K, tap % K
                blocks.append(wt[ky, kx])                           # (mid, mid)
    wt_rows = (jnp.concatenate(blocks, axis=0) if blocks
               else jnp.zeros((0, mid), jnp.float32))               # (K*K*mid, mid)

    s3, sh3 = _bn_scale_shift(p["bn3"])
    w2 = (p["conv2_w"][:, :, 0, 0] * s3[:, None]).T                 # (mid, Cout)

    return dict(
        w1=w1.astype(bf), b1=sh1.reshape(1, -1),
        wt=wt_rows.astype(bf), b2=sh2.reshape(1, -1),
        w2=w2.astype(bf), b3=sh3.reshape(1, -1),
    )


# ------------------------- pure-JAX f32 reference --------------------------- #

def decoder_link_reference(x_nchw, p, *, stride, padding, output_padding):
    """Reference matching PyTorch eval-mode semantics (f32, HIGHEST precision)."""
    hp = jax.lax.Precision.HIGHEST
    x = jnp.transpose(x_nchw, (0, 2, 3, 1))

    def bn_relu(y, bn):
        scale = bn["gamma"] / jnp.sqrt(bn["var"] + EPS)
        return jnp.maximum(y * scale + (bn["beta"] - bn["mean"] * scale), 0.0)

    y = jnp.einsum("nhwc,oc->nhwo", x, p["conv1_w"][:, :, 0, 0], precision=hp)
    y = bn_relu(y, p["bn1"])

    K = p["tp_w"].shape[-1]
    # exact ConvTranspose2d equivalence: flipped kernel + lhs dilation + asym pad
    w_hwio = jnp.transpose(p["tp_w"][:, :, ::-1, ::-1], (2, 3, 0, 1))
    lo = K - 1 - padding
    y = jax.lax.conv_general_dilated(
        y, w_hwio, window_strides=(1, 1),
        padding=[(lo, lo + output_padding)] * 2,
        lhs_dilation=(stride, stride),
        dimension_numbers=("NHWC", "HWIO", "NHWC"),
        precision=hp)
    y = bn_relu(y, p["bn2"])

    y = jnp.einsum("nhwc,oc->nhwo", y, p["conv2_w"][:, :, 0, 0], precision=hp)
    y = bn_relu(y, p["bn3"])
    return jnp.transpose(y, (0, 3, 1, 2))


# ----------------------------------- main ------------------------------------ #

if __name__ == "__main__":
    key = jax.random.PRNGKey(0)
    B = 2
    configs = [
        # (in_planes, out_planes, K, stride, padding, output_padding, H, W)
        (256, 128, 3, 2, 1, 1, 16, 16),   # LinkNet-style stride-2 upsampling block
        (64, 64, 3, 1, 1, 0, 16, 16),     # stride-1 variant (LinkNet decoder1)
    ]
    for (cin, cout, K, s, p, op, H, W) in configs:
        key, kp, kx = jax.random.split(key, 3)
        raw = init_decoder_link_params(kp, cin, cout, K)
        folded = fold_decoder_link_params(raw, kernel_size=K, stride=s, padding=p)
        x = jax.random.normal(kx, (B, cin, H, W), jnp.float32)

        fwd = jax.jit(functools.partial(
            decoder_link_forward, kernel_size=K, stride=s,
            padding=p, output_padding=op))
        out = fwd(x, folded)
        jax.block_until_ready(out)

        Ho = (H - 1) * s - 2 * p + K + op
        Wo = (W - 1) * s - 2 * p + K + op
        assert out.shape == (B, cout, Ho, Wo), out.shape
        assert bool(jnp.all(jnp.isfinite(out)))

        ref = decoder_link_reference(x, raw, stride=s, padding=p,
                                     output_padding=op)
        rel = float(jnp.max(jnp.abs(out - ref)) /
                    (jnp.max(jnp.abs(ref)) + 1e-6))
        assert rel < 0.06, f"relative error {rel} too large for cfg {(cin, cout, s)}"

    print("KERNEL_OK")
</pallas_src>

<mosaic_0001>
module attributes {stable_mosaic.version = 11 : i64} {
  func.func @_decoder_link_kernel(%arg0: i32, %arg1: memref<1x16x16x256xbf16, #tpu.memory_space<vmem>>, %arg2: memref<256x64xbf16, #tpu.memory_space<vmem>>, %arg3: memref<1x64xf32, #tpu.memory_space<vmem>>, %arg4: memref<576x64xbf16, #tpu.memory_space<vmem>>, %arg5: memref<1x64xf32, #tpu.memory_space<vmem>>, %arg6: memref<64x128xbf16, #tpu.memory_space<vmem>>, %arg7: memref<1x128xf32, #tpu.memory_space<vmem>>, %arg8: memref<1x16x2x16x256xf32, #tpu.memory_space<vmem>>, %arg9: memref<17x17x64xbf16, #tpu.memory_space<vmem>>) attributes {dimension_semantics = [#tpu.dimension_semantics<parallel>], iteration_bounds = array<i64: 2>, scalar_prefetch = 0 : i64, scratch_operands = 1 : i64, tpu.core_type = #tpu.core_type<tc>, window_params = [{transform_indices = @transform_0, window_bounds = array<i64: 1, 16, 16, 256>}, {pipeline_mode = #tpu.pipeline_mode<synchronous>, transform_indices = @transform_1, window_bounds = array<i64: 256, 64>}, {pipeline_mode = #tpu.pipeline_mode<synchronous>, transform_indices = @transform_2, window_bounds = array<i64: 1, 64>}, {pipeline_mode = #tpu.pipeline_mode<synchronous>, transform_indices = @transform_3, window_bounds = array<i64: 576, 64>}, {pipeline_mode = #tpu.pipeline_mode<synchronous>, transform_indices = @transform_4, window_bounds = array<i64: 1, 64>}, {pipeline_mode = #tpu.pipeline_mode<synchronous>, transform_indices = @transform_5, window_bounds = array<i64: 64, 128>}, {pipeline_mode = #tpu.pipeline_mode<synchronous>, transform_indices = @transform_6, window_bounds = array<i64: 1, 128>}, {transform_indices = @transform_7, window_bounds = array<i64: 1, 16, 2, 16, 256>}]} {
    %c0 = arith.constant 0 : index
    %c0_0 = arith.constant 0 : index
    %c0_1 = arith.constant 0 : index
    %c0_2 = arith.constant 0 : index
    %0 = vector.load %arg1[%c0, %c0_0, %c0_1, %c0_2] : memref<1x16x16x256xbf16, #tpu.memory_space<vmem>>, vector<1x16x16x256xbf16>
    %1 = vector.shape_cast %0 : vector<1x16x16x256xbf16> to vector<16x16x256xbf16>
    %2 = vector.shape_cast %1 : vector<16x16x256xbf16> to vector<256x256xbf16>
    %c0_3 = arith.constant 0 : index
    %c0_4 = arith.constant 0 : index
    %3 = vector.load %arg2[%c0_3, %c0_4] : memref<256x64xbf16, #tpu.memory_space<vmem>>, vector<256x64xbf16>
    %cst = arith.constant dense<0.000000e+00> : vector<256x64xf32>
    %4 = tpu.matmul %2, %3, %cst {dimension_numbers = #tpu.dot_dimension_numbers<[1], [0], [0], [1], [0, 0, 1, 1], [], []>} : vector<256x256xbf16>, vector<256x64xbf16>, vector<256x64xf32> -> vector<256x64xf32>
    %c0_5 = arith.constant 0 : index
    %c0_6 = arith.constant 0 : index
    %5 = vector.load %arg3[%c0_5, %c0_6] : memref<1x64xf32, #tpu.memory_space<vmem>>, vector<1x64xf32>
    %6 = vector.broadcast %5 : vector<1x64xf32> to vector<256x64xf32>
    %7 = arith.addf %4, %6 : vector<256x64xf32>
    %cst_7 = arith.constant 0.000000e+00 : f32
    %8 = vector.broadcast %cst_7 : f32 to vector<256x64xf32>
    %9 = arith.maximumf %7, %8 : vector<256x64xf32>
    %10 = arith.truncf %9 : vector<256x64xf32> to vector<256x64xbf16>
    %cst_8 = arith.constant 0.000000e+00 : bf16
    %11 = vector.broadcast %cst_8 : bf16 to vector<1x17x64xbf16>
    %c16 = arith.constant 16 : index
    %c0_9 = arith.constant 0 : index
    %c0_10 = arith.constant 0 : index
    %12 = vector.load %arg9[%c16, %c0_9, %c0_10] : memref<17x17x64xbf16, #tpu.memory_space<vmem>>, vector<1x17x64xbf16>
    tpu.vector_store %arg9[%c16, %c0_9, %c0_10], %11 {strides = array<i32>} : memref<17x17x64xbf16, #tpu.memory_space<vmem>>, vector<1x17x64xbf16>,
    %cst_11 = arith.constant 0.000000e+00 : bf16
    %13 = vector.broadcast %cst_11 : bf16 to vector<17x1x64xbf16>
    %c0_12 = arith.constant 0 : index
    %c16_13 = arith.constant 16 : index
    %c0_14 = arith.constant 0 : index
    %14 = vector.load %arg9[%c0_12, %c16_13, %c0_14] : memref<17x17x64xbf16, #tpu.memory_space<vmem>>, vector<17x1x64xbf16>
    tpu.vector_store %arg9[%c0_12, %c16_13, %c0_14], %13 {strides = array<i32>} : memref<17x17x64xbf16, #tpu.memory_space<vmem>>, vector<17x1x64xbf16>,
    %15 = vector.shape_cast %10 : vector<256x64xbf16> to vector<16x16x64xbf16>
    %c0_15 = arith.constant 0 : index
    %c0_16 = arith.constant 0 : index
    %c0_17 = arith.constant 0 : index
    %16 = vector.load %arg9[%c0_15, %c0_16, %c0_17] : memref<17x17x64xbf16, #tpu.memory_space<vmem>>, vector<16x16x64xbf16>
    tpu.vector_store %arg9[%c0_15, %c0_16, %c0_17], %15 {strides = array<i32>} : memref<17x17x64xbf16, #tpu.memory_space<vmem>>, vector<16x16x64xbf16>,
    %c0_18 = arith.constant 0 : index
    %c0_19 = arith.constant 0 : index
    %17 = vector.load %arg5[%c0_18, %c0_19] : memref<1x64xf32, #tpu.memory_space<vmem>>, vector<1x64xf32>
    %c0_20 = arith.constant 0 : index
    %c0_21 = arith.constant 0 : index
    %18 = vector.load %arg7[%c0_20, %c0_21] : memref<1x128xf32, #tpu.memory_space<vmem>>, vector<1x128xf32>
    %c0_22 = arith.constant 0 : index
    %c0_23 = arith.constant 0 : index
    %19 = vector.load %arg6[%c0_22, %c0_23] : memref<64x128xbf16, #tpu.memory_space<vmem>>, vector<64x128xbf16>
    %c0_24 = arith.constant 0 : index
    %c0_25 = arith.constant 0 : index
    %c0_26 = arith.constant 0 : index
    %20 = vector.load %arg9[%c0_24, %c0_25, %c0_26] : memref<17x17x64xbf16, #tpu.memory_space<vmem>>, vector<16x16x64xbf16>
    %21 = vector.shape_cast %20 : vector<16x16x64xbf16> to vector<256x64xbf16>
    %c0_27 = arith.constant 0 : index
    %c0_28 = arith.constant 0 : index
    %22 = vector.load %arg4[%c0_27, %c0_28] : memref<576x64xbf16, #tpu.memory_space<vmem>>, vector<64x64xbf16>
    %cst_29 = arith.constant dense<0.000000e+00> : vector<256x64xf32>
    %23 = tpu.matmul %21, %22, %cst_29 {dimension_numbers = #tpu.dot_dimension_numbers<[1], [0], [0], [1], [0, 0, 1, 1], [], []>} : vector<256x64xbf16>, vector<64x64xbf16>, vector<256x64xf32> -> vector<256x64xf32>
    %24 = vector.broadcast %17 : vector<1x64xf32> to vector<256x64xf32>
    %25 = arith.addf %23, %24 : vector<256x64xf32>
    %cst_30 = arith.constant 0.000000e+00 : f32
    %26 = vector.broadcast %cst_30 : f32 to vector<256x64xf32>
    %27 = arith.maximumf %25, %26 : vector<256x64xf32>
    %28 = arith.truncf %27 : vector<256x64xf32> to vector<256x64xbf16>
    %cst_31 = arith.constant dense<0.000000e+00> : vector<256x128xf32>
    %29 = tpu.matmul %28, %19, %cst_31 {dimension_numbers = #tpu.dot_dimension_numbers<[1], [0], [0], [1], [0, 0, 1, 1], [], []>} : vector<256x64xbf16>, vector<64x128xbf16>, vector<256x128xf32> -> vector<256x128xf32>
    %30 = vector.broadcast %18 : vector<1x128xf32> to vector<256x128xf32>
    %31 = arith.addf %29, %30 : vector<256x128xf32>
    %cst_32 = arith.constant 0.000000e+00 : f32
    %32 = vector.broadcast %cst_32 : f32 to vector<256x128xf32>
    %33 = arith.maximumf %31, %32 : vector<256x128xf32>
    %34 = vector.shape_cast %33 : vector<256x128xf32> to vector<16x16x128xf32>
    %c0_33 = arith.constant 0 : index
    %c0_34 = arith.constant 0 : index
    %c0_35 = arith.constant 0 : index
    %c0_36 = arith.constant 0 : index
    %c0_37 = arith.constant 0 : index
    %35 = vector.load %arg8[%c0_33, %c0_34, %c0_35, %c0_36, %c0_37] : memref<1x16x2x16x256xf32, #tpu.memory_space<vmem>>, vector<1x16x1x16x128xf32>
    %36 = vector.shape_cast %35 : vector<1x16x1x16x128xf32> to vector<16x16x128xf32>
    %37 = vector.shape_cast %34 : vector<16x16x128xf32> to vector<1x16x1x16x128xf32>
    tpu.vector_store %arg8[%c0_33, %c0_34, %c0_35, %c0_36, %c0_37], %37 {strides = array<i32>} : memref<1x16x2x16x256xf32, #tpu.memory_space<vmem>>, vector<1x16x1x16x128xf32>,
    %c0_38 = arith.constant 0 : index
    %c1 = arith.constant 1 : index
    %c0_39 = arith.constant 0 : index
    %38 = vector.load %arg9[%c0_38, %c1, %c0_39] : memref<17x17x64xbf16, #tpu.memory_space<vmem>>, vector<16x16x64xbf16>
    %39 = vector.shape_cast %38 : vector<16x16x64xbf16> to vector<256x64xbf16>
    %c0_40 = arith.constant 0 : index
    %c0_41 = arith.constant 0 : index
    %c0_42 = arith.constant 0 : index
    %40 = vector.load %arg9[%c0_40, %c0_41, %c0_42] : memref<17x17x64xbf16, #tpu.memory_space<vmem>>, vector<16x16x64xbf16>
    %41 = vector.shape_cast %40 : vector<16x16x64xbf16> to vector<256x64xbf16>
    %42 = tpu.concatenate %39, %41 in 1 : vector<256x64xbf16>, vector<256x64xbf16> -> vector<256x128xbf16>
    %c64 = arith.constant 64 : index
    %c0_43 = arith.constant 0 : index
    %43 = vector.load %arg4[%c64, %c0_43] : memref<576x64xbf16, #tpu.memory_space<vmem>>, vector<128x64xbf16>
    %cst_44 = arith.constant dense<0.000000e+00> : vector<256x64xf32>
    %44 = tpu.matmul %42, %43, %cst_44 {dimension_numbers = #tpu.dot_dimension_numbers<[1], [0], [0], [1], [0, 0, 1, 1], [], []>} : vector<256x128xbf16>, vector<128x64xbf16>, vector<256x64xf32> -> vector<256x64xf32>
    %45 = vector.broadcast %17 : vector<1x64xf32> to vector<256x64xf32>
    %46 = arith.addf %44, %45 : vector<256x64xf32>
    %cst_45 = arith.constant 0.000000e+00 : f32
    %47 = vector.broadcast %cst_45 : f32 to vector<256x64xf32>
    %48 = arith.maximumf %46, %47 : vector<256x64xf32>
    %49 = arith.truncf %48 : vector<256x64xf32> to vector<256x64xbf16>
    %cst_46 = arith.constant dense<0.000000e+00> : vector<256x128xf32>
    %50 = tpu.matmul %49, %19, %cst_46 {dimension_numbers = #tpu.dot_dimension_numbers<[1], [0], [0], [1], [0, 0, 1, 1], [], []>} : vector<256x64xbf16>, vector<64x128xbf16>, vector<256x128xf32> -> vector<256x128xf32>
    %51 = vector.broadcast %18 : vector<1x128xf32> to vector<256x128xf32>
    %52 = arith.addf %50, %51 : vector<256x128xf32>
    %cst_47 = arith.constant 0.000000e+00 : f32
    %53 = vector.broadcast %cst_47 : f32 to vector<256x128xf32>
    %54 = arith.maximumf %52, %53 : vector<256x128xf32>
    %55 = vector.shape_cast %54 : vector<256x128xf32> to vector<16x16x128xf32>
    %c0_48 = arith.constant 0 : index
    %c0_49 = arith.constant 0 : index
    %c0_50 = arith.constant 0 : index
    %c0_51 = arith.constant 0 : index
    %c128 = arith.constant 128 : index
    %56 = vector.load %arg8[%c0_48, %c0_49, %c0_50, %c0_51, %c128] : memref<1x16x2x16x256xf32, #tpu.memory_space<vmem>>, vector<1x16x1x16x128xf32>
    %57 = vector.shape_cast %56 : vector<1x16x1x16x128xf32> to vector<16x16x128xf32>
    %58 = vector.shape_cast %55 : vector<16x16x128xf32> to vector<1x16x1x16x128xf32>
    tpu.vector_store %arg8[%c0_48, %c0_49, %c0_50, %c0_51, %c128], %58 {strides = array<i32>} : memref<1x16x2x16x256xf32, #tpu.memory_space<vmem>>, vector<1x16x1x16x128xf32>,
    %c1_52 = arith.constant 1 : index
    %c0_53 = arith.constant 0 : index
    %c0_54 = arith.constant 0 : index
    %59 = vector.load %arg9[%c1_52, %c0_53, %c0_54] : memref<17x17x64xbf16, #tpu.memory_space<vmem>>, vector<16x16x64xbf16>
    %60 = vector.shape_cast %59 : vector<16x16x64xbf16> to vector<256x64xbf16>
    %c0_55 = arith.constant 0 : index
    %c0_56 = arith.constant 0 : index
    %c0_57 = arith.constant 0 : index
    %61 = vector.load %arg9[%c0_55, %c0_56, %c0_57] : memref<17x17x64xbf16, #tpu.memory_space<vmem>>, vector<16x16x64xbf16>
    %62 = vector.shape_cast %61 : vector<16x16x64xbf16> to vector<256x64xbf16>
    %63 = tpu.concatenate %60, %62 in 1 : vector<256x64xbf16>, vector<256x64xbf16> -> vector<256x128xbf16>
    %c192 = arith.constant 192 : index
    %c0_58 = arith.constant 0 : index
    %64 = vector.load %arg4[%c192, %c0_58] : memref<576x64xbf16, #tpu.memory_space<vmem>>, vector<128x64xbf16>
    %cst_59 = arith.constant dense<0.000000e+00> : vector<256x64xf32>
    %65 = tpu.matmul %63, %64, %cst_59 {dimension_numbers = #tpu.dot_dimension_numbers<[1], [0], [0], [1], [0, 0, 1, 1], [], []>} : vector<256x128xbf16>, vector<128x64xbf16>, vector<256x64xf32> -> vector<256x64xf32>
    %66 = vector.broadcast %17 : vector<1x64xf32> to vector<256x64xf32>
    %67 = arith.addf %65, %66 : vector<256x64xf32>
    %cst_60 = arith.constant 0.000000e+00 : f32
    %68 = vector.broadcast %cst_60 : f32 to vector<256x64xf32>
    %69 = arith.maximumf %67, %68 : vector<256x64xf32>
    %70 = arith.truncf %69 : vector<256x64xf32> to vector<256x64xbf16>
    %cst_61 = arith.constant dense<0.000000e+00> : vector<256x128xf32>
    %71 = tpu.matmul %70, %19, %cst_61 {dimension_numbers = #tpu.dot_dimension_numbers<[1], [0], [0], [1], [0, 0, 1, 1], [], []>} : vector<256x64xbf16>, vector<64x128xbf16>, vector<256x128xf32> -> vector<256x128xf32>
    %72 = vector.broadcast %18 : vector<1x128xf32> to vector<256x128xf32>
    %73 = arith.addf %71, %72 : vector<256x128xf32>
    %cst_62 = arith.constant 0.000000e+00 : f32
    %74 = vector.broadcast %cst_62 : f32 to vector<256x128xf32>
    %75 = arith.maximumf %73, %74 : vector<256x128xf32>
    %76 = vector.shape_cast %75 : vector<256x128xf32> to vector<16x16x128xf32>
    %c0_63 = arith.constant 0 : index
    %c0_64 = arith.constant 0 : index
    %c1_65 = arith.constant 1 : index
    %c0_66 = arith.constant 0 : index
    %c0_67 = arith.constant 0 : index
    %77 = vector.load %arg8[%c0_63, %c0_64, %c1_65, %c0_66, %c0_67] : memref<1x16x2x16x256xf32, #tpu.memory_space<vmem>>, vector<1x16x1x16x128xf32>
    %78 = vector.shape_cast %77 : vector<1x16x1x16x128xf32> to vector<16x16x128xf32>
    %79 = vector.shape_cast %76 : vector<16x16x128xf32> to vector<1x16x1x16x128xf32>
    tpu.vector_store %arg8[%c0_63, %c0_64, %c1_65, %c0_66, %c0_67], %79 {strides = array<i32>} : memref<1x16x2x16x256xf32, #tpu.memory_space<vmem>>, vector<1x16x1x16x128xf32>,
    %c1_68 = arith.constant 1 : index
    %c1_69 = arith.constant 1 : index
    %c0_70 = arith.constant 0 : index
    %80 = vector.load %arg9[%c1_68, %c1_69, %c0_70] : memref<17x17x64xbf16, #tpu.memory_space<vmem>>, vector<16x16x64xbf16>
    %81 = vector.shape_cast %80 : vector<16x16x64xbf16> to vector<256x64xbf16>
    %c1_71 = arith.constant 1 : index
    %c0_72 = arith.constant 0 : index
    %c0_73 = arith.constant 0 : index
    %82 = vector.load %arg9[%c1_71, %c0_72, %c0_73] : memref<17x17x64xbf16, #tpu.memory_space<vmem>>, vector<16x16x64xbf16>
    %83 = vector.shape_cast %82 : vector<16x16x64xbf16> to vector<256x64xbf16>
    %c0_74 = arith.constant 0 : index
    %c1_75 = arith.constant 1 : index
    %c0_76 = arith.constant 0 : index
    %84 = vector.load %arg9[%c0_74, %c1_75, %c0_76] : memref<17x17x64xbf16, #tpu.memory_space<vmem>>, vector<16x16x64xbf16>
    %85 = vector.shape_cast %84 : vector<16x16x64xbf16> to vector<256x64xbf16>
    %c0_77 = arith.constant 0 : index
    %c0_78 = arith.constant 0 : index
    %c0_79 = arith.constant 0 : index
    %86 = vector.load %arg9[%c0_77, %c0_78, %c0_79] : memref<17x17x64xbf16, #tpu.memory_space<vmem>>, vector<16x16x64xbf16>
    %87 = vector.shape_cast %86 : vector<16x16x64xbf16> to vector<256x64xbf16>
    %88 = tpu.concatenate %81, %83, %85, %87 in 1 : vector<256x64xbf16>, vector<256x64xbf16>, vector<256x64xbf16>, vector<256x64xbf16> -> vector<256x256xbf16>
    %c320 = arith.constant 320 : index
    %c0_80 = arith.constant 0 : index
    %89 = vector.load %arg4[%c320, %c0_80] : memref<576x64xbf16, #tpu.memory_space<vmem>>, vector<256x64xbf16>
    %cst_81 = arith.constant dense<0.000000e+00> : vector<256x64xf32>
    %90 = tpu.matmul %88, %89, %cst_81 {dimension_numbers = #tpu.dot_dimension_numbers<[1], [0], [0], [1], [0, 0, 1, 1], [], []>} : vector<256x256xbf16>, vector<256x64xbf16>, vector<256x64xf32> -> vector<256x64xf32>
    %91 = vector.broadcast %17 : vector<1x64xf32> to vector<256x64xf32>
    %92 = arith.addf %90, %91 : vector<256x64xf32>
    %cst_82 = arith.constant 0.000000e+00 : f32
    %93 = vector.broadcast %cst_82 : f32 to vector<256x64xf32>
    %94 = arith.maximumf %92, %93 : vector<256x64xf32>
    %95 = arith.truncf %94 : vector<256x64xf32> to vector<256x64xbf16>
    %cst_83 = arith.constant dense<0.000000e+00> : vector<256x128xf32>
    %96 = tpu.matmul %95, %19, %cst_83 {dimension_numbers = #tpu.dot_dimension_numbers<[1], [0], [0], [1], [0, 0, 1, 1], [], []>} : vector<256x64xbf16>, vector<64x128xbf16>, vector<256x128xf32> -> vector<256x128xf32>
    %97 = vector.broadcast %18 : vector<1x128xf32> to vector<256x128xf32>
    %98 = arith.addf %96, %97 : vector<256x128xf32>
    %cst_84 = arith.constant 0.000000e+00 : f32
    %99 = vector.broadcast %cst_84 : f32 to vector<256x128xf32>
    %100 = arith.maximumf %98, %99 : vector<256x128xf32>
    %101 = vector.shape_cast %100 : vector<256x128xf32> to vector<16x16x128xf32>
    %c0_85 = arith.constant 0 : index
    %c0_86 = arith.constant 0 : index
    %c1_87 = arith.constant 1 : index
    %c0_88 = arith.constant 0 : index
    %c128_89 = arith.constant 128 : index
    %102 = vector.load %arg8[%c0_85, %c0_86, %c1_87, %c0_88, %c128_89] : memref<1x16x2x16x256xf32, #tpu.memory_space<vmem>>, vector<1x16x1x16x128xf32>
    %103 = vector.shape_cast %102 : vector<1x16x1x16x128xf32> to vector<16x16x128xf32>
    %104 = vector.shape_cast %101 : vector<16x16x128xf32> to vector<1x16x1x16x128xf32>
    tpu.vector_store %arg8[%c0_85, %c0_86, %c1_87, %c0_88, %c128_89], %104 {strides = array<i32>} : memref<1x16x2x16x256xf32, #tpu.memory_space<vmem>>, vector<1x16x1x16x128xf32>,
    return
  }
  func.func @transform_0(%arg0: i32) -> (i32, i32, i32, i32) {
    %c0_i32 = arith.constant 0 : i32
    %c0_i32_0 = arith.constant 0 : i32
    %c0_i32_1 = arith.constant 0 : i32
    %c0_i32_2 = arith.constant 0 : i32
    return %arg0, %c0_i32, %c0_i32_0, %c0_i32_1 : i32, i32, i32, i32
  }
  func.func @transform_1(%arg0: i32) -> (i32, i32) {
    %c0_i32 = arith.constant 0 : i32
    %c0_i32_0 = arith.constant 0 : i32
    %c0_i32_1 = arith.constant 0 : i32
    return %c0_i32, %c0_i32_0 : i32, i32
  }
  func.func @transform_2(%arg0: i32) -> (i32, i32) {
    %c0_i32 = arith.constant 0 : i32
    %c0_i32_0 = arith.constant 0 : i32
    %c0_i32_1 = arith.constant 0 : i32
    return %c0_i32, %c0_i32_0 : i32, i32
  }
  func.func @transform_3(%arg0: i32) -> (i32, i32) {
    %c0_i32 = arith.constant 0 : i32
    %c0_i32_0 = arith.constant 0 : i32
    %c0_i32_1 = arith.constant 0 : i32
    return %c0_i32, %c0_i32_0 : i32, i32
  }
  func.func @transform_4(%arg0: i32) -> (i32, i32) {
    %c0_i32 = arith.constant 0 : i32
    %c0_i32_0 = arith.constant 0 : i32
    %c0_i32_1 = arith.constant 0 : i32
    return %c0_i32, %c0_i32_0 : i32, i32
  }
  func.func @transform_5(%arg0: i32) -> (i32, i32) {
    %c0_i32 = arith.constant 0 : i32
    %c0_i32_0 = arith.constant 0 : i32
    %c0_i32_1 = arith.constant 0 : i32
    return %c0_i32, %c0_i32_0 : i32, i32
  }
  func.func @transform_6(%arg0: i32) -> (i32, i32) {
    %c0_i32 = arith.constant 0 : i32
    %c0_i32_0 = arith.constant 0 : i32
    %c0_i32_1 = arith.constant 0 : i32
    return %c0_i32, %c0_i32_0 : i32, i32
  }
  func.func @transform_7(%arg0: i32) -> (i32, i32, i32, i32, i32) {
    %c0_i32 = arith.constant 0 : i32
    %c0_i32_0 = arith.constant 0 : i32
    %c0_i32_1 = arith.constant 0 : i32
    %c0_i32_2 = arith.constant 0 : i32
    %c0_i32_3 = arith.constant 0 : i32
    return %arg0, %c0_i32, %c0_i32_0, %c0_i32_1, %c0_i32_2 : i32, i32, i32, i32, i32
  }
}

</mosaic_0001>

<llo_original>
// kernel: decoder_link_forward.1
$region0: #{decoder_link_forward.1}
  #allocation0 [shape = 'u32[]', space=smem, size = 0x4, offset = 0x4, fixed_abs, tag = 'smem constant byte address 0x4 - core index']
  #allocation1 [shape = 'u32[144,128]{1,0:T(1,128)}', space=vmem, size = 0x12000, scoped, tag = 'internal scratch']
  #allocation2 [shape = 'bf16[17,17,64]{2,1,0:T(8,128)(2,1)}', space=vmem, size = 0x19800, scoped, tag = 'scratch operand']
  %s0 = inlined_call_operand.vmem [shape: bf16[2,16,16,256], index: 0, kind: input, shape index: {}]
  %s1 = inlined_call_operand.vmem [shape: bf16[256,64], index: 1, kind: input, shape index: {}]
  %s2 = inlined_call_operand.vmem [shape: f32[1,64], index: 2, kind: input, shape index: {}]
  %s3 = inlined_call_operand.vmem [shape: bf16[576,64], index: 3, kind: input, shape index: {}]
  %s4 = inlined_call_operand.vmem [shape: f32[1,64], index: 4, kind: input, shape index: {}]
  %s5 = inlined_call_operand.vmem [shape: bf16[64,128], index: 5, kind: input, shape index: {}]
  %s6 = inlined_call_operand.vmem [shape: f32[1,128], index: 6, kind: input, shape index: {}]
  %s7 = inlined_call_operand.vmem [shape: f32[2,16,2,16,256], index: 7, kind: output, shape index: {}]
  %s8 = sld [smem:[#allocation0]]
  $region61: #{decoder_link_forward.1} parent=0
    _
  %s10 = ssub.s32 1, %s8
  %s11 = scalar_select 0, %s10, %s8
  loop: start=0, step=1, limit=4
  $region2: #{decoder_link_forward.1} parent=0 // loop_pre_header
    _
  $region3: #{decoder_link_forward.1} parent=0 // loop_header
    %s13 = sphi 0, %s17
    %p14 = scmp.ge.s32.totalorder %s13, 4
    %s23 = sphi 0, %s25
    %s26 = sphi 0, %s23
    %s27 = sphi 0, %s26
    %s43 = sphi 0, %s27
    %s47 = sphi 0, %s47
    %s49 = sphi 0, %s47
    %s50 = sphi 0, %s49
    %s64 = sphi 0, %s50
    %s68 = sphi 0, %s68
    %s70 = sphi 0, %s68
    %s71 = sphi 0, %s70
    %s85 = sphi 0, %s71
    %s89 = sphi 0, %s89
    %s91 = sphi 0, %s89
    %s92 = sphi 0, %s91
    %s106 = sphi 0, %s92
    %s110 = sphi 0, %s110
    %s112 = sphi 0, %s110
    %s113 = sphi 0, %s112
    %s127 = sphi 0, %s113
    %s131 = sphi 0, %s131
    %s133 = sphi 0, %s131
    %s134 = sphi 0, %s133
    %s148 = sphi 0, %s134
    %s152 = sphi 0, %s152
    %s154 = sphi 0, %s152
    %s155 = sphi 0, %s154
    %s169 = sphi 0, %s155
    %s175 = sphi 0, %s177
    %s178 = sphi 0, %s175
    %s179 = sphi 0, %s178
    %s195 = sphi 0, %s179
  $region4: #{decoder_link_forward.1} parent=0 // loop_header_branch
    %16 = sbr.rel (%p14) target = $region8
  $region5: #{decoder_link_forward.1} parent=0 // loop_body
    %s18 = ssub.s32 %s13, 1
    %s19 = ssub.s32 %s13, 2
    %s20 = sadd.s32 %s13, 1
    %s21 = ssub.s32 %s13, %s20
    %p22 = scmp.eq.s32.totalorder %s21, 0
    %s24 = sadd.s32 %s23, 1
    %s25 = scalar_select %p22, %s23, %s24
    %p28 = pneg %p22
    %p29 = scmp.eq.s32.totalorder %s13, 1
    %p30 = por %p28, %p29
    %p31 = scmp.ne.s32.totalorder %s23, %s26
    %p32 = scmp.eq.s32.totalorder %s13, 0
    %p33 = por %p31, %p32
    %p34 = scmp.ne.s32.totalorder %s23, %s26
    %p35 = scmp.eq.s32.totalorder %s18, 1
    %p36 = por %p34, %p35
    %p37 = scmp.ne.s32.totalorder %s26, %s27
    %p38 = scmp.eq.s32.totalorder %s18, 0
    %p39 = por %p37, %p38
    %p40 = scmp.ne.s32.totalorder %s26, %s27
    %p41 = scmp.eq.s32.totalorder %s19, 1
    %p42 = por %p40, %p41
    %p44 = scmp.ne.s32.totalorder %s27, %s43
    %p45 = scmp.eq.s32.totalorder %s19, 0
    %p46 = por %p44, %p45
    %s48 = sadd.s32 %s47, 1
    %p51 = scmp.eq.s32.totalorder %s13, 1
    %p52 = scmp.ne.s32.totalorder %s47, %s49
    %p53 = scmp.eq.s32.totalorder %s13, 0
    %p54 = por %p52, %p53
    %p55 = scmp.ne.s32.totalorder %s47, %s49
    %p56 = scmp.eq.s32.totalorder %s18, 1
    %p57 = por %p55, %p56
    %p58 = scmp.ne.s32.totalorder %s49, %s50
    %p59 = scmp.eq.s32.totalorder %s18, 0
    %p60 = por %p58, %p59
    %p61 = scmp.ne.s32.totalorder %s49, %s50
    %p62 = scmp.eq.s32.totalorder %s19, 1
    %p63 = por %p61, %p62
    %p65 = scmp.ne.s32.totalorder %s50, %s64
    %p66 = scmp.eq.s32.totalorder %s19, 0
    %p67 = por %p65, %p66
    %s69 = sadd.s32 %s68, 1
    %p72 = scmp.eq.s32.totalorder %s13, 1
    %p73 = scmp.ne.s32.totalorder %s68, %s70
    %p74 = scmp.eq.s32.totalorder %s13, 0
    %p75 = por %p73, %p74
    %p76 = scmp.ne.s32.totalorder %s68, %s70
    %p77 = scmp.eq.s32.totalorder %s18, 1
    %p78 = por %p76, %p77
    %p79 = scmp.ne.s32.totalorder %s70, %s71
    %p80 = scmp.eq.s32.totalorder %s18, 0
    %p81 = por %p79, %p80
    %p82 = scmp.ne.s32.totalorder %s70, %s71
    %p83 = scmp.eq.s32.totalorder %s19, 1
    %p84 = por %p82, %p83
    %p86 = scmp.ne.s32.totalorder %s71, %s85
    %p87 = scmp.eq.s32.totalorder %s19, 0
    %p88 = por %p86, %p87
    %s90 = sadd.s32 %s89, 1
    %p93 = scmp.eq.s32.totalorder %s13, 1
    %p94 = scmp.ne.s32.totalorder %s89, %s91
    %p95 = scmp.eq.s32.totalorder %s13, 0
    %p96 = por %p94, %p95
    %p97 = scmp.ne.s32.totalorder %s89, %s91
    %p98 = scmp.eq.s32.totalorder %s18, 1
    %p99 = por %p97, %p98
    %p100 = scmp.ne.s32.totalorder %s91, %s92
    %p101 = scmp.eq.s32.totalorder %s18, 0
    %p102 = por %p100, %p101
    %p103 = scmp.ne.s32.totalorder %s91, %s92
    %p104 = scmp.eq.s32.totalorder %s19, 1
    %p105 = por %p103, %p104
    %p107 = scmp.ne.s32.totalorder %s92, %s106
    %p108 = scmp.eq.s32.totalorder %s19, 0
    %p109 = por %p107, %p108
    %s111 = sadd.s32 %s110, 1
    %p114 = scmp.eq.s32.totalorder %s13, 1
    %p115 = scmp.ne.s32.totalorder %s110, %s112
    %p116 = scmp.eq.s32.totalorder %s13, 0
    %p117 = por %p115, %p116
    %p118 = scmp.ne.s32.totalorder %s110, %s112
    %p119 = scmp.eq.s32.totalorder %s18, 1
    %p120 = por %p118, %p119
    %p121 = scmp.ne.s32.totalorder %s112, %s113
    %p122 = scmp.eq.s32.totalorder %s18, 0
    %p123 = por %p121, %p122
    %p124 = scmp.ne.s32.totalorder %s112, %s113
    %p125 = scmp.eq.s32.totalorder %s19, 1
    %p126 = por %p124, %p125
    %p128 = scmp.ne.s32.totalorder %s113, %s127
    %p129 = scmp.eq.s32.totalorder %s19, 0
    %p130 = por %p128, %p129
    %s132 = sadd.s32 %s131, 1
    %p135 = scmp.eq.s32.totalorder %s13, 1
    %p136 = scmp.ne.s32.totalorder %s131, %s133
    %p137 = scmp.eq.s32.totalorder %s13, 0
    %p138 = por %p136, %p137
    %p139 = scmp.ne.s32.totalorder %s131, %s133
    %p140 = scmp.eq.s32.totalorder %s18, 1
    %p141 = por %p139, %p140
    %p142 = scmp.ne.s32.totalorder %s133, %s134
    %p143 = scmp.eq.s32.totalorder %s18, 0
    %p144 = por %p142, %p143
    %p145 = scmp.ne.s32.totalorder %s133, %s134
    %p146 = scmp.eq.s32.totalorder %s19, 1
    %p147 = por %p145, %p146
    %p149 = scmp.ne.s32.totalorder %s134, %s148
    %p150 = scmp.eq.s32.totalorder %s19, 0
    %p151 = por %p149, %p150
    %s153 = sadd.s32 %s152, 1
    %p156 = scmp.eq.s32.totalorder %s13, 1
    %p157 = scmp.ne.s32.totalorder %s152, %s154
    %p158 = scmp.eq.s32.totalorder %s13, 0
    %p159 = por %p157, %p158
    %p160 = scmp.ne.s32.totalorder %s152, %s154
    %p161 = scmp.eq.s32.totalorder %s18, 1
    %p162 = por %p160, %p161
    %p163 = scmp.ne.s32.totalorder %s154, %s155
    %p164 = scmp.eq.s32.totalorder %s18, 0
    %p165 = por %p163, %p164
    %p166 = scmp.ne.s32.totalorder %s154, %s155
    %p167 = scmp.eq.s32.totalorder %s19, 1
    %p168 = por %p166, %p167
    %p170 = scmp.ne.s32.totalorder %s155, %s169
    %p171 = scmp.eq.s32.totalorder %s19, 0
    %p172 = por %p170, %p171
    %s173 = ssub.s32 %s13, %s20
    %p174 = scmp.eq.s32.totalorder %s173, 0
    %s176 = sadd.s32 %s175, 1
    %s177 = scalar_select %p174, %s175, %s176
    %p180 = pneg %p174
    %p181 = scmp.eq.s32.totalorder %s13, 1
    %p182 = por %p180, %p181
    %p183 = scmp.ne.s32.totalorder %s175, %s178
    %p184 = scmp.eq.s32.totalorder %s13, 0
    %p185 = por %p183, %p184
    %p186 = scmp.ne.s32.totalorder %s175, %s178
    %p187 = scmp.eq.s32.totalorder %s18, 1
    %p188 = por %p186, %p187
    %p189 = scmp.ne.s32.totalorder %s178, %s179
    %p190 = scmp.eq.s32.totalorder %s18, 0
    %p191 = por %p189, %p190
    %p192 = scmp.ne.s32.totalorder %s178, %s179
    %p193 = scmp.eq.s32.totalorder %s19, 1
    %p194 = por %p192, %p193
    %p196 = scmp.ne.s32.totalorder %s179, %s195
    %p197 = scmp.eq.s32.totalorder %s19, 0
    %p198 = por %p196, %p197
    %p199 = scmp.le.s32.totalorder 1, %s13
    %p200 = scmp.lt.s32.totalorder %s13, 3
    %p201 = pnand %p199, %p200
    %p202 = pneg %p201
    // Predicated region
    $region9: #{decoder_link_forward.1} parent=5 // pred_check
      _
    $region10: #{decoder_link_forward.1} parent=5 // pred_check_branch
      %204 = sbr.rel (%p201) target = $region12
    $region11: #{decoder_link_forward.1} parent=5 // pred_region
      %s205 = ssub.s32 %s13, 1
      // Predicated region
      $region13: #{decoder_link_forward.1} parent=11 // pred_check
        %p206 = pneg %p60
      $region14: #{decoder_link_forward.1} parent=11 // pred_check_branch
        %208 = sbr.rel (%p206) target = $region16
      $region15: #{decoder_link_forward.1} parent=11 // pred_region
        _
      $region16: #{decoder_link_forward.1} parent=11 // pred_fallthru
        _
      // Predicated region
      $region17: #{decoder_link_forward.1} parent=11 // pred_check
        %p209 = pneg %p81
      $region18: #{decoder_link_forward.1} parent=11 // pred_check_branch
        %211 = sbr.rel (%p209) target = $region20
      $region19: #{decoder_link_forward.1} parent=11 // pred_region
        _
      $region20: #{decoder_link_forward.1} parent=11 // pred_fallthru
        _
      // Predicated region
      $region21: #{decoder_link_forward.1} parent=11 // pred_check
        %p212 = pneg %p102
      $region22: #{decoder_link_forward.1} parent=11 // pred_check_branch
        %214 = sbr.rel (%p212) target = $region24
      $region23: #{decoder_link_forward.1} parent=11 // pred_region
        _
      $region24: #{decoder_link_forward.1} parent=11 // pred_fallthru
        _
      // Predicated region
      $region25: #{decoder_link_forward.1} parent=11 // pred_check
        %p215 = pneg %p123
      $region26: #{decoder_link_forward.1} parent=11 // pred_check_branch
        %217 = sbr.rel (%p215) target = $region28
      $region27: #{decoder_link_forward.1} parent=11 // pred_region
        _
      $region28: #{decoder_link_forward.1} parent=11 // pred_fallthru
        _
      // Predicated region
      $region29: #{decoder_link_forward.1} parent=11 // pred_check
        %p218 = pneg %p144
      $region30: #{decoder_link_forward.1} parent=11 // pred_check_branch
        %220 = sbr.rel (%p218) target = $region32
      $region31: #{decoder_link_forward.1} parent=11 // pred_region
        _
      $region32: #{decoder_link_forward.1} parent=11 // pred_fallthru
        _
      // Predicated region
      $region33: #{decoder_link_forward.1} parent=11 // pred_check
        %p221 = pneg %p165
      $region34: #{decoder_link_forward.1} parent=11 // pred_check_branch
        %223 = sbr.rel (%p221) target = $region36
      $region35: #{decoder_link_forward.1} parent=11 // pred_region
        _
      $region36: #{decoder_link_forward.1} parent=11 // pred_fallthru
        _
    $region12: #{decoder_link_forward.1} parent=5 // pred_fallthru
      _
    %p224 = scmp.lt.s32.totalorder %s13, 2
    // Predicated region
    $region37: #{decoder_link_forward.1} parent=5 // pred_check
      %p225 = pneg %p224
    $region38: #{decoder_link_forward.1} parent=5 // pred_check_branch
      %227 = sbr.rel (%p225) target = $region40
    $region39: #{decoder_link_forward.1} parent=5 // pred_region
      // Predicated region
      $region41: #{decoder_link_forward.1} parent=39 // pred_check
        %p228 = pneg %p33
      $region42: #{decoder_link_forward.1} parent=39 // pred_check_branch
        %230 = sbr.rel (%p228) target = $region44
      $region43: #{decoder_link_forward.1} parent=39 // pred_region
        %p231 = scmp.lt.s32.totalorder %s13, 1
        %s232 = scalar_select %p231, %s13, 1
        %s233 = smul.addr %s232, 64
        %s234 = smul.addr %s233, 4
        %s235 = scalar_lea.vmem %s0, %s234
      $region44: #{decoder_link_forward.1} parent=39 // pred_fallthru
        _
    $region40: #{decoder_link_forward.1} parent=5 // pred_fallthru
      _
    %p236 = scmp.le.s32.totalorder 1, %s13
    %p237 = scmp.lt.s32.totalorder %s13, 3
    %p238 = pnand %p236, %p237
    %p239 = pneg %p238
    // Predicated region
    $region45: #{decoder_link_forward.1} parent=5 // pred_check
      _
    $region46: #{decoder_link_forward.1} parent=5 // pred_check_branch
      %241 = sbr.rel (%p238) target = $region48
    $region47: #{decoder_link_forward.1} parent=5 // pred_region
      %s242 = ssub.s32 %s13, 1
      %p243 = scmp.lt.s32.totalorder %s18, 1
      %s244 = scalar_select %p243, %s18, 1
      %s245 = smul.addr %s244, 64
      %s246 = smul.addr %s245, 4
      %s247 = scalar_lea.vmem %s0, %s246
      %p248 = pneg %p39
      %p249 = pneg %p36
      %p250 = pneg %p60
      %p251 = pneg %p57
      %p252 = pneg %p81
      %p253 = pneg %p78
      %p254 = pneg %p102
      %p255 = pneg %p99
      %p256 = pneg %p123
      %p257 = pneg %p120
      %p258 = pneg %p144
      %p259 = pneg %p141
      %p260 = pneg %p165
      %p261 = pneg %p162
      %p262 = pneg %p191
      %p263 = pneg %p188
      %p264 = scmp.lt.s32.totalorder %s18, 1
      %s265 = scalar_select %p264, %s18, 1
      %s266 = smul.addr %s265, 128
      %s267 = smul.addr %s266, 8
      %s268 = scalar_lea.vmem %s7, %s267
      %p269 = scmp.lt.s32.totalorder %s18, 1
      %s270 = scalar_select %p269, %s18, 1
      %s271 = smul.addr %s270, 64
      %s272 = smul.addr %s271, 4
      %s273 = scalar_lea.vmem %s0, %s272
      %p274 = scmp.lt.s32.totalorder %s18, 1
      %s275 = scalar_select %p274, %s18, 1
      %s276 = smul.addr %s275, 128
      %s277 = smul.addr %s276, 8
      %s278 = scalar_lea.vmem %s7, %s277
      %v280 = vld [vmem:[%s273] sm:$0xff]
      %v281 = vld [vmem:[%s273 + $0x8] sm:$0xff]
      %v282 = vld [vmem:[%s273 + $0x10] sm:$0xff]
      %v283 = vld [vmem:[%s273 + $0x18] sm:$0xff]
      %v284 = vld [vmem:[%s273 + $0x20] sm:$0xff]
      %v285 = vld [vmem:[%s273 + $0x28] sm:$0xff]
      %v286 = vld [vmem:[%s273 + $0x30] sm:$0xff]
      %v287 = vld [vmem:[%s273 + $0x38] sm:$0xff]
      %v288 = vld [vmem:[%s273 + $0x40] sm:$0xff]
      %v289 = vld [vmem:[%s273 + $0x48] sm:$0xff]
      %v290 = vld [vmem:[%s273 + $0x50] sm:$0xff]
      %v291 = vld [vmem:[%s273 + $0x58] sm:$0xff]
      %v292 = vld [vmem:[%s273 + $0x60] sm:$0xff]
      %v293 = vld [vmem:[%s273 + $0x68] sm:$0xff]
      %v294 = vld [vmem:[%s273 + $0x70] sm:$0xff]
      %v295 = vld [vmem:[%s273 + $0x78] sm:$0xff]
      %v296 = vld [vmem:[%s273 + $0x80] sm:$0xff]
      %v297 = vld [vmem:[%s273 + $0x88] sm:$0xff]
      %v298 = vld [vmem:[%s273 + $0x90] sm:$0xff]
      %v299 = vld [vmem:[%s273 + $0x98] sm:$0xff]
      %v300 = vld [vmem:[%s273 + $0xa0] sm:$0xff]
      %v301 = vld [vmem:[%s273 + $0xa8] sm:$0xff]
      %v302 = vld [vmem:[%s273 + $0xb0] sm:$0xff]
      %v303 = vld [vmem:[%s273 + $0xb8] sm:$0xff]
      %v304 = vld [vmem:[%s273 + $0xc0] sm:$0xff]
      %v305 = vld [vmem:[%s273 + $0xc8] sm:$0xff]
      %v306 = vld [vmem:[%s273 + $0xd0] sm:$0xff]
      %v307 = vld [vmem:[%s273 + $0xd8] sm:$0xff]
      %v308 = vld [vmem:[%s273 + $0xe0] sm:$0xff]
      %v309 = vld [vmem:[%s273 + $0xe8] sm:$0xff]
      %v310 = vld [vmem:[%s273 + $0xf0] sm:$0xff]
      %v311 = vld [vmem:[%s273 + $0xf8] sm:$0xff]
      %v312 = vld [vmem:[%s1] sm:$0xf]
      %v313 = vld [vmem:[%s1 + $0x4] sm:$0xf]
      %v314 = vld [vmem:[%s1 + $0x8] sm:$0xf]
      %v315 = vld [vmem:[%s1 + $0xc] sm:$0xf]
      %v316 = vld [vmem:[%s1 + $0x10] sm:$0xf]
      %v317 = vld [vmem:[%s1 + $0x14] sm:$0xf]
      %v318 = vld [vmem:[%s1 + $0x18] sm:$0xf]
      %v319 = vld [vmem:[%s1 + $0x1c] sm:$0xf]
      %v320 = vld [vmem:[%s1 + $0x20] sm:$0xf]
      %v321 = vld [vmem:[%s1 + $0x24] sm:$0xf]
      %v322 = vld [vmem:[%s1 + $0x28] sm:$0xf]
      %v323 = vld [vmem:[%s1 + $0x2c] sm:$0xf]
      %v324 = vld [vmem:[%s1 + $0x30] sm:$0xf]
      %v325 = vld [vmem:[%s1 + $0x34] sm:$0xf]
      %v326 = vld [vmem:[%s1 + $0x38] sm:$0xf]
      %v327 = vld [vmem:[%s1 + $0x3c] sm:$0xf]
      %v328 = vld [vmem:[%s1 + $0x40] sm:$0xf]
      %v329 = vld [vmem:[%s1 + $0x44] sm:$0xf]
      %v330 = vld [vmem:[%s1 + $0x48] sm:$0xf]
      %v331 = vld [vmem:[%s1 + $0x4c] sm:$0xf]
      %v332 = vld [vmem:[%s1 + $0x50] sm:$0xf]
      %v333 = vld [vmem:[%s1 + $0x54] sm:$0xf]
      %v334 = vld [vmem:[%s1 + $0x58] sm:$0xf]
      %v335 = vld [vmem:[%s1 + $0x5c] sm:$0xf]
      %v336 = vld [vmem:[%s1 + $0x60] sm:$0xf]
      %v337 = vld [vmem:[%s1 + $0x64] sm:$0xf]
      %v338 = vld [vmem:[%s1 + $0x68] sm:$0xf]
      %v339 = vld [vmem:[%s1 + $0x6c] sm:$0xf]
      %v340 = vld [vmem:[%s1 + $0x70] sm:$0xf]
      %v341 = vld [vmem:[%s1 + $0x74] sm:$0xf]
      %v342 = vld [vmem:[%s1 + $0x78] sm:$0xf]
      %v343 = vld [vmem:[%s1 + $0x7c] sm:$0xf]
      %v344 = vld [vmem:[%s2] sm:$0x1]
      %v346 = vlaneseq
      %v347 = vshrl.u32 %v346, 7
      %v348 = vsub.s32 0, %v347
      %v349 = vrot.slane %v344, %v348
      %v383 = vunpack.c.l.b16 %v280
      %v384 = vunpack.c.h.b16 %v280
      %v385 = vunpack.c.l.b16 %v281
      %v386 = vunpack.c.h.b16 %v281
      %v387 = vunpack.c.l.b16 %v282
      %v388 = vunpack.c.h.b16 %v282
      %v389 = vunpack.c.l.b16 %v283
      %v390 = vunpack.c.h.b16 %v283
      %v391 = vunpack.c.l.b16 %v284
      %v392 = vunpack.c.h.b16 %v284
      %v393 = vunpack.c.l.b16 %v285
      %v394 = vunpack.c.h.b16 %v285
      %v395 = vunpack.c.l.b16 %v286
      %v396 = vunpack.c.h.b16 %v286
      %v397 = vunpack.c.l.b16 %v287
      %v398 = vunpack.c.h.b16 %v287
      %v399 = vunpack.c.l.b16 %v288
      %v400 = vunpack.c.h.b16 %v288
      %v401 = vunpack.c.l.b16 %v289
      %v402 = vunpack.c.h.b16 %v289
      %v403 = vunpack.c.l.b16 %v290
      %v404 = vunpack.c.h.b16 %v290
      %v405 = vunpack.c.l.b16 %v291
      %v406 = vunpack.c.h.b16 %v291
      %v407 = vunpack.c.l.b16 %v292
      %v408 = vunpack.c.h.b16 %v292
      %v409 = vunpack.c.l.b16 %v293
      %v410 = vunpack.c.h.b16 %v293
      %v411 = vunpack.c.l.b16 %v294
      %v412 = vunpack.c.h.b16 %v294
      %v413 = vunpack.c.l.b16 %v295
      %v414 = vunpack.c.h.b16 %v295
      %v415 = vunpack.c.l.b16 %v296
      %v416 = vunpack.c.h.b16 %v296
      %v417 = vunpack.c.l.b16 %v297
      %v418 = vunpack.c.h.b16 %v297
      %v419 = vunpack.c.l.b16 %v298
      %v420 = vunpack.c.h.b16 %v298
      %v421 = vunpack.c.l.b16 %v299
      %v422 = vunpack.c.h.b16 %v299
      %v423 = vunpack.c.l.b16 %v300
      %v424 = vunpack.c.h.b16 %v300
      %v425 = vunpack.c.l.b16 %v301
      %v426 = vunpack.c.h.b16 %v301
      %v427 = vunpack.c.l.b16 %v302
      %v428 = vunpack.c.h.b16 %v302
      %v429 = vunpack.c.l.b16 %v303
      %v430 = vunpack.c.h.b16 %v303
      %v431 = vunpack.c.l.b16 %v304
      %v432 = vunpack.c.h.b16 %v304
      %v433 = vunpack.c.l.b16 %v305
      %v434 = vunpack.c.h.b16 %v305
      %v435 = vunpack.c.l.b16 %v306
      %v436 = vunpack.c.h.b16 %v306
      %v437 = vunpack.c.l.b16 %v307
      %v438 = vunpack.c.h.b16 %v307
      %v439 = vunpack.c.l.b16 %v308
      %v440 = vunpack.c.h.b16 %v308
      %v441 = vunpack.c.l.b16 %v309
      %v442 = vunpack.c.h.b16 %v309
      %v443 = vunpack.c.l.b16 %v310
      %v444 = vunpack.c.h.b16 %v310
      %v445 = vunpack.c.l.b16 %v311
      %v446 = vunpack.c.h.b16 %v311
      %v447 = vpack.c.b16 %v385, %v383
      %v448 = vpack.c.b16 %v386, %v384
      %v449 = vpack.c.b16 %v389, %v387
      %v450 = vpack.c.b16 %v390, %v388
      %v451 = vpack.c.b16 %v393, %v391
      %v452 = vpack.c.b16 %v394, %v392
      %v453 = vpack.c.b16 %v397, %v395
      %v454 = vpack.c.b16 %v398, %v396
      %v455 = vpack.c.b16 %v401, %v399
      %v456 = vpack.c.b16 %v402, %v400
      %v457 = vpack.c.b16 %v405, %v403
      %v458 = vpack.c.b16 %v406, %v404
      %v459 = vpack.c.b16 %v409, %v407
      %v460 = vpack.c.b16 %v410, %v408
      %v461 = vpack.c.b16 %v413, %v411
      %v462 = vpack.c.b16 %v414, %v412
      %v463 = vpack.c.b16 %v417, %v415
      %v464 = vpack.c.b16 %v418, %v416
      %v465 = vpack.c.b16 %v421, %v419
      %v466 = vpack.c.b16 %v422, %v420
      %v467 = vpack.c.b16 %v425, %v423
      %v468 = vpack.c.b16 %v426, %v424
      %v469 = vpack.c.b16 %v429, %v427
      %v470 = vpack.c.b16 %v430, %v428
      %v471 = vpack.c.b16 %v433, %v431
      %v472 = vpack.c.b16 %v434, %v432
      %v473 = vpack.c.b16 %v437, %v435
      %v474 = vpack.c.b16 %v438, %v436
      %v475 = vpack.c.b16 %v441, %v439
      %v476 = vpack.c.b16 %v442, %v440
      %v477 = vpack.c.b16 %v445, %v443
      %v478 = vpack.c.b16 %v446, %v444
      %v543 = vunpack.c.l.b16 %v312
      %v544 = vunpack.c.l.b16 %v313
      %v545 = vunpack.c.l.b16 %v314
      %v546 = vunpack.c.l.b16 %v315
      %v547 = vunpack.c.l.b16 %v316
      %v548 = vunpack.c.l.b16 %v317
      %v549 = vunpack.c.l.b16 %v318
      %v550 = vunpack.c.l.b16 %v319
      %v551 = vunpack.c.l.b16 %v320
      %v552 = vunpack.c.l.b16 %v321
      %v553 = vunpack.c.l.b16 %v322
      %v554 = vunpack.c.l.b16 %v323
      %v555 = vunpack.c.l.b16 %v324
      %v556 = vunpack.c.l.b16 %v325
      %v557 = vunpack.c.l.b16 %v326
      %v558 = vunpack.c.l.b16 %v327
      %v559 = vunpack.c.l.b16 %v328
      %v560 = vunpack.c.l.b16 %v329
      %v561 = vunpack.c.l.b16 %v330
      %v562 = vunpack.c.l.b16 %v331
      %v563 = vunpack.c.l.b16 %v332
      %v564 = vunpack.c.l.b16 %v333
      %v565 = vunpack.c.l.b16 %v334
      %v566 = vunpack.c.l.b16 %v335
      %v567 = vunpack.c.l.b16 %v336
      %v568 = vunpack.c.l.b16 %v337
      %v569 = vunpack.c.l.b16 %v338
      %v570 = vunpack.c.l.b16 %v339
      %v571 = vunpack.c.l.b16 %v340
      %v572 = vunpack.c.l.b16 %v341
      %v573 = vunpack.c.l.b16 %v342
      %v574 = vunpack.c.l.b16 %v343
      %v575 = vpack.c.b16 %v544, %v543
      %v576 = vpack.c.b16 %v546, %v545
      %v577 = vpack.c.b16 %v548, %v547
      %v578 = vpack.c.b16 %v550, %v549
      %v579 = vpack.c.b16 %v552, %v551
      %v580 = vpack.c.b16 %v554, %v553
      %v581 = vpack.c.b16 %v556, %v555
      %v582 = vpack.c.b16 %v558, %v557
      %v583 = vpack.c.b16 %v560, %v559
      %v584 = vpack.c.b16 %v562, %v561
      %v585 = vpack.c.b16 %v564, %v563
      %v586 = vpack.c.b16 %v566, %v565
      %v587 = vpack.c.b16 %v568, %v567
      %v588 = vpack.c.b16 %v570, %v569
      %v589 = vpack.c.b16 %v572, %v571
      %v590 = vpack.c.b16 %v574, %v573
      %607 = vmatprep.subr.bf16.mxu0 0
      %608 = vmatpush1.bf16.msra.mxu0 %v575
      %609 = vmatprep.subr.bf16.mxu0 0
      %610 = vmatpush1.bf16.msra.mxu0 %v576
      %611 = vmatprep.subr.bf16.mxu0 0
      %612 = vmatpush1.bf16.msra.mxu0 %v577
      %613 = vmatprep.subr.bf16.mxu0 0
      %614 = vmatpush1.bf16.msra.mxu0 %v578
      %615 = vmatprep.subr.bf16.mxu0 0
      %616 = vmatpush1.bf16.msra.mxu0 %v579
      %617 = vmatprep.subr.bf16.mxu0 0
      %618 = vmatpush1.bf16.msra.mxu0 %v580
      %619 = vmatprep.subr.bf16.mxu0 0
      %620 = vmatpush1.bf16.msra.mxu0 %v581
      %621 = vmatprep.subr.bf16.mxu0 0
      %622 = vmatpush1.bf16.msra.mxu0 %v582
      %623 = vmatprep.subr.bf16.mxu0 0
      %624 = vmatpush1.bf16.msra.mxu0 %v583
      %625 = vmatprep.subr.bf16.mxu0 0
      %626 = vmatpush1.bf16.msra.mxu0 %v584
      %627 = vmatprep.subr.bf16.mxu0 0
      %628 = vmatpush1.bf16.msra.mxu0 %v585
      %629 = vmatprep.subr.bf16.mxu0 0
      %630 = vmatpush1.bf16.msra.mxu0 %v586
      %631 = vmatprep.subr.bf16.mxu0 0
      %632 = vmatpush1.bf16.msra.mxu0 %v587
      %633 = vmatprep.subr.bf16.mxu0 0
      %634 = vmatpush1.bf16.msra.mxu0 %v588
      %635 = vmatprep.subr.bf16.mxu0 0
      %636 = vmatpush1.bf16.msra.mxu0 %v589
      %637 = vmatprep.subr.bf16.mxu0 0
      %638 = vmatpush1.bf16.msra.mxu0 %v590
      %639 = vmatprep.mubr.bf16.mxu0 %v448
      %640 = vmatmul.mubr.bf16.gmra.mrb[0].mxu0 %v447
      %v641 = vpop.f32.mrb[0].mxu0
      %v642 = vadd.f32 %v349, %v641
      %v643 = vpop.f32.mrb[0].mxu0
      %v644 = vpop.f32.mrb[0].mxu0
      %v645 = vadd.f32 %v349, %v644
      %v646 = vpop.f32.mrb[0].mxu0
      %647 = vmatprep.mubr.bf16.mxu0 %v450
      %648 = vmatmul.mubr.bf16.gmra.mrb[0].mxu0 %v449
      %v649 = vpop.f32.mrb[0].mxu0
      %v650 = vadd.f32 %v349, %v649
      %v651 = vpop.f32.mrb[0].mxu0
      %v652 = vpop.f32.mrb[0].mxu0
      %v653 = vadd.f32 %v349, %v652
      %v654 = vpop.f32.mrb[0].mxu0
      %655 = vmatprep.mubr.bf16.mxu0 %v452
      %656 = vmatmul.mubr.bf16.gmra.mrb[0].mxu0 %v451
      %v657 = vpop.f32.mrb[0].mxu0
      %v658 = vadd.f32 %v349, %v657
      %v659 = vpop.f32.mrb[0].mxu0
      %v660 = vpop.f32.mrb[0].mxu0
      %v661 = vadd.f32 %v349, %v660
      %v662 = vpop.f32.mrb[0].mxu0
      %663 = vmatprep.mubr.bf16.mxu0 %v454
      %664 = vmatmul.mubr.bf16.gmra.mrb[0].mxu0 %v453
      %v665 = vpop.f32.mrb[0].mxu0
      %v666 = vadd.f32 %v349, %v665
      %v667 = vpop.f32.mrb[0].mxu0
      %v668 = vpop.f32.mrb[0].mxu0
      %v669 = vadd.f32 %v349, %v668
      %v670 = vpop.f32.mrb[0].mxu0
      %671 = vmatprep.mubr.bf16.mxu0 %v456
      %672 = vmatmul.mubr.bf16.gmra.mrb[0].mxu0 %v455
      %v673 = vpop.f32.mrb[0].mxu0
      %v674 = vadd.f32 %v349, %v673
      %v675 = vpop.f32.mrb[0].mxu0
      %v676 = vpop.f32.mrb[0].mxu0
      %v677 = vadd.f32 %v349, %v676
      %v678 = vpop.f32.mrb[0].mxu0
      %679 = vmatprep.mubr.bf16.mxu0 %v458
      %680 = vmatmul.mubr.bf16.gmra.mrb[0].mxu0 %v457
      %v681 = vpop.f32.mrb[0].mxu0
      %v682 = vadd.f32 %v349, %v681
      %v683 = vpop.f32.mrb[0].mxu0
      %v684 = vpop.f32.mrb[0].mxu0
      %v685 = vadd.f32 %v349, %v684
      %v686 = vpop.f32.mrb[0].mxu0
      %687 = vmatprep.mubr.bf16.mxu0 %v460
      %688 = vmatmul.mubr.bf16.gmra.mrb[0].mxu0 %v459
      %v689 = vpop.f32.mrb[0].mxu0
      %v690 = vadd.f32 %v349, %v689
      %v691 = vpop.f32.mrb[0].mxu0
      %v692 = vpop.f32.mrb[0].mxu0
      %v693 = vadd.f32 %v349, %v692
      %v694 = vpop.f32.mrb[0].mxu0
      %695 = vmatprep.mubr.bf16.mxu0 %v462
      %696 = vmatmul.mubr.bf16.gmra.mrb[0].mxu0 %v461
      %v697 = vpop.f32.mrb[0].mxu0
      %v698 = vadd.f32 %v349, %v697
      %v699 = vpop.f32.mrb[0].mxu0
      %v700 = vpop.f32.mrb[0].mxu0
      %v701 = vadd.f32 %v349, %v700
      %v702 = vpop.f32.mrb[0].mxu0
      %703 = vmatprep.mubr.bf16.mxu0 %v464
      %704 = vmatmul.mubr.bf16.gmra.mrb[0].mxu0 %v463
      %v705 = vpop.f32.mrb[0].mxu0
      %v706 = vadd.f32 %v349, %v705
      %v707 = vpop.f32.mrb[0].mxu0
      %v708 = vpop.f32.mrb[0].mxu0
      %v709 = vadd.f32 %v349, %v708
      %v710 = vpop.f32.mrb[0].mxu0
      %711 = vmatprep.mubr.bf16.mxu0 %v466
      %712 = vmatmul.mubr.bf16.gmra.mrb[0].mxu0 %v465
      %v713 = vpop.f32.mrb[0].mxu0
      %v714 = vadd.f32 %v349, %v713
      %v715 = vpop.f32.mrb[0].mxu0
      %v716 = vpop.f32.mrb[0].mxu0
      %v717 = vadd.f32 %v349, %v716
      %v718 = vpop.f32.mrb[0].mxu0
      %719 = vmatprep.mubr.bf16.mxu0 %v468
      %720 = vmatmul.mubr.bf16.gmra.mrb[0].mxu0 %v467
      %v721 = vpop.f32.mrb[0].mxu0
      %v722 = vadd.f32 %v349, %v721
      %v723 = vpop.f32.mrb[0].mxu0
      %v724 = vpop.f32.mrb[0].mxu0
      %v725 = vadd.f32 %v349, %v724
      %v726 = vpop.f32.mrb[0].mxu0
      %727 = vmatprep.mubr.bf16.mxu0 %v470
      %728 = vmatmul.mubr.bf16.gmra.mrb[0].mxu0 %v469
      %v729 = vpop.f32.mrb[0].mxu0
      %v730 = vadd.f32 %v349, %v729
      %v731 = vpop.f32.mrb[0].mxu0
      %v732 = vpop.f32.mrb[0].mxu0
      %v733 = vadd.f32 %v349, %v732
      %v734 = vpop.f32.mrb[0].mxu0
      %735 = vmatprep.mubr.bf16.mxu0 %v472
      %736 = vmatmul.mubr.bf16.gmra.mrb[0].mxu0 %v471
      %v737 = vpop.f32.mrb[0].mxu0
      %v738 = vadd.f32 %v349, %v737
      %v739 = vpop.f32.mrb[0].mxu0
      %v740 = vpop.f32.mrb[0].mxu0
      %v741 = vadd.f32 %v349, %v740
      %v742 = vpop.f32.mrb[0].mxu0
      %743 = vmatprep.mubr.bf16.mxu0 %v474
      %744 = vmatmul.mubr.bf16.gmra.mrb[0].mxu0 %v473
      %v745 = vpop.f32.mrb[0].mxu0
      %v746 = vadd.f32 %v349, %v745
      %v747 = vpop.f32.mrb[0].mxu0
      %v748 = vpop.f32.mrb[0].mxu0
      %v749 = vadd.f32 %v349, %v748
      %v750 = vpop.f32.mrb[0].mxu0
      %751 = vmatprep.mubr.bf16.mxu0 %v476
      %752 = vmatmul.mubr.bf16.gmra.mrb[0].mxu0 %v475
      %v753 = vpop.f32.mrb[0].mxu0
      %v754 = vadd.f32 %v349, %v753
      %v755 = vpop.f32.mrb[0].mxu0
      %v756 = vpop.f32.mrb[0].mxu0
      %v757 = vadd.f32 %v349, %v756
      %v758 = vpop.f32.mrb[0].mxu0
      %759 = vmatprep.mubr.bf16.mxu0 %v478
      %760 = vmatmul.mubr.bf16.gmra.mrb[0].mxu0 %v477
      %v761 = vpop.f32.mrb[0].mxu0
      %v762 = vadd.f32 %v349, %v761
      %v763 = vpop.f32.mrb[0].mxu0
      %v764 = vpop.f32.mrb[0].mxu0
      %v765 = vadd.f32 %v349, %v764
      %v766 = vpop.f32.mrb[0].mxu0
      %767 = vdwg.mxu0
      %v768 = vmax.f32 %v642, 0.0
      %v769 = vmax.f32 %v645, 0.0
      %v770 = vmax.f32 %v650, 0.0
      %v771 = vmax.f32 %v653, 0.0
      %v772 = vmax.f32 %v658, 0.0
      %v773 = vmax.f32 %v661, 0.0
      %v774 = vmax.f32 %v666, 0.0
      %v775 = vmax.f32 %v669, 0.0
      %v776 = vmax.f32 %v674, 0.0
      %v777 = vmax.f32 %v677, 0.0
      %v778 = vmax.f32 %v682, 0.0
      %v779 = vmax.f32 %v685, 0.0
      %v780 = vmax.f32 %v690, 0.0
      %v781 = vmax.f32 %v693, 0.0
      %v782 = vmax.f32 %v698, 0.0
      %v783 = vmax.f32 %v701, 0.0
      %v784 = vmax.f32 %v706, 0.0
      %v785 = vmax.f32 %v709, 0.0
      %v786 = vmax.f32 %v714, 0.0
      %v787 = vmax.f32 %v717, 0.0
      %v788 = vmax.f32 %v722, 0.0
      %v789 = vmax.f32 %v725, 0.0
      %v790 = vmax.f32 %v730, 0.0
      %v791 = vmax.f32 %v733, 0.0
      %v792 = vmax.f32 %v738, 0.0
      %v793 = vmax.f32 %v741, 0.0
      %v794 = vmax.f32 %v746, 0.0
      %v795 = vmax.f32 %v749, 0.0
      %v796 = vmax.f32 %v754, 0.0
      %v797 = vmax.f32 %v757, 0.0
      %v798 = vmax.f32 %v762, 0.0
      %v799 = vmax.f32 %v765, 0.0
      %v800 = vpack.c.bf16 %v769, %v768
      %v801 = vpack.c.bf16 %v771, %v770
      %v802 = vpack.c.bf16 %v773, %v772
      %v803 = vpack.c.bf16 %v775, %v774
      %v804 = vpack.c.bf16 %v777, %v776
      %v805 = vpack.c.bf16 %v779, %v778
      %v806 = vpack.c.bf16 %v781, %v780
      %v807 = vpack.c.bf16 %v783, %v782
      %v808 = vpack.c.bf16 %v785, %v784
      %v809 = vpack.c.bf16 %v787, %v786
      %v810 = vpack.c.bf16 %v789, %v788
      %v811 = vpack.c.bf16 %v791, %v790
      %v812 = vpack.c.bf16 %v793, %v792
      %v813 = vpack.c.bf16 %v795, %v794
      %v814 = vpack.c.bf16 %v797, %v796
      %v815 = vpack.c.bf16 %v799, %v798
      %s816 = scalar_lea.vmem [#allocation2], 192
      %vm817 = vcmask 519168
      %818 = vst.msk [vmem:[%s816] sm:$0xf] %vm817, 0
      %819 = vst.msk [vmem:[%s816 + $0x4] sm:$0xf] %vm817, 0
      %vm820 = vcmask 516096
      %vm821 = vsmask.f32 256
      %vm822 = vmand %vm820, %vm821
      %v823 = vld [vmem:[%s816 + $0x8] sm:$0x1]
      %v824 = vsel %vm822, 0, %v823
      %825 = vst [vmem:[%s816 + $0x8] sm:$0x1] %v824
      %v826 = vld [vmem:[#allocation2 + $0x8] sm:$0x1]
      %v827 = vsel %vm822, 0, %v826
      %828 = vst [vmem:[#allocation2 + $0x8] sm:$0x1] %v827
      %v829 = vld [vmem:[#allocation2 + $0x14] sm:$0x1]
      %v830 = vsel %vm822, 0, %v829
      %831 = vst [vmem:[#allocation2 + $0x14] sm:$0x1] %v830
      %v832 = vld [vmem:[#allocation2 + $0x20] sm:$0x1]
      %v833 = vsel %vm822, 0, %v832
      %834 = vst [vmem:[#allocation2 + $0x20] sm:$0x1] %v833
      %v835 = vld [vmem:[#allocation2 + $0x2c] sm:$0x1]
      %v836 = vsel %vm822, 0, %v835
      %837 = vst [vmem:[#allocation2 + $0x2c] sm:$0x1] %v836
      %v838 = vld [vmem:[#allocation2 + $0x38] sm:$0x1]
      %v839 = vsel %vm822, 0, %v838
      %840 = vst [vmem:[#allocation2 + $0x38] sm:$0x1] %v839
      %v841 = vld [vmem:[#allocation2 + $0x44] sm:$0x1]
      %v842 = vsel %vm822, 0, %v841
      %843 = vst [vmem:[#allocation2 + $0x44] sm:$0x1] %v842
      %v844 = vld [vmem:[#allocation2 + $0x50] sm:$0x1]
      %v845 = vsel %vm822, 0, %v844
      %846 = vst [vmem:[#allocation2 + $0x50] sm:$0x1] %v845
      %v847 = vld [vmem:[#allocation2 + $0x5c] sm:$0x1]
      %v848 = vsel %vm822, 0, %v847
      %849 = vst [vmem:[#allocation2 + $0x5c] sm:$0x1] %v848
      %v850 = vld [vmem:[#allocation2 + $0x68] sm:$0x1]
      %v851 = vsel %vm822, 0, %v850
      %852 = vst [vmem:[#allocation2 + $0x68] sm:$0x1] %v851
      %v853 = vld [vmem:[#allocation2 + $0x74] sm:$0x1]
      %v854 = vsel %vm822, 0, %v853
      %855 = vst [vmem:[#allocation2 + $0x74] sm:$0x1] %v854
      %v856 = vld [vmem:[#allocation2 + $0x80] sm:$0x1]
      %v857 = vsel %vm822, 0, %v856
      %858 = vst [vmem:[#allocation2 + $0x80] sm:$0x1] %v857
      %v859 = vld [vmem:[#allocation2 + $0x8c] sm:$0x1]
      %v860 = vsel %vm822, 0, %v859
      %861 = vst [vmem:[#allocation2 + $0x8c] sm:$0x1] %v860
      %v862 = vld [vmem:[#allocation2 + $0x98] sm:$0x1]
      %v863 = vsel %vm822, 0, %v862
      %864 = vst [vmem:[#allocation2 + $0x98] sm:$0x1] %v863
      %v865 = vld [vmem:[#allocation2 + $0xa4] sm:$0x1]
      %v866 = vsel %vm822, 0, %v865
      %867 = vst [vmem:[#allocation2 + $0xa4] sm:$0x1] %v866
      %v868 = vld [vmem:[#allocation2 + $0xb0] sm:$0x1]
      %v869 = vsel %vm822, 0, %v868
      %870 = vst [vmem:[#allocation2 + $0xb0] sm:$0x1] %v869
      %v871 = vld [vmem:[#allocation2 + $0xbc] sm:$0x1]
      %v872 = vsel %vm822, 0, %v871
      %873 = vst [vmem:[#allocation2 + $0xbc] sm:$0x1] %v872
      %v874 = vld [vmem:[#allocation2 + $0xc8] sm:$0x1]
      %v875 = vsel %vm822, 0, %v874
      %876 = vst [vmem:[#allocation2 + $0xc8] sm:$0x1] %v875
      %v893 = vunpack.c.l.b16 %v800
      %v894 = vunpack.c.h.b16 %v800
      %v895 = vunpack.c.l.b16 %v801
      %v896 = vunpack.c.h.b16 %v801
      %v897 = vunpack.c.l.b16 %v802
      %v898 = vunpack.c.h.b16 %v802
      %v899 = vunpack.c.l.b16 %v803
      %v900 = vunpack.c.h.b16 %v803
      %v901 = vunpack.c.l.b16 %v804
      %v902 = vunpack.c.h.b16 %v804
      %v903 = vunpack.c.l.b16 %v805
      %v904 = vunpack.c.h.b16 %v805
      %v905 = vunpack.c.l.b16 %v806
      %v906 = vunpack.c.h.b16 %v806
      %v907 = vunpack.c.l.b16 %v807
      %v908 = vunpack.c.h.b16 %v807
      %v909 = vunpack.c.l.b16 %v808
      %v910 = vunpack.c.h.b16 %v808
      %v911 = vunpack.c.l.b16 %v809
      %v912 = vunpack.c.h.b16 %v809
      %v913 = vunpack.c.l.b16 %v810
      %v914 = vunpack.c.h.b16 %v810
      %v915 = vunpack.c.l.b16 %v811
      %v916 = vunpack.c.h.b16 %v811
      %v917 = vunpack.c.l.b16 %v812
      %v918 = vunpack.c.h.b16 %v812
      %v919 = vunpack.c.l.b16 %v813
      %v920 = vunpack.c.h.b16 %v813
      %v921 = vunpack.c.l.b16 %v814
      %v922 = vunpack.c.h.b16 %v814
      %v923 = vunpack.c.l.b16 %v815
      %v924 = vunpack.c.h.b16 %v815
      %v925 = vpack.c.b16 %v893, %v893
      %v926 = vpack.c.b16 %v894, %v894
      %v927 = vpack.c.b16 %v895, %v895
      %v928 = vpack.c.b16 %v896, %v896
      %v929 = vpack.c.b16 %v897, %v897
      %v930 = vpack.c.b16 %v898, %v898
      %v931 = vpack.c.b16 %v899, %v899
      %v932 = vpack.c.b16 %v900, %v900
      %v933 = vpack.c.b16 %v901, %v901
      %v934 = vpack.c.b16 %v902, %v902
      %v935 = vpack.c.b16 %v903, %v903
      %v936 = vpack.c.b16 %v904, %v904
      %v937 = vpack.c.b16 %v905, %v905
      %v938 = vpack.c.b16 %v906, %v906
      %v939 = vpack.c.b16 %v907, %v907
      %v940 = vpack.c.b16 %v908, %v908
      %v941 = vpack.c.b16 %v909, %v909
      %v942 = vpack.c.b16 %v910, %v910
      %v943 = vpack.c.b16 %v911, %v911
      %v944 = vpack.c.b16 %v912, %v912
      %v945 = vpack.c.b16 %v913, %v913
      %v946 = vpack.c.b16 %v914, %v914
      %v947 = vpack.c.b16 %v915, %v915
      %v948 = vpack.c.b16 %v916, %v916
      %v949 = vpack.c.b16 %v917, %v917
      %v950 = vpack.c.b16 %v918, %v918
      %v951 = vpack.c.b16 %v919, %v919
      %v952 = vpack.c.b16 %v920, %v920
      %v953 = vpack.c.b16 %v921, %v921
      %v954 = vpack.c.b16 %v922, %v922
      %v955 = vpack.c.b16 %v923, %v923
      %v956 = vpack.c.b16 %v924, %v924
      %989 = vst.msk [vmem:[#allocation2] sm:$0xf] %vm817, %v925
      %990 = vst.msk [vmem:[#allocation2 + $0x4] sm:$0xf] %vm817, %v926
      %991 = vst.msk [vmem:[#allocation2 + $0xc] sm:$0xf] %vm817, %v927
      %992 = vst.msk [vmem:[#allocation2 + $0x10] sm:$0xf] %vm817, %v928
      %993 = vst.msk [vmem:[#allocation2 + $0x18] sm:$0xf] %vm817, %v929
      %994 = vst.msk [vmem:[#allocation2 + $0x1c] sm:$0xf] %vm817, %v930
      %995 = vst.msk [vmem:[#allocation2 + $0x24] sm:$0xf] %vm817, %v931
      %996 = vst.msk [vmem:[#allocation2 + $0x28] sm:$0xf] %vm817, %v932
      %997 = vst.msk [vmem:[#allocation2 + $0x30] sm:$0xf] %vm817, %v933
      %998 = vst.msk [vmem:[#allocation2 + $0x34] sm:$0xf] %vm817, %v934
      %999 = vst.msk [vmem:[#allocation2 + $0x3c] sm:$0xf] %vm817, %v935
      %1000 = vst.msk [vmem:[#allocation2 + $0x40] sm:$0xf] %vm817, %v936
      %1001 = vst.msk [vmem:[#allocation2 + $0x48] sm:$0xf] %vm817, %v937
      %1002 = vst.msk [vmem:[#allocation2 + $0x4c] sm:$0xf] %vm817, %v938
      %1003 = vst.msk [vmem:[#allocation2 + $0x54] sm:$0xf] %vm817, %v939
      %1004 = vst.msk [vmem:[#allocation2 + $0x58] sm:$0xf] %vm817, %v940
      %1005 = vst.msk [vmem:[#allocation2 + $0x60] sm:$0xf] %vm817, %v941
      %1006 = vst.msk [vmem:[#allocation2 + $0x64] sm:$0xf] %vm817, %v942
      %1007 = vst.msk [vmem:[#allocation2 + $0x6c] sm:$0xf] %vm817, %v943
      %1008 = vst.msk [vmem:[#allocation2 + $0x70] sm:$0xf] %vm817, %v944
      %1009 = vst.msk [vmem:[#allocation2 + $0x78] sm:$0xf] %vm817, %v945
      %1010 = vst.msk [vmem:[#allocation2 + $0x7c] sm:$0xf] %vm817, %v946
      %1011 = vst.msk [vmem:[#allocation2 + $0x84] sm:$0xf] %vm817, %v947
      %1012 = vst.msk [vmem:[#allocation2 + $0x88] sm:$0xf] %vm817, %v948
      %1013 = vst.msk [vmem:[#allocation2 + $0x90] sm:$0xf] %vm817, %v949
      %1014 = vst.msk [vmem:[#allocation2 + $0x94] sm:$0xf] %vm817, %v950
      %1015 = vst.msk [vmem:[#allocation2 + $0x9c] sm:$0xf] %vm817, %v951
      %1016 = vst.msk [vmem:[#allocation2 + $0xa0] sm:$0xf] %vm817, %v952
      %1017 = vst.msk [vmem:[#allocation2 + $0xa8] sm:$0xf] %vm817, %v953
      %1018 = vst.msk [vmem:[#allocation2 + $0xac] sm:$0xf] %vm817, %v954
      %1019 = vst.msk [vmem:[#allocation2 + $0xb4] sm:$0xf] %vm817, %v955
      %1020 = vst.msk [vmem:[#allocation2 + $0xb8] sm:$0xf] %vm817, %v956
      %v1021 = vld [vmem:[%s4] sm:$0x1]
      %v1022 = vld [vmem:[%s6] sm:$0x1]
      %v1023 = vld [vmem:[%s5] sm:$0xf]
      %v1024 = vld [vmem:[%s5 + $0x4] sm:$0xf]
      %v1025 = vld [vmem:[%s5 + $0x8] sm:$0xf]
      %v1026 = vld [vmem:[%s5 + $0xc] sm:$0xf]
      %v1027 = vld [vmem:[%s5 + $0x10] sm:$0xf]
      %v1028 = vld [vmem:[%s5 + $0x14] sm:$0xf]
      %v1029 = vld [vmem:[%s5 + $0x18] sm:$0xf]
      %v1030 = vld [vmem:[%s5 + $0x1c] sm:$0xf]
      %v1031 = vld [vmem:[#allocation2] sm:$0xf]
      %v1032 = vld [vmem:[#allocation2 + $0x4] sm:$0xf]
      %v1033 = vld [vmem:[#allocation2 + $0xc] sm:$0xf]
      %v1034 = vld [vmem:[#allocation2 + $0x10] sm:$0xf]
      %v1035 = vld [vmem:[#allocation2 + $0x18] sm:$0xf]
      %v1036 = vld [vmem:[#allocation2 + $0x1c] sm:$0xf]
      %v1037 = vld [vmem:[#allocation2 + $0x24] sm:$0xf]
      %v1038 = vld [vmem:[#allocation2 + $0x28] sm:$0xf]
      %v1039 = vld [vmem:[#allocation2 + $0x30] sm:$0xf]
      %v1040 = vld [vmem:[#allocation2 + $0x34] sm:$0xf]
      %v1041 = vld [vmem:[#allocation2 + $0x3c] sm:$0xf]
      %v1042 = vld [vmem:[#allocation2 + $0x40] sm:$0xf]
      %v1043 = vld [vmem:[#allocation2 + $0x48] sm:$0xf]
      %v1044 = vld [vmem:[#allocation2 + $0x4c] sm:$0xf]
      %v1045 = vld [vmem:[#allocation2 + $0x54] sm:$0xf]
      %v1046 = vld [vmem:[#allocation2 + $0x58] sm:$0xf]
      %v1047 = vld [vmem:[#allocation2 + $0x60] sm:$0xf]
      %v1048 = vld [vmem:[#allocation2 + $0x64] sm:$0xf]
      %v1049 = vld [vmem:[#allocation2 + $0x6c] sm:$0xf]
      %v1050 = vld [vmem:[#allocation2 + $0x70] sm:$0xf]
      %v1051 = vld [vmem:[#allocation2 + $0x78] sm:$0xf]
      %v1052 = vld [vmem:[#allocation2 + $0x7c] sm:$0xf]
      %v1053 = vld [vmem:[#allocation2 + $0x84] sm:$0xf]
      %v1054 = vld [vmem:[#allocation2 + $0x88] sm:$0xf]
      %v1055 = vld [vmem:[#allocation2 + $0x90] sm:$0xf]
      %v1056 = vld [vmem:[#allocation2 + $0x94] sm:$0xf]
      %v1057 = vld [vmem:[#allocation2 + $0x9c] sm:$0xf]
      %v1058 = vld [vmem:[#allocation2 + $0xa0] sm:$0xf]
      %v1059 = vld [vmem:[#allocation2 + $0xa8] sm:$0xf]
      %v1060 = vld [vmem:[#allocation2 + $0xac] sm:$0xf]
      %v1061 = vld [vmem:[#allocation2 + $0xb4] sm:$0xf]
      %v1062 = vld [vmem:[#allocation2 + $0xb8] sm:$0xf]
      %v1063 = vld [vmem:[%s3] sm:$0xf]
      %v1064 = vld [vmem:[%s3 + $0x4] sm:$0xf]
      %v1065 = vld [vmem:[%s3 + $0x8] sm:$0xf]
      %v1066 = vld [vmem:[%s3 + $0xc] sm:$0xf]
      %v1067 = vld [vmem:[%s3 + $0x10] sm:$0xf]
      %v1068 = vld [vmem:[%s3 + $0x14] sm:$0xf]
      %v1069 = vld [vmem:[%s3 + $0x18] sm:$0xf]
      %v1070 = vld [vmem:[%s3 + $0x1c] sm:$0xf]
      %v1072 = vlaneseq
      %v1073 = vshrl.u32 %v1072, 7
      %v1074 = vsub.s32 0, %v1073
      %v1075 = vrot.slane %v1021, %v1074
      %v1109 = vunpack.c.l.b16 %v1031
      %v1110 = vunpack.c.l.b16 %v1032
      %v1111 = vunpack.c.l.b16 %v1033
      %v1112 = vunpack.c.l.b16 %v1034
      %v1113 = vunpack.c.l.b16 %v1035
      %v1114 = vunpack.c.l.b16 %v1036
      %v1115 = vunpack.c.l.b16 %v1037
      %v1116 = vunpack.c.l.b16 %v1038
      %v1117 = vunpack.c.l.b16 %v1039
      %v1118 = vunpack.c.l.b16 %v1040
      %v1119 = vunpack.c.l.b16 %v1041
      %v1120 = vunpack.c.l.b16 %v1042
      %v1121 = vunpack.c.l.b16 %v1043
      %v1122 = vunpack.c.l.b16 %v1044
      %v1123 = vunpack.c.l.b16 %v1045
      %v1124 = vunpack.c.l.b16 %v1046
      %v1125 = vunpack.c.l.b16 %v1047
      %v1126 = vunpack.c.l.b16 %v1048
      %v1127 = vunpack.c.l.b16 %v1049
      %v1128 = vunpack.c.l.b16 %v1050
      %v1129 = vunpack.c.l.b16 %v1051
      %v1130 = vunpack.c.l.b16 %v1052
      %v1131 = vunpack.c.l.b16 %v1053
      %v1132 = vunpack.c.l.b16 %v1054
      %v1133 = vunpack.c.l.b16 %v1055
      %v1134 = vunpack.c.l.b16 %v1056
      %v1135 = vunpack.c.l.b16 %v1057
      %v1136 = vunpack.c.l.b16 %v1058
      %v1137 = vunpack.c.l.b16 %v1059
      %v1138 = vunpack.c.l.b16 %v1060
      %v1139 = vunpack.c.l.b16 %v1061
      %v1140 = vunpack.c.l.b16 %v1062
      %v1141 = vpack.c.b16 %v1110, %v1109
      %v1142 = vpack.c.b16 %v1112, %v1111
      %v1143 = vpack.c.b16 %v1114, %v1113
      %v1144 = vpack.c.b16 %v1116, %v1115
      %v1145 = vpack.c.b16 %v1118, %v1117
      %v1146 = vpack.c.b16 %v1120, %v1119
      %v1147 = vpack.c.b16 %v1122, %v1121
      %v1148 = vpack.c.b16 %v1124, %v1123
      %v1149 = vpack.c.b16 %v1126, %v1125
      %v1150 = vpack.c.b16 %v1128, %v1127
      %v1151 = vpack.c.b16 %v1130, %v1129
      %v1152 = vpack.c.b16 %v1132, %v1131
      %v1153 = vpack.c.b16 %v1134, %v1133
      %v1154 = vpack.c.b16 %v1136, %v1135
      %v1155 = vpack.c.b16 %v1138, %v1137
      %v1156 = vpack.c.b16 %v1140, %v1139
      %v1165 = vunpack.c.l.b16 %v1063
      %v1166 = vunpack.c.l.b16 %v1064
      %v1167 = vunpack.c.l.b16 %v1065
      %v1168 = vunpack.c.l.b16 %v1066
      %v1169 = vunpack.c.l.b16 %v1067
      %v1170 = vunpack.c.l.b16 %v1068
      %v1171 = vunpack.c.l.b16 %v1069
      %v1172 = vunpack.c.l.b16 %v1070
      %v1173 = vpack.c.b16 %v1166, %v1165
      %v1174 = vpack.c.b16 %v1168, %v1167
      %v1175 = vpack.c.b16 %v1170, %v1169
      %v1176 = vpack.c.b16 %v1172, %v1171
      %vm1181 = vcmask 523264
      %v1183 = vsel %vm1181, %v1141, 0
      %v1186 = vsel %vm1181, %v1142, 0
      %v1189 = vsel %vm1181, %v1143, 0
      %v1192 = vsel %vm1181, %v1144, 0
      %v1195 = vsel %vm1181, %v1145, 0
      %v1198 = vsel %vm1181, %v1146, 0
      %v1201 = vsel %vm1181, %v1147, 0
      %v1204 = vsel %vm1181, %v1148, 0
      %v1207 = vsel %vm1181, %v1149, 0
      %v1210 = vsel %vm1181, %v1150, 0
      %v1213 = vsel %vm1181, %v1151, 0
      %v1216 = vsel %vm1181, %v1152, 0
      %v1219 = vsel %vm1181, %v1153, 0
      %v1222 = vsel %vm1181, %v1154, 0
      %v1225 = vsel %vm1181, %v1155, 0
      %v1228 = vsel %vm1181, %v1156, 0
      %1230 = vmatprep.subr.bf16.mxu0 0
      %1231 = vmatpush1.bf16.msra.mxu0 %v1173
      %1232 = vmatprep.subr.bf16.mxu0 0
      %1233 = vmatpush1.bf16.msra.mxu0 %v1174
      %1234 = vmatprep.subr.bf16.mxu0 0
      %1235 = vmatpush1.bf16.msra.mxu0 %v1175
      %1236 = vmatprep.subr.bf16.mxu0 0
      %1237 = vmatpush1.bf16.msra.mxu0 %v1176
      %1238 = vmatprep.subr.bf16.mxu0 0
      %1239 = vmatpush1.bf16.msra.mxu0 0
      %1240 = vmatprep.subr.bf16.mxu0 0
      %1241 = vmatpush1.bf16.msra.mxu0 0
      %1242 = vmatprep.subr.bf16.mxu0 0
      %1243 = vmatpush1.bf16.msra.mxu0 0
      %1244 = vmatprep.subr.bf16.mxu0 0
      %1245 = vmatpush1.bf16.msra.mxu0 0
      %1246 = vmatprep.subr.bf16.mxu0 0
      %1247 = vmatpush1.bf16.msra.mxu0 0
      %1248 = vmatprep.subr.bf16.mxu0 0
      %1249 = vmatpush1.bf16.msra.mxu0 0
      %1250 = vmatprep.subr.bf16.mxu0 0
      %1251 = vmatpush1.bf16.msra.mxu0 0
      %1252 = vmatprep.subr.bf16.mxu0 0
      %1253 = vmatpush1.bf16.msra.mxu0 0
      %1254 = vmatprep.subr.bf16.mxu0 0
      %1255 = vmatpush1.bf16.msra.mxu0 0
      %1256 = vmatprep.subr.bf16.mxu0 0
      %1257 = vmatpush1.bf16.msra.mxu0 0
      %1258 = vmatprep.subr.bf16.mxu0 0
      %1259 = vmatpush1.bf16.msra.mxu0 0
      %1260 = vmatprep.subr.bf16.mxu0 0
      %1261 = vmatpush1.bf16.msra.mxu0 0
      %1262 = vmatprep.mubr.bf16.mxu0 0
      %1263 = vmatmul.mubr.bf16.gmra.mrb[0].mxu0 %v1183
      %v1264 = vpop.f32.mrb[0].mxu0
      %v1265 = vadd.f32 %v1075, %v1264
      %v1266 = vpop.f32.mrb[0].mxu0
      %v1267 = vpop.f32.mrb[0].mxu0
      %v1268 = vadd.f32 %v1075, %v1267
      %v1269 = vpop.f32.mrb[0].mxu0
      %1270 = vmatprep.mubr.bf16.mxu0 0
      %1271 = vmatmul.mubr.bf16.gmra.mrb[0].mxu0 %v1186
      %v1272 = vpop.f32.mrb[0].mxu0
      %v1273 = vadd.f32 %v1075, %v1272
      %v1274 = vpop.f32.mrb[0].mxu0
      %v1275 = vpop.f32.mrb[0].mxu0
      %v1276 = vadd.f32 %v1075, %v1275
      %v1277 = vpop.f32.mrb[0].mxu0
      %1278 = vmatprep.mubr.bf16.mxu0 0
      %1279 = vmatmul.mubr.bf16.gmra.mrb[0].mxu0 %v1189
      %v1280 = vpop.f32.mrb[0].mxu0
      %v1281 = vadd.f32 %v1075, %v1280
      %v1282 = vpop.f32.mrb[0].mxu0
      %v1283 = vpop.f32.mrb[0].mxu0
      %v1284 = vadd.f32 %v1075, %v1283
      %v1285 = vpop.f32.mrb[0].mxu0
      %1286 = vmatprep.mubr.bf16.mxu0 0
      %1287 = vmatmul.mubr.bf16.gmra.mrb[0].mxu0 %v1192
      %v1288 = vpop.f32.mrb[0].mxu0
      %v1289 = vadd.f32 %v1075, %v1288
      %v1290 = vpop.f32.mrb[0].mxu0
      %v1291 = vpop.f32.mrb[0].mxu0
      %v1292 = vadd.f32 %v1075, %v1291
      %v1293 = vpop.f32.mrb[0].mxu0
      %1294 = vmatprep.mubr.bf16.mxu0 0
      %1295 = vmatmul.mubr.bf16.gmra.mrb[0].mxu0 %v1195
      %v1296 = vpop.f32.mrb[0].mxu0
      %v1297 = vadd.f32 %v1075, %v1296
      %v1298 = vpop.f32.mrb[0].mxu0
      %v1299 = vpop.f32.mrb[0].mxu0
      %v1300 = vadd.f32 %v1075, %v1299
      %v1301 = vpop.f32.mrb[0].mxu0
      %1302 = vmatprep.mubr.bf16.mxu0 0
      %1303 = vmatmul.mubr.bf16.gmra.mrb[0].mxu0 %v1198
      %v1304 = vpop.f32.mrb[0].mxu0
      %v1305 = vadd.f32 %v1075, %v1304
      %v1306 = vpop.f32.mrb[0].mxu0
      %v1307 = vpop.f32.mrb[0].mxu0
      %v1308 = vadd.f32 %v1075, %v1307
      %v1309 = vpop.f32.mrb[0].mxu0
      %1310 = vmatprep.mubr.bf16.mxu0 0
      %1311 = vmatmul.mubr.bf16.gmra.mrb[0].mxu0 %v1201
      %v1312 = vpop.f32.mrb[0].mxu0
      %v1313 = vadd.f32 %v1075, %v1312
      %v1314 = vpop.f32.mrb[0].mxu0
      %v1315 = vpop.f32.mrb[0].mxu0
      %v1316 = vadd.f32 %v1075, %v1315
      %v1317 = vpop.f32.mrb[0].mxu0
      %1318 = vmatprep.mubr.bf16.mxu0 0
      %1319 = vmatmul.mubr.bf16.gmra.mrb[0].mxu0 %v1204
      %v1320 = vpop.f32.mrb[0].mxu0
      %v1321 = vadd.f32 %v1075, %v1320
      %v1322 = vpop.f32.mrb[0].mxu0
      %v1323 = vpop.f32.mrb[0].mxu0
      %v1324 = vadd.f32 %v1075, %v1323
      %v1325 = vpop.f32.mrb[0].mxu0
      %1326 = vmatprep.mubr.bf16.mxu0 0
      %1327 = vmatmul.mubr.bf16.gmra.mrb[0].mxu0 %v1207
      %v1328 = vpop.f32.mrb[0].mxu0
      %v1329 = vadd.f32 %v1075, %v1328
      %v1330 = vpop.f32.mrb[0].mxu0
      %v1331 = vpop.f32.mrb[0].mxu0
      %v1332 = vadd.f32 %v1075, %v1331
      %v1333 = vpop.f32.mrb[0].mxu0
      %1334 = vmatprep.mubr.bf16.mxu0 0
      %1335 = vmatmul.mubr.bf16.gmra.mrb[0].mxu0 %v1210
      %v1336 = vpop.f32.mrb[0].mxu0
      %v1337 = vadd.f32 %v1075, %v1336
      %v1338 = vpop.f32.mrb[0].mxu0
      %v1339 = vpop.f32.mrb[0].mxu0
      %v1340 = vadd.f32 %v1075, %v1339
      %v1341 = vpop.f32.mrb[0].mxu0
      %1342 = vmatprep.mubr.bf16.mxu0 0
      %1343 = vmatmul.mubr.bf16.gmra.mrb[0].mxu0 %v1213
      %v1344 = vpop.f32.mrb[0].mxu0
      %v1345 = vadd.f32 %v1075, %v1344
      %v1346 = vpop.f32.mrb[0].mxu0
      %v1347 = vpop.f32.mrb[0].mxu0
      %v1348 = vadd.f32 %v1075, %v1347
      %v1349 = vpop.f32.mrb[0].mxu0
      %1350 = vmatprep.mubr.bf16.mxu0 0
      %1351 = vmatmul.mubr.bf16.gmra.mrb[0].mxu0 %v1216
      %v1352 = vpop.f32.mrb[0].mxu0
      %v1353 = vadd.f32 %v1075, %v1352
      %v1354 = vpop.f32.mrb[0].mxu0
      %v1355 = vpop.f32.mrb[0].mxu0
      %v1356 = vadd.f32 %v1075, %v1355
      %v1357 = vpop.f32.mrb[0].mxu0
      %1358 = vmatprep.mubr.bf16.mxu0 0
      %1359 = vmatmul.mubr.bf16.gmra.mrb[0].mxu0 %v1219
      %v1360 = vpop.f32.mrb[0].mxu0
      %v1361 = vadd.f32 %v1075, %v1360
      %v1362 = vpop.f32.mrb[0].mxu0
      %v1363 = vpop.f32.mrb[0].mxu0
      %v1364 = vadd.f32 %v1075, %v1363
      %v1365 = vpop.f32.mrb[0].mxu0
      %1366 = vmatprep.mubr.bf16.mxu0 0
      %1367 = vmatmul.mubr.bf16.gmra.mrb[0].mxu0 %v1222
      %v1368 = vpop.f32.mrb[0].mxu0
      %v1369 = vadd.f32 %v1075, %v1368
      %v1370 = vpop.f32.mrb[0].mxu0
      %v1371 = vpop.f32.mrb[0].mxu0
      %v1372 = vadd.f32 %v1075, %v1371
      %v1373 = vpop.f32.mrb[0].mxu0
      %1374 = vmatprep.mubr.bf16.mxu0 0
      %1375 = vmatmul.mubr.bf16.gmra.mrb[0].mxu0 %v1225
      %v1376 = vpop.f32.mrb[0].mxu0
      %v1377 = vadd.f32 %v1075, %v1376
      %v1378 = vpop.f32.mrb[0].mxu0
      %v1379 = vpop.f32.mrb[0].mxu0
      %v1380 = vadd.f32 %v1075, %v1379
      %v1381 = vpop.f32.mrb[0].mxu0
      %1382 = vmatprep.mubr.bf16.mxu0 0
      %1383 = vmatmul.mubr.bf16.gmra.mrb[0].mxu0 %v1228
      %v1384 = vpop.f32.mrb[0].mxu0
      %v1385 = vadd.f32 %v1075, %v1384
      %v1386 = vpop.f32.mrb[0].mxu0
      %v1387 = vpop.f32.mrb[0].mxu0
      %v1388 = vadd.f32 %v1075, %v1387
      %v1389 = vpop.f32.mrb[0].mxu0
      %1390 = vdwg.mxu0
      %v1391 = vmax.f32 %v1265, 0.0
      %v1392 = vmax.f32 %v1268, 0.0
      %v1393 = vmax.f32 %v1273, 0.0
      %v1394 = vmax.f32 %v1276, 0.0
      %v1395 = vmax.f32 %v1281, 0.0
      %v1396 = vmax.f32 %v1284, 0.0
      %v1397 = vmax.f32 %v1289, 0.0
      %v1398 = vmax.f32 %v1292, 0.0
      %v1399 = vmax.f32 %v1297, 0.0
      %v1400 = vmax.f32 %v1300, 0.0
      %v1401 = vmax.f32 %v1305, 0.0
      %v1402 = vmax.f32 %v1308, 0.0
      %v1403 = vmax.f32 %v1313, 0.0
      %v1404 = vmax.f32 %v1316, 0.0
      %v1405 = vmax.f32 %v1321, 0.0
      %v1406 = vmax.f32 %v1324, 0.0
      %v1407 = vmax.f32 %v1329, 0.0
      %v1408 = vmax.f32 %v1332, 0.0
      %v1409 = vmax.f32 %v1337, 0.0
      %v1410 = vmax.f32 %v1340, 0.0
      %v1411 = vmax.f32 %v1345, 0.0
      %v1412 = vmax.f32 %v1348, 0.0
      %v1413 = vmax.f32 %v1353, 0.0
      %v1414 = vmax.f32 %v1356, 0.0
      %v1415 = vmax.f32 %v1361, 0.0
      %v1416 = vmax.f32 %v1364, 0.0
      %v1417 = vmax.f32 %v1369, 0.0
      %v1418 = vmax.f32 %v1372, 0.0
      %v1419 = vmax.f32 %v1377, 0.0
      %v1420 = vmax.f32 %v1380, 0.0
      %v1421 = vmax.f32 %v1385, 0.0
      %v1422 = vmax.f32 %v1388, 0.0
      %v1423 = vpack.c.bf16 %v1392, %v1391
      %v1424 = vpack.c.bf16 %v1394, %v1393
      %v1425 = vpack.c.bf16 %v1396, %v1395
      %v1426 = vpack.c.bf16 %v1398, %v1397
      %v1427 = vpack.c.bf16 %v1400, %v1399
      %v1428 = vpack.c.bf16 %v1402, %v1401
      %v1429 = vpack.c.bf16 %v1404, %v1403
      %v1430 = vpack.c.bf16 %v1406, %v1405
      %v1431 = vpack.c.bf16 %v1408, %v1407
      %v1432 = vpack.c.bf16 %v1410, %v1409
      %v1433 = vpack.c.bf16 %v1412, %v1411
      %v1434 = vpack.c.bf16 %v1414, %v1413
      %v1435 = vpack.c.bf16 %v1416, %v1415
      %v1436 = vpack.c.bf16 %v1418, %v1417
      %v1437 = vpack.c.bf16 %v1420, %v1419
      %v1438 = vpack.c.bf16 %v1422, %v1421
      %v1440 = vlaneseq
      %v1441 = vshrl.u32 %v1440, 7
      %v1442 = vsub.s32 0, %v1441
      %v1443 = vrot.slane %v1022, %v1442
      %v1453 = vunpack.c.l.b16 %v1023
      %v1454 = vunpack.c.l.b16 %v1024
      %v1455 = vunpack.c.l.b16 %v1025
      %v1456 = vunpack.c.l.b16 %v1026
      %v1457 = vunpack.c.l.b16 %v1027
      %v1458 = vunpack.c.l.b16 %v1028
      %v1459 = vunpack.c.l.b16 %v1029
      %v1460 = vunpack.c.l.b16 %v1030
      %v1461 = vpack.c.b16 %v1454, %v1453
      %v1462 = vpack.c.b16 %v1456, %v1455
      %v1463 = vpack.c.b16 %v1458, %v1457
      %v1464 = vpack.c.b16 %v1460, %v1459
      %v1470 = vsel %vm1181, %v1423, 0
      %v1473 = vsel %vm1181, %v1424, 0
      %v1476 = vsel %vm1181, %v1425, 0
      %v1479 = vsel %vm1181, %v1426, 0
      %v1482 = vsel %vm1181, %v1427, 0
      %v1485 = vsel %vm1181, %v1428, 0
      %v1488 = vsel %vm1181, %v1429, 0
      %v1491 = vsel %vm1181, %v1430, 0
      %v1494 = vsel %vm1181, %v1431, 0
      %v1497 = vsel %vm1181, %v1432, 0
      %v1500 = vsel %vm1181, %v1433, 0
      %v1503 = vsel %vm1181, %v1434, 0
      %v1506 = vsel %vm1181, %v1435, 0
      %v1509 = vsel %vm1181, %v1436, 0
      %v1512 = vsel %vm1181, %v1437, 0
      %v1515 = vsel %vm1181, %v1438, 0
      %1517 = vmatprep.subr.bf16.mxu0 0
      %1518 = vmatpush1.bf16.msra.mxu0 %v1461
      %1519 = vmatprep.subr.bf16.mxu0 0
      %1520 = vmatpush1.bf16.msra.mxu0 %v1462
      %1521 = vmatprep.subr.bf16.mxu0 0
      %1522 = vmatpush1.bf16.msra.mxu0 %v1463
      %1523 = vmatprep.subr.bf16.mxu0 0
      %1524 = vmatpush1.bf16.msra.mxu0 %v1464
      %1525 = vmatprep.subr.bf16.mxu0 0
      %1526 = vmatpush1.bf16.msra.mxu0 0
      %1527 = vmatprep.subr.bf16.mxu0 0
      %1528 = vmatpush1.bf16.msra.mxu0 0
      %1529 = vmatprep.subr.bf16.mxu0 0
      %1530 = vmatpush1.bf16.msra.mxu0 0
      %1531 = vmatprep.subr.bf16.mxu0 0
      %1532 = vmatpush1.bf16.msra.mxu0 0
      %1533 = vmatprep.subr.bf16.mxu0 0
      %1534 = vmatpush1.bf16.msra.mxu0 0
      %1535 = vmatprep.subr.bf16.mxu0 0
      %1536 = vmatpush1.bf16.msra.mxu0 0
      %1537 = vmatprep.subr.bf16.mxu0 0
      %1538 = vmatpush1.bf16.msra.mxu0 0
      %1539 = vmatprep.subr.bf16.mxu0 0
      %1540 = vmatpush1.bf16.msra.mxu0 0
      %1541 = vmatprep.subr.bf16.mxu0 0
      %1542 = vmatpush1.bf16.msra.mxu0 0
      %1543 = vmatprep.subr.bf16.mxu0 0
      %1544 = vmatpush1.bf16.msra.mxu0 0
      %1545 = vmatprep.subr.bf16.mxu0 0
      %1546 = vmatpush1.bf16.msra.mxu0 0
      %1547 = vmatprep.subr.bf16.mxu0 0
      %1548 = vmatpush1.bf16.msra.mxu0 0
      %1549 = vmatprep.mubr.bf16.mxu0 0
      %1550 = vmatmul.mubr.bf16.gmra.mrb[0].mxu0 %v1470
      %v1551 = vpop.f32.mrb[0].mxu0
      %v1552 = vadd.f32 %v1443, %v1551
      %v1553 = vpop.f32.mrb[0].mxu0
      %v1554 = vpop.f32.mrb[0].mxu0
      %v1555 = vadd.f32 %v1443, %v1554
      %v1556 = vpop.f32.mrb[0].mxu0
      %1557 = vmatprep.mubr.bf16.mxu0 0
      %1558 = vmatmul.mubr.bf16.gmra.mrb[0].mxu0 %v1473
      %v1559 = vpop.f32.mrb[0].mxu0
      %v1560 = vadd.f32 %v1443, %v1559
      %v1561 = vpop.f32.mrb[0].mxu0
      %v1562 = vpop.f32.mrb[0].mxu0
      %v1563 = vadd.f32 %v1443, %v1562
      %v1564 = vpop.f32.mrb[0].mxu0
      %1565 = vmatprep.mubr.bf16.mxu0 0
      %1566 = vmatmul.mubr.bf16.gmra.mrb[0].mxu0 %v1476
      %v1567 = vpop.f32.mrb[0].mxu0
      %v1568 = vadd.f32 %v1443, %v1567
      %v1569 = vpop.f32.mrb[0].mxu0
      %v1570 = vpop.f32.mrb[0].mxu0
      %v1571 = vadd.f32 %v1443, %v1570
      %v1572 = vpop.f32.mrb[0].mxu0
      %1573 = vmatprep.mubr.bf16.mxu0 0
      %1574 = vmatmul.mubr.bf16.gmra.mrb[0].mxu0 %v1479
      %v1575 = vpop.f32.mrb[0].mxu0
      %v1576 = vadd.f32 %v1443, %v1575
      %v1577 = vpop.f32.mrb[0].mxu0
      %v1578 = vpop.f32.mrb[0].mxu0
      %v1579 = vadd.f32 %v1443, %v1578
      %v1580 = vpop.f32.mrb[0].mxu0
      %1581 = vmatprep.mubr.bf16.mxu0 0
      %1582 = vmatmul.mubr.bf16.gmra.mrb[0].mxu0 %v1482
      %v1583 = vpop.f32.mrb[0].mxu0
      %v1584 = vadd.f32 %v1443, %v1583
      %v1585 = vpop.f32.mrb[0].mxu0
      %v1586 = vpop.f32.mrb[0].mxu0
      %v1587 = vadd.f32 %v1443, %v1586
      %v1588 = vpop.f32.mrb[0].mxu0
      %1589 = vmatprep.mubr.bf16.mxu0 0
      %1590 = vmatmul.mubr.bf16.gmra.mrb[0].mxu0 %v1485
      %v1591 = vpop.f32.mrb[0].mxu0
      %v1592 = vadd.f32 %v1443, %v1591
      %v1593 = vpop.f32.mrb[0].mxu0
      %v1594 = vpop.f32.mrb[0].mxu0
      %v1595 = vadd.f32 %v1443, %v1594
      %v1596 = vpop.f32.mrb[0].mxu0
      %1597 = vmatprep.mubr.bf16.mxu0 0
      %1598 = vmatmul.mubr.bf16.gmra.mrb[0].mxu0 %v1488
      %v1599 = vpop.f32.mrb[0].mxu0
      %v1600 = vadd.f32 %v1443, %v1599
      %v1601 = vpop.f32.mrb[0].mxu0
      %v1602 = vpop.f32.mrb[0].mxu0
      %v1603 = vadd.f32 %v1443, %v1602
      %v1604 = vpop.f32.mrb[0].mxu0
      %1605 = vmatprep.mubr.bf16.mxu0 0
      %1606 = vmatmul.mubr.bf16.gmra.mrb[0].mxu0 %v1491
      %v1607 = vpop.f32.mrb[0].mxu0
      %v1608 = vadd.f32 %v1443, %v1607
      %v1609 = vpop.f32.mrb[0].mxu0
      %v1610 = vpop.f32.mrb[0].mxu0
      %v1611 = vadd.f32 %v1443, %v1610
      %v1612 = vpop.f32.mrb[0].mxu0
      %1613 = vmatprep.mubr.bf16.mxu0 0
      %1614 = vmatmul.mubr.bf16.gmra.mrb[0].mxu0 %v1494
      %v1615 = vpop.f32.mrb[0].mxu0
      %v1616 = vadd.f32 %v1443, %v1615
      %v1617 = vpop.f32.mrb[0].mxu0
      %v1618 = vpop.f32.mrb[0].mxu0
      %v1619 = vadd.f32 %v1443, %v1618
      %v1620 = vpop.f32.mrb[0].mxu0
      %1621 = vmatprep.mubr.bf16.mxu0 0
      %1622 = vmatmul.mubr.bf16.gmra.mrb[0].mxu0 %v1497
      %v1623 = vpop.f32.mrb[0].mxu0
      %v1624 = vadd.f32 %v1443, %v1623
      %v1625 = vpop.f32.mrb[0].mxu0
      %v1626 = vpop.f32.mrb[0].mxu0
      %v1627 = vadd.f32 %v1443, %v1626
      %v1628 = vpop.f32.mrb[0].mxu0
      %1629 = vmatprep.mubr.bf16.mxu0 0
      %1630 = vmatmul.mubr.bf16.gmra.mrb[0].mxu0 %v1500
      %v1631 = vpop.f32.mrb[0].mxu0
      %v1632 = vadd.f32 %v1443, %v1631
      %v1633 = vpop.f32.mrb[0].mxu0
      %v1634 = vpop.f32.mrb[0].mxu0
      %v1635 = vadd.f32 %v1443, %v1634
      %v1636 = vpop.f32.mrb[0].mxu0
      %1637 = vmatprep.mubr.bf16.mxu0 0
      %1638 = vmatmul.mubr.bf16.gmra.mrb[0].mxu0 %v1503
      %v1639 = vpop.f32.mrb[0].mxu0
      %v1640 = vadd.f32 %v1443, %v1639
      %v1641 = vpop.f32.mrb[0].mxu0
      %v1642 = vpop.f32.mrb[0].mxu0
      %v1643 = vadd.f32 %v1443, %v1642
      %v1644 = vpop.f32.mrb[0].mxu0
      %1645 = vmatprep.mubr.bf16.mxu0 0
      %1646 = vmatmul.mubr.bf16.gmra.mrb[0].mxu0 %v1506
      %v1647 = vpop.f32.mrb[0].mxu0
      %v1648 = vadd.f32 %v1443, %v1647
      %v1649 = vpop.f32.mrb[0].mxu0
      %v1650 = vpop.f32.mrb[0].mxu0
      %v1651 = vadd.f32 %v1443, %v1650
      %v1652 = vpop.f32.mrb[0].mxu0
      %1653 = vmatprep.mubr.bf16.mxu0 0
      %1654 = vmatmul.mubr.bf16.gmra.mrb[0].mxu0 %v1509
      %v1655 = vpop.f32.mrb[0].mxu0
      %v1656 = vadd.f32 %v1443, %v1655
      %v1657 = vpop.f32.mrb[0].mxu0
      %v1658 = vpop.f32.mrb[0].mxu0
      %v1659 = vadd.f32 %v1443, %v1658
      %v1660 = vpop.f32.mrb[0].mxu0
      %1661 = vmatprep.mubr.bf16.mxu0 0
      %1662 = vmatmul.mubr.bf16.gmra.mrb[0].mxu0 %v1512
      %v1663 = vpop.f32.mrb[0].mxu0
      %v1664 = vadd.f32 %v1443, %v1663
      %v1665 = vpop.f32.mrb[0].mxu0
      %v1666 = vpop.f32.mrb[0].mxu0
      %v1667 = vadd.f32 %v1443, %v1666
      %v1668 = vpop.f32.mrb[0].mxu0
      %1669 = vmatprep.mubr.bf16.mxu0 0
      %1670 = vmatmul.mubr.bf16.gmra.mrb[0].mxu0 %v1515
      %v1671 = vpop.f32.mrb[0].mxu0
      %v1672 = vadd.f32 %v1443, %v1671
      %v1673 = vpop.f32.mrb[0].mxu0
      %v1674 = vpop.f32.mrb[0].mxu0
      %v1675 = vadd.f32 %v1443, %v1674
      %v1676 = vpop.f32.mrb[0].mxu0
      %1677 = vdwg.mxu0
      %v1678 = vmax.f32 %v1552, 0.0
      %v1679 = vmax.f32 %v1555, 0.0
      %v1680 = vmax.f32 %v1560, 0.0
      %v1681 = vmax.f32 %v1563, 0.0
      %v1682 = vmax.f32 %v1568, 0.0
      %v1683 = vmax.f32 %v1571, 0.0
      %v1684 = vmax.f32 %v1576, 0.0
      %v1685 = vmax.f32 %v1579, 0.0
      %v1686 = vmax.f32 %v1584, 0.0
      %v1687 = vmax.f32 %v1587, 0.0
      %v1688 = vmax.f32 %v1592, 0.0
      %v1689 = vmax.f32 %v1595, 0.0
      %v1690 = vmax.f32 %v1600, 0.0
      %v1691 = vmax.f32 %v1603, 0.0
      %v1692 = vmax.f32 %v1608, 0.0
      %v1693 = vmax.f32 %v1611, 0.0
      %v1694 = vmax.f32 %v1616, 0.0
      %v1695 = vmax.f32 %v1619, 0.0
      %v1696 = vmax.f32 %v1624, 0.0
      %v1697 = vmax.f32 %v1627, 0.0
      %v1698 = vmax.f32 %v1632, 0.0
      %v1699 = vmax.f32 %v1635, 0.0
      %v1700 = vmax.f32 %v1640, 0.0
      %v1701 = vmax.f32 %v1643, 0.0
      %v1702 = vmax.f32 %v1648, 0.0
      %v1703 = vmax.f32 %v1651, 0.0
      %v1704 = vmax.f32 %v1656, 0.0
      %v1705 = vmax.f32 %v1659, 0.0
      %v1706 = vmax.f32 %v1664, 0.0
      %v1707 = vmax.f32 %v1667, 0.0
      %v1708 = vmax.f32 %v1672, 0.0
      %v1709 = vmax.f32 %v1675, 0.0
      %1710 = vst [vmem:[%s278] sm:$0xff] %v1678
      %1711 = vst [vmem:[%s278 + $0x10] sm:$0xff] %v1679
      %1712 = vst [vmem:[%s278 + $0x40] sm:$0xff] %v1680
      %1713 = vst [vmem:[%s278 + $0x50] sm:$0xff] %v1681
      %1714 = vst [vmem:[%s278 + $0x80] sm:$0xff] %v1682
      %1715 = vst [vmem:[%s278 + $0x90] sm:$0xff] %v1683
      %1716 = vst [vmem:[%s278 + $0xc0] sm:$0xff] %v1684
      %1717 = vst [vmem:[%s278 + $0xd0] sm:$0xff] %v1685
      %1718 = vst [vmem:[%s278 + $0x100] sm:$0xff] %v1686
      %1719 = vst [vmem:[%s278 + $0x110] sm:$0xff] %v1687
      %1720 = vst [vmem:[%s278 + $0x140] sm:$0xff] %v1688
      %1721 = vst [vmem:[%s278 + $0x150] sm:$0xff] %v1689
      %1722 = vst [vmem:[%s278 + $0x180] sm:$0xff] %v1690
      %1723 = vst [vmem:[%s278 + $0x190] sm:$0xff] %v1691
      %1724 = vst [vmem:[%s278 + $0x1c0] sm:$0xff] %v1692
      %1725 = vst [vmem:[%s278 + $0x1d0] sm:$0xff] %v1693
      %1726 = vst [vmem:[%s278 + $0x200] sm:$0xff] %v1694
      %1727 = vst [vmem:[%s278 + $0x210] sm:$0xff] %v1695
      %1728 = vst [vmem:[%s278 + $0x240] sm:$0xff] %v1696
      %1729 = vst [vmem:[%s278 + $0x250] sm:$0xff] %v1697
      %1730 = vst [vmem:[%s278 + $0x280] sm:$0xff] %v1698
      %1731 = vst [vmem:[%s278 + $0x290] sm:$0xff] %v1699
      %1732 = vst [vmem:[%s278 + $0x2c0] sm:$0xff] %v1700
      %1733 = vst [vmem:[%s278 + $0x2d0] sm:$0xff] %v1701
      %1734 = vst [vmem:[%s278 + $0x300] sm:$0xff] %v1702
      %1735 = vst [vmem:[%s278 + $0x310] sm:$0xff] %v1703
      %1736 = vst [vmem:[%s278 + $0x340] sm:$0xff] %v1704
      %1737 = vst [vmem:[%s278 + $0x350] sm:$0xff] %v1705
      %1738 = vst [vmem:[%s278 + $0x380] sm:$0xff] %v1706
      %1739 = vst [vmem:[%s278 + $0x390] sm:$0xff] %v1707
      %1740 = vst [vmem:[%s278 + $0x3c0] sm:$0xff] %v1708
      %1741 = vst [vmem:[%s278 + $0x3d0] sm:$0xff] %v1709
      %v1742 = vld [vmem:[#allocation2] sm:$0xf]
      %v1743 = vld [vmem:[#allocation2 + $0x4] sm:$0xf]
      %v1744 = vld [vmem:[#allocation2 + $0x8] sm:$0x1]
      %v1745 = vld [vmem:[#allocation2 + $0xc] sm:$0xf]
      %v1746 = vld [vmem:[#allocation2 + $0x10] sm:$0xf]
      %v1747 = vld [vmem:[#allocation2 + $0x14] sm:$0x1]
      %v1748 = vld [vmem:[#allocation2 + $0x18] sm:$0xf]
      %v1749 = vld [vmem:[#allocation2 + $0x1c] sm:$0xf]
      %v1750 = vld [vmem:[#allocation2 + $0x20] sm:$0x1]
      %v1751 = vld [vmem:[#allocation2 + $0x24] sm:$0xf]
      %v1752 = vld [vmem:[#allocation2 + $0x28] sm:$0xf]
      %v1753 = vld [vmem:[#allocation2 + $0x2c] sm:$0x1]
      %v1754 = vld [vmem:[#allocation2 + $0x30] sm:$0xf]
      %v1755 = vld [vmem:[#allocation2 + $0x34] sm:$0xf]
      %v1756 = vld [vmem:[#allocation2 + $0x38] sm:$0x1]
      %v1757 = vld [vmem:[#allocation2 + $0x3c] sm:$0xf]
      %v1758 = vld [vmem:[#allocation2 + $0x40] sm:$0xf]
      %v1759 = vld [vmem:[#allocation2 + $0x44] sm:$0x1]
      %v1760 = vld [vmem:[#allocation2 + $0x48] sm:$0xf]
      %v1761 = vld [vmem:[#allocation2 + $0x4c] sm:$0xf]
      %v1762 = vld [vmem:[#allocation2 + $0x50] sm:$0x1]
      %v1763 = vld [vmem:[#allocation2 + $0x54] sm:$0xf]
      %v1764 = vld [vmem:[#allocation2 + $0x58] sm:$0xf]
      %v1765 = vld [vmem:[#allocation2 + $0x5c] sm:$0x1]
      %v1766 = vld [vmem:[#allocation2 + $0x60] sm:$0xf]
      %v1767 = vld [vmem:[#allocation2 + $0x64] sm:$0xf]
      %v1768 = vld [vmem:[#allocation2 + $0x68] sm:$0x1]
      %v1769 = vld [vmem:[#allocation2 + $0x6c] sm:$0xf]
      %v1770 = vld [vmem:[#allocation2 + $0x70] sm:$0xf]
      %v1771 = vld [vmem:[#allocation2 + $0x74] sm:$0x1]
      %v1772 = vld [vmem:[#allocation2 + $0x78] sm:$0xf]
      %v1773 = vld [vmem:[#allocation2 + $0x7c] sm:$0xf]
      %v1774 = vld [vmem:[#allocation2 + $0x80] sm:$0x1]
      %v1775 = vld [vmem:[#allocation2 + $0x84] sm:$0xf]
      %v1776 = vld [vmem:[#allocation2 + $0x88] sm:$0xf]
      %v1777 = vld [vmem:[#allocation2 + $0x8c] sm:$0x1]
      %v1778 = vld [vmem:[#allocation2 + $0x90] sm:$0xf]
      %v1779 = vld [vmem:[#allocation2 + $0x94] sm:$0xf]
      %v1780 = vld [vmem:[#allocation2 + $0x98] sm:$0x1]
      %v1781 = vld [vmem:[#allocation2 + $0x9c] sm:$0xf]
      %v1782 = vld [vmem:[#allocation2 + $0xa0] sm:$0xf]
      %v1783 = vld [vmem:[#allocation2 + $0xa4] sm:$0x1]
      %v1784 = vld [vmem:[#allocation2 + $0xa8] sm:$0xf]
      %v1785 = vld [vmem:[#allocation2 + $0xac] sm:$0xf]
      %v1786 = vld [vmem:[#allocation2 + $0xb0] sm:$0x1]
      %v1787 = vld [vmem:[#allocation2 + $0xb4] sm:$0xf]
      %v1788 = vld [vmem:[#allocation2 + $0xb8] sm:$0xf]
      %v1789 = vld [vmem:[#allocation2 + $0xbc] sm:$0x1]
      %vm1790 = vsmask.f32 3328
      %vm1791 = vsmask.f32 7440
      %vm1792 = vmor %vm1790, %vm1791
      %v1794 = vshrl.u32 %v1742, 16
      %v1796 = vrot.slane %v1794, 4
      %v1797 = vshll.u32 %v1742, 16
      %v1799 = vrot.slane %v1797, 5
      %v1800 = vor.u32 %v1796, %v1799
      %v1801 = vrot.slane %v1800, 4
      %v1803 = vshll.u32 %v1743, 16
      %v1805 = vrot.slane %v1803, 5
      %v1806 = vsel %vm1792, %v1801, %v1805
      %v1807 = vshrl.u32 %v1743, 16
      %v1809 = vrot.slane %v1807, 4
      %v1810 = vor.u32 %v1809, %v1805
      %v1811 = vrot.slane %v1810, 4
      %v1813 = vshll.u32 %v1744, 16
      %v1815 = vrot.slane %v1813, 5
      %v1816 = vsel %vm1792, %v1811, %v1815
      %v1818 = vshrl.u32 %v1745, 16
      %v1820 = vrot.slane %v1818, 4
      %v1821 = vshll.u32 %v1745, 16
      %v1823 = vrot.slane %v1821, 5
      %v1824 = vor.u32 %v1820, %v1823
      %v1825 = vrot.slane %v1824, 4
      %v1827 = vshll.u32 %v1746, 16
      %v1829 = vrot.slane %v1827, 5
      %v1830 = vsel %vm1792, %v1825, %v1829
      %v1831 = vshrl.u32 %v1746, 16
      %v1833 = vrot.slane %v1831, 4
      %v1834 = vor.u32 %v1833, %v1829
      %v1835 = vrot.slane %v1834, 4
      %v1837 = vshll.u32 %v1747, 16
      %v1839 = vrot.slane %v1837, 5
      %v1840 = vsel %vm1792, %v1835, %v1839
      %v1842 = vshrl.u32 %v1748, 16
      %v1844 = vrot.slane %v1842, 4
      %v1845 = vshll.u32 %v1748, 16
      %v1847 = vrot.slane %v1845, 5
      %v1848 = vor.u32 %v1844, %v1847
      %v1849 = vrot.slane %v1848, 4
      %v1851 = vshll.u32 %v1749, 16
      %v1853 = vrot.slane %v1851, 5
      %v1854 = vsel %vm1792, %v1849, %v1853
      %v1855 = vshrl.u32 %v1749, 16
      %v1857 = vrot.slane %v1855, 4
      %v1858 = vor.u32 %v1857, %v1853
      %v1859 = vrot.slane %v1858, 4
      %v1861 = vshll.u32 %v1750, 16
      %v1863 = vrot.slane %v1861, 5
      %v1864 = vsel %vm1792, %v1859, %v1863
      %v1866 = vshrl.u32 %v1751, 16
      %v1868 = vrot.slane %v1866, 4
      %v1869 = vshll.u32 %v1751, 16
      %v1871 = vrot.slane %v1869, 5
      %v1872 = vor.u32 %v1868, %v1871
      %v1873 = vrot.slane %v1872, 4
      %v1875 = vshll.u32 %v1752, 16
      %v1877 = vrot.slane %v1875, 5
      %v1878 = vsel %vm1792, %v1873, %v1877
      %v1879 = vshrl.u32 %v1752, 16
      %v1881 = vrot.slane %v1879, 4
      %v1882 = vor.u32 %v1881, %v1877
      %v1883 = vrot.slane %v1882, 4
      %v1885 = vshll.u32 %v1753, 16
      %v1887 = vrot.slane %v1885, 5
      %v1888 = vsel %vm1792, %v1883, %v1887
      %v1890 = vshrl.u32 %v1754, 16
      %v1892 = vrot.slane %v1890, 4
      %v1893 = vshll.u32 %v1754, 16
      %v1895 = vrot.slane %v1893, 5
      %v1896 = vor.u32 %v1892, %v1895
      %v1897 = vrot.slane %v1896, 4
      %v1899 = vshll.u32 %v1755, 16
      %v1901 = vrot.slane %v1899, 5
      %v1902 = vsel %vm1792, %v1897, %v1901
      %v1903 = vshrl.u32 %v1755, 16
      %v1905 = vrot.slane %v1903, 4
      %v1906 = vor.u32 %v1905, %v1901
      %v1907 = vrot.slane %v1906, 4
      %v1909 = vshll.u32 %v1756, 16
      %v1911 = vrot.slane %v1909, 5
      %v1912 = vsel %vm1792, %v1907, %v1911
      %v1914 = vshrl.u32 %v1757, 16
      %v1916 = vrot.slane %v1914, 4
      %v1917 = vshll.u32 %v1757, 16
      %v1919 = vrot.slane %v1917, 5
      %v1920 = vor.u32 %v1916, %v1919
      %v1921 = vrot.slane %v1920, 4
      %v1923 = vshll.u32 %v1758, 16
      %v1925 = vrot.slane %v1923, 5
      %v1926 = vsel %vm1792, %v1921, %v1925
      %v1927 = vshrl.u32 %v1758, 16
      %v1929 = vrot.slane %v1927, 4
      %v1930 = vor.u32 %v1929, %v1925
      %v1931 = vrot.slane %v1930, 4
      %v1933 = vshll.u32 %v1759, 16
      %v1935 = vrot.slane %v1933, 5
      %v1936 = vsel %vm1792, %v1931, %v1935
      %v1938 = vshrl.u32 %v1760, 16
      %v1940 = vrot.slane %v1938, 4
      %v1941 = vshll.u32 %v1760, 16
      %v1943 = vrot.slane %v1941, 5
      %v1944 = vor.u32 %v1940, %v1943
      %v1945 = vrot.slane %v1944, 4
      %v1947 = vshll.u32 %v1761, 16
      %v1949 = vrot.slane %v1947, 5
      %v1950 = vsel %vm1792, %v1945, %v1949
      %v1951 = vshrl.u32 %v1761, 16
      %v1953 = vrot.slane %v1951, 4
      %v1954 = vor.u32 %v1953, %v1949
      %v1955 = vrot.slane %v1954, 4
      %v1957 = vshll.u32 %v1762, 16
      %v1959 = vrot.slane %v1957, 5
      %v1960 = vsel %vm1792, %v1955, %v1959
      %v1962 = vshrl.u32 %v1763, 16
      %v1964 = vrot.slane %v1962, 4
      %v1965 = vshll.u32 %v1763, 16
      %v1967 = vrot.slane %v1965, 5
      %v1968 = vor.u32 %v1964, %v1967
      %v1969 = vrot.slane %v1968, 4
      %v1971 = vshll.u32 %v1764, 16
      %v1973 = vrot.slane %v1971, 5
      %v1974 = vsel %vm1792, %v1969, %v1973
      %v1975 = vshrl.u32 %v1764, 16
      %v1977 = vrot.slane %v1975, 4
      %v1978 = vor.u32 %v1977, %v1973
      %v1979 = vrot.slane %v1978, 4
      %v1981 = vshll.u32 %v1765, 16
      %v1983 = vrot.slane %v1981, 5
      %v1984 = vsel %vm1792, %v1979, %v1983
      %v1986 = vshrl.u32 %v1766, 16
      %v1988 = vrot.slane %v1986, 4
      %v1989 = vshll.u32 %v1766, 16
      %v1991 = vrot.slane %v1989, 5
      %v1992 = vor.u32 %v1988, %v1991
      %v1993 = vrot.slane %v1992, 4
      %v1995 = vshll.u32 %v1767, 16
      %v1997 = vrot.slane %v1995, 5
      %v1998 = vsel %vm1792, %v1993, %v1997
      %v1999 = vshrl.u32 %v1767, 16
      %v2001 = vrot.slane %v1999, 4
      %v2002 = vor.u32 %v2001, %v1997
      %v2003 = vrot.slane %v2002, 4
      %v2005 = vshll.u32 %v1768, 16
      %v2007 = vrot.slane %v2005, 5
      %v2008 = vsel %vm1792, %v2003, %v2007
      %v2010 = vshrl.u32 %v1769, 16
      %v2012 = vrot.slane %v2010, 4
      %v2013 = vshll.u32 %v1769, 16
      %v2015 = vrot.slane %v2013, 5
      %v2016 = vor.u32 %v2012, %v2015
      %v2017 = vrot.slane %v2016, 4
      %v2019 = vshll.u32 %v1770, 16
      %v2021 = vrot.slane %v2019, 5
      %v2022 = vsel %vm1792, %v2017, %v2021
      %v2023 = vshrl.u32 %v1770, 16
      %v2025 = vrot.slane %v2023, 4
      %v2026 = vor.u32 %v2025, %v2021
      %v2027 = vrot.slane %v2026, 4
      %v2029 = vshll.u32 %v1771, 16
      %v2031 = vrot.slane %v2029, 5
      %v2032 = vsel %vm1792, %v2027, %v2031
      %v2034 = vshrl.u32 %v1772, 16
      %v2036 = vrot.slane %v2034, 4
      %v2037 = vshll.u32 %v1772, 16
      %v2039 = vrot.slane %v2037, 5
      %v2040 = vor.u32 %v2036, %v2039
      %v2041 = vrot.slane %v2040, 4
      %v2043 = vshll.u32 %v1773, 16
      %v2045 = vrot.slane %v2043, 5
      %v2046 = vsel %vm1792, %v2041, %v2045
      %v2047 = vshrl.u32 %v1773, 16
      %v2049 = vrot.slane %v2047, 4
      %v2050 = vor.u32 %v2049, %v2045
      %v2051 = vrot.slane %v2050, 4
      %v2053 = vshll.u32 %v1774, 16
      %v2055 = vrot.slane %v2053, 5
      %v2056 = vsel %vm1792, %v2051, %v2055
      %v2058 = vshrl.u32 %v1775, 16
      %v2060 = vrot.slane %v2058, 4
      %v2061 = vshll.u32 %v1775, 16
      %v2063 = vrot.slane %v2061, 5
      %v2064 = vor.u32 %v2060, %v2063
      %v2065 = vrot.slane %v2064, 4
      %v2067 = vshll.u32 %v1776, 16
      %v2069 = vrot.slane %v2067, 5
      %v2070 = vsel %vm1792, %v2065, %v2069
      %v2071 = vshrl.u32 %v1776, 16
      %v2073 = vrot.slane %v2071, 4
      %v2074 = vor.u32 %v2073, %v2069
      %v2075 = vrot.slane %v2074, 4
      %v2077 = vshll.u32 %v1777, 16
      %v2079 = vrot.slane %v2077, 5
      %v2080 = vsel %vm1792, %v2075, %v2079
      %v2082 = vshrl.u32 %v1778, 16
      %v2084 = vrot.slane %v2082, 4
      %v2085 = vshll.u32 %v1778, 16
      %v2087 = vrot.slane %v2085, 5
      %v2088 = vor.u32 %v2084, %v2087
      %v2089 = vrot.slane %v2088, 4
      %v2091 = vshll.u32 %v1779, 16
      %v2093 = vrot.slane %v2091, 5
      %v2094 = vsel %vm1792, %v2089, %v2093
      %v2095 = vshrl.u32 %v1779, 16
      %v2097 = vrot.slane %v2095, 4
      %v2098 = vor.u32 %v2097, %v2093
      %v2099 = vrot.slane %v2098, 4
      %v2101 = vshll.u32 %v1780, 16
      %v2103 = vrot.slane %v2101, 5
      %v2104 = vsel %vm1792, %v2099, %v2103
      %v2106 = vshrl.u32 %v1781, 16
      %v2108 = vrot.slane %v2106, 4
      %v2109 = vshll.u32 %v1781, 16
      %v2111 = vrot.slane %v2109, 5
      %v2112 = vor.u32 %v2108, %v2111
      %v2113 = vrot.slane %v2112, 4
      %v2115 = vshll.u32 %v1782, 16
      %v2117 = vrot.slane %v2115, 5
      %v2118 = vsel %vm1792, %v2113, %v2117
      %v2119 = vshrl.u32 %v1782, 16
      %v2121 = vrot.slane %v2119, 4
      %v2122 = vor.u32 %v2121, %v2117
      %v2123 = vrot.slane %v2122, 4
      %v2125 = vshll.u32 %v1783, 16
      %v2127 = vrot.slane %v2125, 5
      %v2128 = vsel %vm1792, %v2123, %v2127
      %v2130 = vshrl.u32 %v1784, 16
      %v2132 = vrot.slane %v2130, 4
      %v2133 = vshll.u32 %v1784, 16
      %v2135 = vrot.slane %v2133, 5
      %v2136 = vor.u32 %v2132, %v2135
      %v2137 = vrot.slane %v2136, 4
      %v2139 = vshll.u32 %v1785, 16
      %v2141 = vrot.slane %v2139, 5
      %v2142 = vsel %vm1792, %v2137, %v2141
      %v2143 = vshrl.u32 %v1785, 16
      %v2145 = vrot.slane %v2143, 4
      %v2146 = vor.u32 %v2145, %v2141
      %v2147 = vrot.slane %v2146, 4
      %v2149 = vshll.u32 %v1786, 16
      %v2151 = vrot.slane %v2149, 5
      %v2152 = vsel %vm1792, %v2147, %v2151
      %v2154 = vshrl.u32 %v1787, 16
      %v2156 = vrot.slane %v2154, 4
      %v2157 = vshll.u32 %v1787, 16
      %v2159 = vrot.slane %v2157, 5
      %v2160 = vor.u32 %v2156, %v2159
      %v2161 = vrot.slane %v2160, 4
      %v2163 = vshll.u32 %v1788, 16
      %v2165 = vrot.slane %v2163, 5
      %v2166 = vsel %vm1792, %v2161, %v2165
      %v2167 = vshrl.u32 %v1788, 16
      %v2169 = vrot.slane %v2167, 4
      %v2170 = vor.u32 %v2169, %v2165
      %v2171 = vrot.slane %v2170, 4
      %v2173 = vshll.u32 %v1789, 16
      %v2175 = vrot.slane %v2173, 5
      %v2176 = vsel %vm1792, %v2171, %v2175
      %v2177 = vunpack.c.l.b16 %v1806
      %v2178 = vunpack.c.l.b16 %v1816
      %v2179 = vunpack.c.l.b16 %v1830
      %v2180 = vunpack.c.l.b16 %v1840
      %v2181 = vunpack.c.l.b16 %v1854
      %v2182 = vunpack.c.l.b16 %v1864
      %v2183 = vunpack.c.l.b16 %v1878
      %v2184 = vunpack.c.l.b16 %v1888
      %v2185 = vunpack.c.l.b16 %v1902
      %v2186 = vunpack.c.l.b16 %v1912
      %v2187 = vunpack.c.l.b16 %v1926
      %v2188 = vunpack.c.l.b16 %v1936
      %v2189 = vunpack.c.l.b16 %v1950
      %v2190 = vunpack.c.l.b16 %v1960
      %v2191 = vunpack.c.l.b16 %v1974
      %v2192 = vunpack.c.l.b16 %v1984
      %v2193 = vunpack.c.l.b16 %v1998
      %v2194 = vunpack.c.l.b16 %v2008
      %v2195 = vunpack.c.l.b16 %v2022
      %v2196 = vunpack.c.l.b16 %v2032
      %v2197 = vunpack.c.l.b16 %v2046
      %v2198 = vunpack.c.l.b16 %v2056
      %v2199 = vunpack.c.l.b16 %v2070
      %v2200 = vunpack.c.l.b16 %v2080
      %v2201 = vunpack.c.l.b16 %v2094
      %v2202 = vunpack.c.l.b16 %v2104
      %v2203 = vunpack.c.l.b16 %v2118
      %v2204 = vunpack.c.l.b16 %v2128
      %v2205 = vunpack.c.l.b16 %v2142
      %v2206 = vunpack.c.l.b16 %v2152
      %v2207 = vunpack.c.l.b16 %v2166
      %v2208 = vunpack.c.l.b16 %v2176
      %v2209 = vpack.c.b16 %v2178, %v2177
      %v2210 = vpack.c.b16 %v2180, %v2179
      %v2211 = vpack.c.b16 %v2182, %v2181
      %v2212 = vpack.c.b16 %v2184, %v2183
      %v2213 = vpack.c.b16 %v2186, %v2185
      %v2214 = vpack.c.b16 %v2188, %v2187
      %v2215 = vpack.c.b16 %v2190, %v2189
      %v2216 = vpack.c.b16 %v2192, %v2191
      %v2217 = vpack.c.b16 %v2194, %v2193
      %v2218 = vpack.c.b16 %v2196, %v2195
      %v2219 = vpack.c.b16 %v2198, %v2197
      %v2220 = vpack.c.b16 %v2200, %v2199
      %v2221 = vpack.c.b16 %v2202, %v2201
      %v2222 = vpack.c.b16 %v2204, %v2203
      %v2223 = vpack.c.b16 %v2206, %v2205
      %v2224 = vpack.c.b16 %v2208, %v2207
      %v2257 = vunpack.c.l.b16 %v1742
      %v2258 = vunpack.c.l.b16 %v1743
      %v2259 = vunpack.c.l.b16 %v1745
      %v2260 = vunpack.c.l.b16 %v1746
      %v2261 = vunpack.c.l.b16 %v1748
      %v2262 = vunpack.c.l.b16 %v1749
      %v2263 = vunpack.c.l.b16 %v1751
      %v2264 = vunpack.c.l.b16 %v1752
      %v2265 = vunpack.c.l.b16 %v1754
      %v2266 = vunpack.c.l.b16 %v1755
      %v2267 = vunpack.c.l.b16 %v1757
      %v2268 = vunpack.c.l.b16 %v1758
      %v2269 = vunpack.c.l.b16 %v1760
      %v2270 = vunpack.c.l.b16 %v1761
      %v2271 = vunpack.c.l.b16 %v1763
      %v2272 = vunpack.c.l.b16 %v1764
      %v2273 = vunpack.c.l.b16 %v1766
      %v2274 = vunpack.c.l.b16 %v1767
      %v2275 = vunpack.c.l.b16 %v1769
      %v2276 = vunpack.c.l.b16 %v1770
      %v2277 = vunpack.c.l.b16 %v1772
      %v2278 = vunpack.c.l.b16 %v1773
      %v2279 = vunpack.c.l.b16 %v1775
      %v2280 = vunpack.c.l.b16 %v1776
      %v2281 = vunpack.c.l.b16 %v1778
      %v2282 = vunpack.c.l.b16 %v1779
      %v2283 = vunpack.c.l.b16 %v1781
      %v2284 = vunpack.c.l.b16 %v1782
      %v2285 = vunpack.c.l.b16 %v1784
      %v2286 = vunpack.c.l.b16 %v1785
      %v2287 = vunpack.c.l.b16 %v1787
      %v2288 = vunpack.c.l.b16 %v1788
      %v2289 = vpack.c.b16 %v2258, %v2257
      %v2290 = vpack.c.b16 %v2260, %v2259
      %v2291 = vpack.c.b16 %v2262, %v2261
      %v2292 = vpack.c.b16 %v2264, %v2263
      %v2293 = vpack.c.b16 %v2266, %v2265
      %v2294 = vpack.c.b16 %v2268, %v2267
      %v2295 = vpack.c.b16 %v2270, %v2269
      %v2296 = vpack.c.b16 %v2272, %v2271
      %v2297 = vpack.c.b16 %v2274, %v2273
      %v2298 = vpack.c.b16 %v2276, %v2275
      %v2299 = vpack.c.b16 %v2278, %v2277
      %v2300 = vpack.c.b16 %v2280, %v2279
      %v2301 = vpack.c.b16 %v2282, %v2281
      %v2302 = vpack.c.b16 %v2284, %v2283
      %v2303 = vpack.c.b16 %v2286, %v2285
      %v2304 = vpack.c.b16 %v2288, %v2287
      %2305 = vrot.lane.b32.xlu0 %v2289, 64
      %v2306 = vpop.permute.xlu0 %2305
      %2307 = vrot.lane.b32.xlu0 %v2290, 64
      %v2308 = vpop.permute.xlu0 %2307
      %2309 = vrot.lane.b32.xlu0 %v2291, 64
      %v2310 = vpop.permute.xlu0 %2309
      %2311 = vrot.lane.b32.xlu0 %v2292, 64
      %v2312 = vpop.permute.xlu0 %2311
      %2313 = vrot.lane.b32.xlu0 %v2293, 64
      %v2314 = vpop.permute.xlu0 %2313
      %2315 = vrot.lane.b32.xlu0 %v2294, 64
      %v2316 = vpop.permute.xlu0 %2315
      %2317 = vrot.lane.b32.xlu0 %v2295, 64
      %v2318 = vpop.permute.xlu0 %2317
      %2319 = vrot.lane.b32.xlu0 %v2296, 64
      %v2320 = vpop.permute.xlu0 %2319
      %2321 = vrot.lane.b32.xlu0 %v2297, 64
      %v2322 = vpop.permute.xlu0 %2321
      %2323 = vrot.lane.b32.xlu0 %v2298, 64
      %v2324 = vpop.permute.xlu0 %2323
      %2325 = vrot.lane.b32.xlu0 %v2299, 64
      %v2326 = vpop.permute.xlu0 %2325
      %2327 = vrot.lane.b32.xlu0 %v2300, 64
      %v2328 = vpop.permute.xlu0 %2327
      %2329 = vrot.lane.b32.xlu0 %v2301, 64
      %v2330 = vpop.permute.xlu0 %2329
      %2331 = vrot.lane.b32.xlu0 %v2302, 64
      %v2332 = vpop.permute.xlu0 %2331
      %2333 = vrot.lane.b32.xlu0 %v2303, 64
      %v2334 = vpop.permute.xlu0 %2333
      %2335 = vrot.lane.b32.xlu0 %v2304, 64
      %v2336 = vpop.permute.xlu0 %2335
      %v2339 = vsel %vm1181, %v2209, %v2306
      %v2343 = vsel %vm1181, %v2210, %v2308
      %v2347 = vsel %vm1181, %v2211, %v2310
      %v2351 = vsel %vm1181, %v2212, %v2312
      %v2355 = vsel %vm1181, %v2213, %v2314
      %v2359 = vsel %vm1181, %v2214, %v2316
      %v2363 = vsel %vm1181, %v2215, %v2318
      %v2367 = vsel %vm1181, %v2216, %v2320
      %v2371 = vsel %vm1181, %v2217, %v2322
      %v2375 = vsel %vm1181, %v2218, %v2324
      %v2379 = vsel %vm1181, %v2219, %v2326
      %v2383 = vsel %vm1181, %v2220, %v2328
      %v2387 = vsel %vm1181, %v2221, %v2330
      %v2391 = vsel %vm1181, %v2222, %v2332
      %v2395 = vsel %vm1181, %v2223, %v2334
      %v2399 = vsel %vm1181, %v2224, %v2336
      %v2401 = vld [vmem:[%s3 + $0x20] sm:$0xf]
      %v2402 = vld [vmem:[%s3 + $0x24] sm:$0xf]
      %v2403 = vld [vmem:[%s3 + $0x28] sm:$0xf]
      %v2404 = vld [vmem:[%s3 + $0x2c] sm:$0xf]
      %v2405 = vld [vmem:[%s3 + $0x30] sm:$0xf]
      %v2406 = vld [vmem:[%s3 + $0x34] sm:$0xf]
      %v2407 = vld [vmem:[%s3 + $0x38] sm:$0xf]
      %v2408 = vld [vmem:[%s3 + $0x3c] sm:$0xf]
      %v2409 = vld [vmem:[%s3 + $0x40] sm:$0xf]
      %v2410 = vld [vmem:[%s3 + $0x44] sm:$0xf]
      %v2411 = vld [vmem:[%s3 + $0x48] sm:$0xf]
      %v2412 = vld [vmem:[%s3 + $0x4c] sm:$0xf]
      %v2413 = vld [vmem:[%s3 + $0x50] sm:$0xf]
      %v2414 = vld [vmem:[%s3 + $0x54] sm:$0xf]
      %v2415 = vld [vmem:[%s3 + $0x58] sm:$0xf]
      %v2416 = vld [vmem:[%s3 + $0x5c] sm:$0xf]
      %v2433 = vunpack.c.l.b16 %v2401
      %v2434 = vunpack.c.l.b16 %v2402
      %v2435 = vunpack.c.l.b16 %v2403
      %v2436 = vunpack.c.l.b16 %v2404
      %v2437 = vunpack.c.l.b16 %v2405
      %v2438 = vunpack.c.l.b16 %v2406
      %v2439 = vunpack.c.l.b16 %v2407
      %v2440 = vunpack.c.l.b16 %v2408
      %v2441 = vunpack.c.l.b16 %v2409
      %v2442 = vunpack.c.l.b16 %v2410
      %v2443 = vunpack.c.l.b16 %v2411
      %v2444 = vunpack.c.l.b16 %v2412
      %v2445 = vunpack.c.l.b16 %v2413
      %v2446 = vunpack.c.l.b16 %v2414
      %v2447 = vunpack.c.l.b16 %v2415
      %v2448 = vunpack.c.l.b16 %v2416
      %v2449 = vpack.c.b16 %v2434, %v2433
      %v2450 = vpack.c.b16 %v2436, %v2435
      %v2451 = vpack.c.b16 %v2438, %v2437
      %v2452 = vpack.c.b16 %v2440, %v2439
      %v2453 = vpack.c.b16 %v2442, %v2441
      %v2454 = vpack.c.b16 %v2444, %v2443
      %v2455 = vpack.c.b16 %v2446, %v2445
      %v2456 = vpack.c.b16 %v2448, %v2447
      %2465 = vmatprep.subr.bf16.mxu0 0
      %2466 = vmatpush1.bf16.msra.mxu0 %v2449
      %2467 = vmatprep.subr.bf16.mxu0 0
      %2468 = vmatpush1.bf16.msra.mxu0 %v2450
      %2469 = vmatprep.subr.bf16.mxu0 0
      %2470 = vmatpush1.bf16.msra.mxu0 %v2451
      %2471 = vmatprep.subr.bf16.mxu0 0
      %2472 = vmatpush1.bf16.msra.mxu0 %v2452
      %2473 = vmatprep.subr.bf16.mxu0 0
      %2474 = vmatpush1.bf16.msra.mxu0 %v2453
      %2475 = vmatprep.subr.bf16.mxu0 0
      %2476 = vmatpush1.bf16.msra.mxu0 %v2454
      %2477 = vmatprep.subr.bf16.mxu0 0
      %2478 = vmatpush1.bf16.msra.mxu0 %v2455
      %2479 = vmatprep.subr.bf16.mxu0 0
      %2480 = vmatpush1.bf16.msra.mxu0 %v2456
      %2481 = vmatprep.subr.bf16.mxu0 0
      %2482 = vmatpush1.bf16.msra.mxu0 0
      %2483 = vmatprep.subr.bf16.mxu0 0
      %2484 = vmatpush1.bf16.msra.mxu0 0
      %2485 = vmatprep.subr.bf16.mxu0 0
      %2486 = vmatpush1.bf16.msra.mxu0 0
      %2487 = vmatprep.subr.bf16.mxu0 0
      %2488 = vmatpush1.bf16.msra.mxu0 0
      %2489 = vmatprep.subr.bf16.mxu0 0
      %2490 = vmatpush1.bf16.msra.mxu0 0
      %2491 = vmatprep.subr.bf16.mxu0 0
      %2492 = vmatpush1.bf16.msra.mxu0 0
      %2493 = vmatprep.subr.bf16.mxu0 0
      %2494 = vmatpush1.bf16.msra.mxu0 0
      %2495 = vmatprep.subr.bf16.mxu0 0
      %2496 = vmatpush1.bf16.msra.mxu0 0
      %2497 = vmatprep.mubr.bf16.mxu0 0
      %2498 = vmatmul.mubr.bf16.gmra.mrb[0].mxu0 %v2339
      %v2499 = vpop.f32.mrb[0].mxu0
      %v2500 = vadd.f32 %v1075, %v2499
      %v2501 = vpop.f32.mrb[0].mxu0
      %v2502 = vpop.f32.mrb[0].mxu0
      %v2503 = vadd.f32 %v1075, %v2502
      %v2504 = vpop.f32.mrb[0].mxu0
      %2505 = vmatprep.mubr.bf16.mxu0 0
      %2506 = vmatmul.mubr.bf16.gmra.mrb[0].mxu0 %v2343
      %v2507 = vpop.f32.mrb[0].mxu0
      %v2508 = vadd.f32 %v1075, %v2507
      %v2509 = vpop.f32.mrb[0].mxu0
      %v2510 = vpop.f32.mrb[0].mxu0
      %v2511 = vadd.f32 %v1075, %v2510
      %v2512 = vpop.f32.mrb[0].mxu0
      %2513 = vmatprep.mubr.bf16.mxu0 0
      %2514 = vmatmul.mubr.bf16.gmra.mrb[0].mxu0 %v2347
      %v2515 = vpop.f32.mrb[0].mxu0
      %v2516 = vadd.f32 %v1075, %v2515
      %v2517 = vpop.f32.mrb[0].mxu0
      %v2518 = vpop.f32.mrb[0].mxu0
      %v2519 = vadd.f32 %v1075, %v2518
      %v2520 = vpop.f32.mrb[0].mxu0
      %2521 = vmatprep.mubr.bf16.mxu0 0
      %2522 = vmatmul.mubr.bf16.gmra.mrb[0].mxu0 %v2351
      %v2523 = vpop.f32.mrb[0].mxu0
      %v2524 = vadd.f32 %v1075, %v2523
      %v2525 = vpop.f32.mrb[0].mxu0
      %v2526 = vpop.f32.mrb[0].mxu0
      %v2527 = vadd.f32 %v1075, %v2526
      %v2528 = vpop.f32.mrb[0].mxu0
      %2529 = vmatprep.mubr.bf16.mxu0 0
      %2530 = vmatmul.mubr.bf16.gmra.mrb[0].mxu0 %v2355
      %v2531 = vpop.f32.mrb[0].mxu0
      %v2532 = vadd.f32 %v1075, %v2531
      %v2533 = vpop.f32.mrb[0].mxu0
      %v2534 = vpop.f32.mrb[0].mxu0
      %v2535 = vadd.f32 %v1075, %v2534
      %v2536 = vpop.f32.mrb[0].mxu0
      %2537 = vmatprep.mubr.bf16.mxu0 0
      %2538 = vmatmul.mubr.bf16.gmra.mrb[0].mxu0 %v2359
      %v2539 = vpop.f32.mrb[0].mxu0
      %v2540 = vadd.f32 %v1075, %v2539
      %v2541 = vpop.f32.mrb[0].mxu0
      %v2542 = vpop.f32.mrb[0].mxu0
      %v2543 = vadd.f32 %v1075, %v2542
      %v2544 = vpop.f32.mrb[0].mxu0
      %2545 = vmatprep.mubr.bf16.mxu0 0
      %2546 = vmatmul.mubr.bf16.gmra.mrb[0].mxu0 %v2363
      %v2547 = vpop.f32.mrb[0].mxu0
      %v2548 = vadd.f32 %v1075, %v2547
      %v2549 = vpop.f32.mrb[0].mxu0
      %v2550 = vpop.f32.mrb[0].mxu0
      %v2551 = vadd.f32 %v1075, %v2550
      %v2552 = vpop.f32.mrb[0].mxu0
      %2553 = vmatprep.mubr.bf16.mxu0 0
      %2554 = vmatmul.mubr.bf16.gmra.mrb[0].mxu0 %v2367
      %v2555 = vpop.f32.mrb[0].mxu0
      %v2556 = vadd.f32 %v1075, %v2555
      %v2557 = vpop.f32.mrb[0].mxu0
      %v2558 = vpop.f32.mrb[0].mxu0
      %v2559 = vadd.f32 %v1075, %v2558
      %v2560 = vpop.f32.mrb[0].mxu0
      %2561 = vmatprep.mubr.bf16.mxu0 0
      %2562 = vmatmul.mubr.bf16.gmra.mrb[0].mxu0 %v2371
      %v2563 = vpop.f32.mrb[0].mxu0
      %v2564 = vadd.f32 %v1075, %v2563
      %v2565 = vpop.f32.mrb[0].mxu0
      %v2566 = vpop.f32.mrb[0].mxu0
      %v2567 = vadd.f32 %v1075, %v2566
      %v2568 = vpop.f32.mrb[0].mxu0
      %2569 = vmatprep.mubr.bf16.mxu0 0
      %2570 = vmatmul.mubr.bf16.gmra.mrb[0].mxu0 %v2375
      %v2571 = vpop.f32.mrb[0].mxu0
      %v2572 = vadd.f32 %v1075, %v2571
      %v2573 = vpop.f32.mrb[0].mxu0
      %v2574 = vpop.f32.mrb[0].mxu0
      %v2575 = vadd.f32 %v1075, %v2574
      %v2576 = vpop.f32.mrb[0].mxu0
      %2577 = vmatprep.mubr.bf16.mxu0 0
      %2578 = vmatmul.mubr.bf16.gmra.mrb[0].mxu0 %v2379
      %v2579 = vpop.f32.mrb[0].mxu0
      %v2580 = vadd.f32 %v1075, %v2579
      %v2581 = vpop.f32.mrb[0].mxu0
      %v2582 = vpop.f32.mrb[0].mxu0
      %v2583 = vadd.f32 %v1075, %v2582
      %v2584 = vpop.f32.mrb[0].mxu0
      %2585 = vmatprep.mubr.bf16.mxu0 0
      %2586 = vmatmul.mubr.bf16.gmra.mrb[0].mxu0 %v2383
      %v2587 = vpop.f32.mrb[0].mxu0
      %v2588 = vadd.f32 %v1075, %v2587
      %v2589 = vpop.f32.mrb[0].mxu0
      %v2590 = vpop.f32.mrb[0].mxu0
      %v2591 = vadd.f32 %v1075, %v2590
      %v2592 = vpop.f32.mrb[0].mxu0
      %2593 = vmatprep.mubr.bf16.mxu0 0
      %2594 = vmatmul.mubr.bf16.gmra.mrb[0].mxu0 %v2387
      %v2595 = vpop.f32.mrb[0].mxu0
      %v2596 = vadd.f32 %v1075, %v2595
      %v2597 = vpop.f32.mrb[0].mxu0
      %v2598 = vpop.f32.mrb[0].mxu0
      %v2599 = vadd.f32 %v1075, %v2598
      %v2600 = vpop.f32.mrb[0].mxu0
      %2601 = vmatprep.mubr.bf16.mxu0 0
      %2602 = vmatmul.mubr.bf16.gmra.mrb[0].mxu0 %v2391
      %v2603 = vpop.f32.mrb[0].mxu0
      %v2604 = vadd.f32 %v1075, %v2603
      %v2605 = vpop.f32.mrb[0].mxu0
      %v2606 = vpop.f32.mrb[0].mxu0
      %v2607 = vadd.f32 %v1075, %v2606
      %v2608 = vpop.f32.mrb[0].mxu0
      %2609 = vmatprep.mubr.bf16.mxu0 0
      %2610 = vmatmul.mubr.bf16.gmra.mrb[0].mxu0 %v2395
      %v2611 = vpop.f32.mrb[0].mxu0
      %v2612 = vadd.f32 %v1075, %v2611
      %v2613 = vpop.f32.mrb[0].mxu0
      %v2614 = vpop.f32.mrb[0].mxu0
      %v2615 = vadd.f32 %v1075, %v2614
      %v2616 = vpop.f32.mrb[0].mxu0
      %2617 = vmatprep.mubr.bf16.mxu0 0
      %2618 = vmatmul.mubr.bf16.gmra.mrb[0].mxu0 %v2399
      %v2619 = vpop.f32.mrb[0].mxu0
      %v2620 = vadd.f32 %v1075, %v2619
      %v2621 = vpop.f32.mrb[0].mxu0
      %v2622 = vpop.f32.mrb[0].mxu0
      %v2623 = vadd.f32 %v1075, %v2622
      %v2624 = vpop.f32.mrb[0].mxu0
      %2625 = vdwg.mxu0
      %v2626 = vmax.f32 %v2500, 0.0
      %v2627 = vmax.f32 %v2503, 0.0
      %v2628 = vmax.f32 %v2508, 0.0
      %v2629 = vmax.f32 %v2511, 0.0
      %v2630 = vmax.f32 %v2516, 0.0
      %v2631 = vmax.f32 %v2519, 0.0
      %v2632 = vmax.f32 %v2524, 0.0
      %v2633 = vmax.f32 %v2527, 0.0
      %v2634 = vmax.f32 %v2532, 0.0
      %v2635 = vmax.f32 %v2535, 0.0
      %v2636 = vmax.f32 %v2540, 0.0
      %v2637 = vmax.f32 %v2543, 0.0
      %v2638 = vmax.f32 %v2548, 0.0
      %v2639 = vmax.f32 %v2551, 0.0
      %v2640 = vmax.f32 %v2556, 0.0
      %v2641 = vmax.f32 %v2559, 0.0
      %v2642 = vmax.f32 %v2564, 0.0
      %v2643 = vmax.f32 %v2567, 0.0
      %v2644 = vmax.f32 %v2572, 0.0
      %v2645 = vmax.f32 %v2575, 0.0
      %v2646 = vmax.f32 %v2580, 0.0
      %v2647 = vmax.f32 %v2583, 0.0
      %v2648 = vmax.f32 %v2588, 0.0
      %v2649 = vmax.f32 %v2591, 0.0
      %v2650 = vmax.f32 %v2596, 0.0
      %v2651 = vmax.f32 %v2599, 0.0
      %v2652 = vmax.f32 %v2604, 0.0
      %v2653 = vmax.f32 %v2607, 0.0
      %v2654 = vmax.f32 %v2612, 0.0
      %v2655 = vmax.f32 %v2615, 0.0
      %v2656 = vmax.f32 %v2620, 0.0
      %v2657 = vmax.f32 %v2623, 0.0
      %v2658 = vpack.c.bf16 %v2627, %v2626
      %v2659 = vpack.c.bf16 %v2629, %v2628
      %v2660 = vpack.c.bf16 %v2631, %v2630
      %v2661 = vpack.c.bf16 %v2633, %v2632
      %v2662 = vpack.c.bf16 %v2635, %v2634
      %v2663 = vpack.c.bf16 %v2637, %v2636
      %v2664 = vpack.c.bf16 %v2639, %v2638
      %v2665 = vpack.c.bf16 %v2641, %v2640
      %v2666 = vpack.c.bf16 %v2643, %v2642
      %v2667 = vpack.c.bf16 %v2645, %v2644
      %v2668 = vpack.c.bf16 %v2647, %v2646
      %v2669 = vpack.c.bf16 %v2649, %v2648
      %v2670 = vpack.c.bf16 %v2651, %v2650
      %v2671 = vpack.c.bf16 %v2653, %v2652
      %v2672 = vpack.c.bf16 %v2655, %v2654
      %v2673 = vpack.c.bf16 %v2657, %v2656
      %v2675 = vsel %vm1181, %v2658, 0
      %v2678 = vsel %vm1181, %v2659, 0
      %v2681 = vsel %vm1181, %v2660, 0
      %v2684 = vsel %vm1181, %v2661, 0
      %v2687 = vsel %vm1181, %v2662, 0
      %v2690 = vsel %vm1181, %v2663, 0
      %v2693 = vsel %vm1181, %v2664, 0
      %v2696 = vsel %vm1181, %v2665, 0
      %v2699 = vsel %vm1181, %v2666, 0
      %v2702 = vsel %vm1181, %v2667, 0
      %v2705 = vsel %vm1181, %v2668, 0
      %v2708 = vsel %vm1181, %v2669, 0
      %v2711 = vsel %vm1181, %v2670, 0
      %v2714 = vsel %vm1181, %v2671, 0
      %v2717 = vsel %vm1181, %v2672, 0
      %v2720 = vsel %vm1181, %v2673, 0
      %2722 = vmatprep.subr.bf16.mxu0 0
      %2723 = vmatpush1.bf16.msra.mxu0 %v1461
      %2724 = vmatprep.subr.bf16.mxu0 0
      %2725 = vmatpush1.bf16.msra.mxu0 %v1462
      %2726 = vmatprep.subr.bf16.mxu0 0
      %2727 = vmatpush1.bf16.msra.mxu0 %v1463
      %2728 = vmatprep.subr.bf16.mxu0 0
      %2729 = vmatpush1.bf16.msra.mxu0 %v1464
      %2730 = vmatprep.subr.bf16.mxu0 0
      %2731 = vmatpush1.bf16.msra.mxu0 0
      %2732 = vmatprep.subr.bf16.mxu0 0
      %2733 = vmatpush1.bf16.msra.mxu0 0
      %2734 = vmatprep.subr.bf16.mxu0 0
      %2735 = vmatpush1.bf16.msra.mxu0 0
      %2736 = vmatprep.subr.bf16.mxu0 0
      %2737 = vmatpush1.bf16.msra.mxu0 0
      %2738 = vmatprep.subr.bf16.mxu0 0
      %2739 = vmatpush1.bf16.msra.mxu0 0
      %2740 = vmatprep.subr.bf16.mxu0 0
      %2741 = vmatpush1.bf16.msra.mxu0 0
      %2742 = vmatprep.subr.bf16.mxu0 0
      %2743 = vmatpush1.bf16.msra.mxu0 0
      %2744 = vmatprep.subr.bf16.mxu0 0
      %2745 = vmatpush1.bf16.msra.mxu0 0
      %2746 = vmatprep.subr.bf16.mxu0 0
      %2747 = vmatpush1.bf16.msra.mxu0 0
      %2748 = vmatprep.subr.bf16.mxu0 0
      %2749 = vmatpush1.bf16.msra.mxu0 0
      %2750 = vmatprep.subr.bf16.mxu0 0
      %2751 = vmatpush1.bf16.msra.mxu0 0
      %2752 = vmatprep.subr.bf16.mxu0 0
      %2753 = vmatpush1.bf16.msra.mxu0 0
      %2754 = vmatprep.mubr.bf16.mxu0 0
      %2755 = vmatmul.mubr.bf16.gmra.mrb[0].mxu0 %v2675
      %v2756 = vpop.f32.mrb[0].mxu0
      %v2757 = vadd.f32 %v1443, %v2756
      %v2758 = vpop.f32.mrb[0].mxu0
      %v2759 = vpop.f32.mrb[0].mxu0
      %v2760 = vadd.f32 %v1443, %v2759
      %v2761 = vpop.f32.mrb[0].mxu0
      %2762 = vmatprep.mubr.bf16.mxu0 0
      %2763 = vmatmul.mubr.bf16.gmra.mrb[0].mxu0 %v2678
      %v2764 = vpop.f32.mrb[0].mxu0
      %v2765 = vadd.f32 %v1443, %v2764
      %v2766 = vpop.f32.mrb[0].mxu0
      %v2767 = vpop.f32.mrb[0].mxu0
      %v2768 = vadd.f32 %v1443, %v2767
      %v2769 = vpop.f32.mrb[0].mxu0
      %2770 = vmatprep.mubr.bf16.mxu0 0
      %2771 = vmatmul.mubr.bf16.gmra.mrb[0].mxu0 %v2681
      %v2772 = vpop.f32.mrb[0].mxu0
      %v2773 = vadd.f32 %v1443, %v2772
      %v2774 = vpop.f32.mrb[0].mxu0
      %v2775 = vpop.f32.mrb[0].mxu0
      %v2776 = vadd.f32 %v1443, %v2775
      %v2777 = vpop.f32.mrb[0].mxu0
      %2778 = vmatprep.mubr.bf16.mxu0 0
      %2779 = vmatmul.mubr.bf16.gmra.mrb[0].mxu0 %v2684
      %v2780 = vpop.f32.mrb[0].mxu0
      %v2781 = vadd.f32 %v1443, %v2780
      %v2782 = vpop.f32.mrb[0].mxu0
      %v2783 = vpop.f32.mrb[0].mxu0
      %v2784 = vadd.f32 %v1443, %v2783
      %v2785 = vpop.f32.mrb[0].mxu0
      %2786 = vmatprep.mubr.bf16.mxu0 0
      %2787 = vmatmul.mubr.bf16.gmra.mrb[0].mxu0 %v2687
      %v2788 = vpop.f32.mrb[0].mxu0
      %v2789 = vadd.f32 %v1443, %v2788
      %v2790 = vpop.f32.mrb[0].mxu0
      %v2791 = vpop.f32.mrb[0].mxu0
      %v2792 = vadd.f32 %v1443, %v2791
      %v2793 = vpop.f32.mrb[0].mxu0
      %2794 = vmatprep.mubr.bf16.mxu0 0
      %2795 = vmatmul.mubr.bf16.gmra.mrb[0].mxu0 %v2690
      %v2796 = vpop.f32.mrb[0].mxu0
      %v2797 = vadd.f32 %v1443, %v2796
      %v2798 = vpop.f32.mrb[0].mxu0
      %v2799 = vpop.f32.mrb[0].mxu0
      %v2800 = vadd.f32 %v1443, %v2799
      %v2801 = vpop.f32.mrb[0].mxu0
      %2802 = vmatprep.mubr.bf16.mxu0 0
      %2803 = vmatmul.mubr.bf16.gmra.mrb[0].mxu0 %v2693
      %v2804 = vpop.f32.mrb[0].mxu0
      %v2805 = vadd.f32 %v1443, %v2804
      %v2806 = vpop.f32.mrb[0].mxu0
      %v2807 = vpop.f32.mrb[0].mxu0
      %v2808 = vadd.f32 %v1443, %v2807
      %v2809 = vpop.f32.mrb[0].mxu0
      %2810 = vmatprep.mubr.bf16.mxu0 0
      %2811 = vmatmul.mubr.bf16.gmra.mrb[0].mxu0 %v2696
      %v2812 = vpop.f32.mrb[0].mxu0
      %v2813 = vadd.f32 %v1443, %v2812
      %v2814 = vpop.f32.mrb[0].mxu0
      %v2815 = vpop.f32.mrb[0].mxu0
      %v2816 = vadd.f32 %v1443, %v2815
      %v2817 = vpop.f32.mrb[0].mxu0
      %2818 = vmatprep.mubr.bf16.mxu0 0
      %2819 = vmatmul.mubr.bf16.gmra.mrb[0].mxu0 %v2699
      %v2820 = vpop.f32.mrb[0].mxu0
      %v2821 = vadd.f32 %v1443, %v2820
      %v2822 = vpop.f32.mrb[0].mxu0
      %v2823 = vpop.f32.mrb[0].mxu0
      %v2824 = vadd.f32 %v1443, %v2823
      %v2825 = vpop.f32.mrb[0].mxu0
      %2826 = vmatprep.mubr.bf16.mxu0 0
      %2827 = vmatmul.mubr.bf16.gmra.mrb[0].mxu0 %v2702
      %v2828 = vpop.f32.mrb[0].mxu0
      %v2829 = vadd.f32 %v1443, %v2828
      %v2830 = vpop.f32.mrb[0].mxu0
      %v2831 = vpop.f32.mrb[0].mxu0
      %v2832 = vadd.f32 %v1443, %v2831
      %v2833 = vpop.f32.mrb[0].mxu0
      %2834 = vmatprep.mubr.bf16.mxu0 0
      %2835 = vmatmul.mubr.bf16.gmra.mrb[0].mxu0 %v2705
      %v2836 = vpop.f32.mrb[0].mxu0
      %v2837 = vadd.f32 %v1443, %v2836
      %v2838 = vpop.f32.mrb[0].mxu0
      %v2839 = vpop.f32.mrb[0].mxu0
      %v2840 = vadd.f32 %v1443, %v2839
      %v2841 = vpop.f32.mrb[0].mxu0
      %2842 = vmatprep.mubr.bf16.mxu0 0
      %2843 = vmatmul.mubr.bf16.gmra.mrb[0].mxu0 %v2708
      %v2844 = vpop.f32.mrb[0].mxu0
      %v2845 = vadd.f32 %v1443, %v2844
      %v2846 = vpop.f32.mrb[0].mxu0
      %v2847 = vpop.f32.mrb[0].mxu0
      %v2848 = vadd.f32 %v1443, %v2847
      %v2849 = vpop.f32.mrb[0].mxu0
      %2850 = vmatprep.mubr.bf16.mxu0 0
      %2851 = vmatmul.mubr.bf16.gmra.mrb[0].mxu0 %v2711
      %v2852 = vpop.f32.mrb[0].mxu0
      %v2853 = vadd.f32 %v1443, %v2852
      %v2854 = vpop.f32.mrb[0].mxu0
      %v2855 = vpop.f32.mrb[0].mxu0
      %v2856 = vadd.f32 %v1443, %v2855
      %v2857 = vpop.f32.mrb[0].mxu0
      %2858 = vmatprep.mubr.bf16.mxu0 0
      %2859 = vmatmul.mubr.bf16.gmra.mrb[0].mxu0 %v2714
      %v2860 = vpop.f32.mrb[0].mxu0
      %v2861 = vadd.f32 %v1443, %v2860
      %v2862 = vpop.f32.mrb[0].mxu0
      %v2863 = vpop.f32.mrb[0].mxu0
      %v2864 = vadd.f32 %v1443, %v2863
      %v2865 = vpop.f32.mrb[0].mxu0
      %2866 = vmatprep.mubr.bf16.mxu0 0
      %2867 = vmatmul.mubr.bf16.gmra.mrb[0].mxu0 %v2717
      %v2868 = vpop.f32.mrb[0].mxu0
      %v2869 = vadd.f32 %v1443, %v2868
      %v2870 = vpop.f32.mrb[0].mxu0
      %v2871 = vpop.f32.mrb[0].mxu0
      %v2872 = vadd.f32 %v1443, %v2871
      %v2873 = vpop.f32.mrb[0].mxu0
      %2874 = vmatprep.mubr.bf16.mxu0 0
      %2875 = vmatmul.mubr.bf16.gmra.mrb[0].mxu0 %v2720
      %v2876 = vpop.f32.mrb[0].mxu0
      %v2877 = vadd.f32 %v1443, %v2876
      %v2878 = vpop.f32.mrb[0].mxu0
      %v2879 = vpop.f32.mrb[0].mxu0
      %v2880 = vadd.f32 %v1443, %v2879
      %v2881 = vpop.f32.mrb[0].mxu0
      %2882 = vdwg.mxu0
      %v2883 = vmax.f32 %v2757, 0.0
      %v2884 = vmax.f32 %v2760, 0.0
      %v2885 = vmax.f32 %v2765, 0.0
      %v2886 = vmax.f32 %v2768, 0.0
      %v2887 = vmax.f32 %v2773, 0.0
      %v2888 = vmax.f32 %v2776, 0.0
      %v2889 = vmax.f32 %v2781, 0.0
      %v2890 = vmax.f32 %v2784, 0.0
      %v2891 = vmax.f32 %v2789, 0.0
      %v2892 = vmax.f32 %v2792, 0.0
      %v2893 = vmax.f32 %v2797, 0.0
      %v2894 = vmax.f32 %v2800, 0.0
      %v2895 = vmax.f32 %v2805, 0.0
      %v2896 = vmax.f32 %v2808, 0.0
      %v2897 = vmax.f32 %v2813, 0.0
      %v2898 = vmax.f32 %v2816, 0.0
      %v2899 = vmax.f32 %v2821, 0.0
      %v2900 = vmax.f32 %v2824, 0.0
      %v2901 = vmax.f32 %v2829, 0.0
      %v2902 = vmax.f32 %v2832, 0.0
      %v2903 = vmax.f32 %v2837, 0.0
      %v2904 = vmax.f32 %v2840, 0.0
      %v2905 = vmax.f32 %v2845, 0.0
      %v2906 = vmax.f32 %v2848, 0.0
      %v2907 = vmax.f32 %v2853, 0.0
      %v2908 = vmax.f32 %v2856, 0.0
      %v2909 = vmax.f32 %v2861, 0.0
      %v2910 = vmax.f32 %v2864, 0.0
      %v2911 = vmax.f32 %v2869, 0.0
      %v2912 = vmax.f32 %v2872, 0.0
      %v2913 = vmax.f32 %v2877, 0.0
      %v2914 = vmax.f32 %v2880, 0.0
      %2915 = vst [vmem:[%s278 + $0x8] sm:$0xff] %v2883
      %2916 = vst [vmem:[%s278 + $0x18] sm:$0xff] %v2884
      %2917 = vst [vmem:[%s278 + $0x48] sm:$0xff] %v2885
      %2918 = vst [vmem:[%s278 + $0x58] sm:$0xff] %v2886
      %2919 = vst [vmem:[%s278 + $0x88] sm:$0xff] %v2887
      %2920 = vst [vmem:[%s278 + $0x98] sm:$0xff] %v2888
      %2921 = vst [vmem:[%s278 + $0xc8] sm:$0xff] %v2889
      %2922 = vst [vmem:[%s278 + $0xd8] sm:$0xff] %v2890
      %2923 = vst [vmem:[%s278 + $0x108] sm:$0xff] %v2891
      %2924 = vst [vmem:[%s278 + $0x118] sm:$0xff] %v2892
      %2925 = vst [vmem:[%s278 + $0x148] sm:$0xff] %v2893
      %2926 = vst [vmem:[%s278 + $0x158] sm:$0xff] %v2894
      %2927 = vst [vmem:[%s278 + $0x188] sm:$0xff] %v2895
      %2928 = vst [vmem:[%s278 + $0x198] sm:$0xff] %v2896
      %2929 = vst [vmem:[%s278 + $0x1c8] sm:$0xff] %v2897
      %2930 = vst [vmem:[%s278 + $0x1d8] sm:$0xff] %v2898
      %2931 = vst [vmem:[%s278 + $0x208] sm:$0xff] %v2899
      %2932 = vst [vmem:[%s278 + $0x218] sm:$0xff] %v2900
      %2933 = vst [vmem:[%s278 + $0x248] sm:$0xff] %v2901
      %2934 = vst [vmem:[%s278 + $0x258] sm:$0xff] %v2902
      %2935 = vst [vmem:[%s278 + $0x288] sm:$0xff] %v2903
      %2936 = vst [vmem:[%s278 + $0x298] sm:$0xff] %v2904
      %2937 = vst [vmem:[%s278 + $0x2c8] sm:$0xff] %v2905
      %2938 = vst [vmem:[%s278 + $0x2d8] sm:$0xff] %v2906
      %2939 = vst [vmem:[%s278 + $0x308] sm:$0xff] %v2907
      %2940 = vst [vmem:[%s278 + $0x318] sm:$0xff] %v2908
      %2941 = vst [vmem:[%s278 + $0x348] sm:$0xff] %v2909
      %2942 = vst [vmem:[%s278 + $0x358] sm:$0xff] %v2910
      %2943 = vst [vmem:[%s278 + $0x388] sm:$0xff] %v2911
      %2944 = vst [vmem:[%s278 + $0x398] sm:$0xff] %v2912
      %2945 = vst [vmem:[%s278 + $0x3c8] sm:$0xff] %v2913
      %2946 = vst [vmem:[%s278 + $0x3d8] sm:$0xff] %v2914
      %s2947 = scalar_lea.vmem [#allocation2], 12
      %v2948 = vld [vmem:[%s2947] sm:$0xf]
      %v2949 = vld [vmem:[%s2947 + $0x4] sm:$0xf]
      %v2950 = vld [vmem:[%s2947 + $0xc] sm:$0xf]
      %v2951 = vld [vmem:[%s2947 + $0x10] sm:$0xf]
      %v2952 = vld [vmem:[%s2947 + $0x18] sm:$0xf]
      %v2953 = vld [vmem:[%s2947 + $0x1c] sm:$0xf]
      %v2954 = vld [vmem:[%s2947 + $0x24] sm:$0xf]
      %v2955 = vld [vmem:[%s2947 + $0x28] sm:$0xf]
      %v2956 = vld [vmem:[%s2947 + $0x30] sm:$0xf]
      %v2957 = vld [vmem:[%s2947 + $0x34] sm:$0xf]
      %v2958 = vld [vmem:[%s2947 + $0x3c] sm:$0xf]
      %v2959 = vld [vmem:[%s2947 + $0x40] sm:$0xf]
      %v2960 = vld [vmem:[%s2947 + $0x48] sm:$0xf]
      %v2961 = vld [vmem:[%s2947 + $0x4c] sm:$0xf]
      %v2962 = vld [vmem:[%s2947 + $0x54] sm:$0xf]
      %v2963 = vld [vmem:[%s2947 + $0x58] sm:$0xf]
      %v2964 = vld [vmem:[%s2947 + $0x60] sm:$0xf]
      %v2965 = vld [vmem:[%s2947 + $0x64] sm:$0xf]
      %v2966 = vld [vmem:[%s2947 + $0x6c] sm:$0xf]
      %v2967 = vld [vmem:[%s2947 + $0x70] sm:$0xf]
      %v2968 = vld [vmem:[%s2947 + $0x78] sm:$0xf]
      %v2969 = vld [vmem:[%s2947 + $0x7c] sm:$0xf]
      %v2970 = vld [vmem:[%s2947 + $0x84] sm:$0xf]
      %v2971 = vld [vmem:[%s2947 + $0x88] sm:$0xf]
      %v2972 = vld [vmem:[%s2947 + $0x90] sm:$0xf]
      %v2973 = vld [vmem:[%s2947 + $0x94] sm:$0xf]
      %v2974 = vld [vmem:[%s2947 + $0x9c] sm:$0xf]
      %v2975 = vld [vmem:[%s2947 + $0xa0] sm:$0xf]
      %v2976 = vld [vmem:[%s2947 + $0xa8] sm:$0xf]
      %v2977 = vld [vmem:[%s2947 + $0xac] sm:$0xf]
      %v2978 = vld [vmem:[%s2947 + $0xb4] sm:$0xf]
      %v2979 = vld [vmem:[%s2947 + $0xb8] sm:$0xf]
      %v2980 = vld [vmem:[#allocation2] sm:$0xf]
      %v2981 = vld [vmem:[#allocation2 + $0x4] sm:$0xf]
      %v2982 = vld [vmem:[#allocation2 + $0xc] sm:$0xf]
      %v2983 = vld [vmem:[#allocation2 + $0x10] sm:$0xf]
      %v2984 = vld [vmem:[#allocation2 + $0x18] sm:$0xf]
      %v2985 = vld [vmem:[#allocation2 + $0x1c] sm:$0xf]
      %v2986 = vld [vmem:[#allocation2 + $0x24] sm:$0xf]
      %v2987 = vld [vmem:[#allocation2 + $0x28] sm:$0xf]
      %v2988 = vld [vmem:[#allocation2 + $0x30] sm:$0xf]
      %v2989 = vld [vmem:[#allocation2 + $0x34] sm:$0xf]
      %v2990 = vld [vmem:[#allocation2 + $0x3c] sm:$0xf]
      %v2991 = vld [vmem:[#allocation2 + $0x40] sm:$0xf]
      %v2992 = vld [vmem:[#allocation2 + $0x48] sm:$0xf]
      %v2993 = vld [vmem:[#allocation2 + $0x4c] sm:$0xf]
      %v2994 = vld [vmem:[#allocation2 + $0x54] sm:$0xf]
      %v2995 = vld [vmem:[#allocation2 + $0x58] sm:$0xf]
      %v2996 = vld [vmem:[#allocation2 + $0x60] sm:$0xf]
      %v2997 = vld [vmem:[#allocation2 + $0x64] sm:$0xf]
      %v2998 = vld [vmem:[#allocation2 + $0x6c] sm:$0xf]
      %v2999 = vld [vmem:[#allocation2 + $0x70] sm:$0xf]
      %v3000 = vld [vmem:[#allocation2 + $0x78] sm:$0xf]
      %v3001 = vld [vmem:[#allocation2 + $0x7c] sm:$0xf]
      %v3002 = vld [vmem:[#allocation2 + $0x84] sm:$0xf]
      %v3003 = vld [vmem:[#allocation2 + $0x88] sm:$0xf]
      %v3004 = vld [vmem:[#allocation2 + $0x90] sm:$0xf]
      %v3005 = vld [vmem:[#allocation2 + $0x94] sm:$0xf]
      %v3006 = vld [vmem:[#allocation2 + $0x9c] sm:$0xf]
      %v3007 = vld [vmem:[#allocation2 + $0xa0] sm:$0xf]
      %v3008 = vld [vmem:[#allocation2 + $0xa8] sm:$0xf]
      %v3009 = vld [vmem:[#allocation2 + $0xac] sm:$0xf]
      %v3010 = vld [vmem:[#allocation2 + $0xb4] sm:$0xf]
      %v3011 = vld [vmem:[#allocation2 + $0xb8] sm:$0xf]
      %v3044 = vunpack.c.l.b16 %v2948
      %v3045 = vunpack.c.l.b16 %v2949
      %v3046 = vunpack.c.l.b16 %v2950
      %v3047 = vunpack.c.l.b16 %v2951
      %v3048 = vunpack.c.l.b16 %v2952
      %v3049 = vunpack.c.l.b16 %v2953
      %v3050 = vunpack.c.l.b16 %v2954
      %v3051 = vunpack.c.l.b16 %v2955
      %v3052 = vunpack.c.l.b16 %v2956
      %v3053 = vunpack.c.l.b16 %v2957
      %v3054 = vunpack.c.l.b16 %v2958
      %v3055 = vunpack.c.l.b16 %v2959
      %v3056 = vunpack.c.l.b16 %v2960
      %v3057 = vunpack.c.l.b16 %v2961
      %v3058 = vunpack.c.l.b16 %v2962
      %v3059 = vunpack.c.l.b16 %v2963
      %v3060 = vunpack.c.l.b16 %v2964
      %v3061 = vunpack.c.l.b16 %v2965
      %v3062 = vunpack.c.l.b16 %v2966
      %v3063 = vunpack.c.l.b16 %v2967
      %v3064 = vunpack.c.l.b16 %v2968
      %v3065 = vunpack.c.l.b16 %v2969
      %v3066 = vunpack.c.l.b16 %v2970
      %v3067 = vunpack.c.l.b16 %v2971
      %v3068 = vunpack.c.l.b16 %v2972
      %v3069 = vunpack.c.l.b16 %v2973
      %v3070 = vunpack.c.l.b16 %v2974
      %v3071 = vunpack.c.l.b16 %v2975
      %v3072 = vunpack.c.l.b16 %v2976
      %v3073 = vunpack.c.l.b16 %v2977
      %v3074 = vunpack.c.l.b16 %v2978
      %v3075 = vunpack.c.l.b16 %v2979
      %v3076 = vpack.c.b16 %v3045, %v3044
      %v3077 = vpack.c.b16 %v3047, %v3046
      %v3078 = vpack.c.b16 %v3049, %v3048
      %v3079 = vpack.c.b16 %v3051, %v3050
      %v3080 = vpack.c.b16 %v3053, %v3052
      %v3081 = vpack.c.b16 %v3055, %v3054
      %v3082 = vpack.c.b16 %v3057, %v3056
      %v3083 = vpack.c.b16 %v3059, %v3058
      %v3084 = vpack.c.b16 %v3061, %v3060
      %v3085 = vpack.c.b16 %v3063, %v3062
      %v3086 = vpack.c.b16 %v3065, %v3064
      %v3087 = vpack.c.b16 %v3067, %v3066
      %v3088 = vpack.c.b16 %v3069, %v3068
      %v3089 = vpack.c.b16 %v3071, %v3070
      %v3090 = vpack.c.b16 %v3073, %v3072
      %v3091 = vpack.c.b16 %v3075, %v3074
      %v3124 = vunpack.c.l.b16 %v2980
      %v3125 = vunpack.c.l.b16 %v2981
      %v3126 = vunpack.c.l.b16 %v2982
      %v3127 = vunpack.c.l.b16 %v2983
      %v3128 = vunpack.c.l.b16 %v2984
      %v3129 = vunpack.c.l.b16 %v2985
      %v3130 = vunpack.c.l.b16 %v2986
      %v3131 = vunpack.c.l.b16 %v2987
      %v3132 = vunpack.c.l.b16 %v2988
      %v3133 = vunpack.c.l.b16 %v2989
      %v3134 = vunpack.c.l.b16 %v2990
      %v3135 = vunpack.c.l.b16 %v2991
      %v3136 = vunpack.c.l.b16 %v2992
      %v3137 = vunpack.c.l.b16 %v2993
      %v3138 = vunpack.c.l.b16 %v2994
      %v3139 = vunpack.c.l.b16 %v2995
      %v3140 = vunpack.c.l.b16 %v2996
      %v3141 = vunpack.c.l.b16 %v2997
      %v3142 = vunpack.c.l.b16 %v2998
      %v3143 = vunpack.c.l.b16 %v2999
      %v3144 = vunpack.c.l.b16 %v3000
      %v3145 = vunpack.c.l.b16 %v3001
      %v3146 = vunpack.c.l.b16 %v3002
      %v3147 = vunpack.c.l.b16 %v3003
      %v3148 = vunpack.c.l.b16 %v3004
      %v3149 = vunpack.c.l.b16 %v3005
      %v3150 = vunpack.c.l.b16 %v3006
      %v3151 = vunpack.c.l.b16 %v3007
      %v3152 = vunpack.c.l.b16 %v3008
      %v3153 = vunpack.c.l.b16 %v3009
      %v3154 = vunpack.c.l.b16 %v3010
      %v3155 = vunpack.c.l.b16 %v3011
      %v3156 = vpack.c.b16 %v3125, %v3124
      %v3157 = vpack.c.b16 %v3127, %v3126
      %v3158 = vpack.c.b16 %v3129, %v3128
      %v3159 = vpack.c.b16 %v3131, %v3130
      %v3160 = vpack.c.b16 %v3133, %v3132
      %v3161 = vpack.c.b16 %v3135, %v3134
      %v3162 = vpack.c.b16 %v3137, %v3136
      %v3163 = vpack.c.b16 %v3139, %v3138
      %v3164 = vpack.c.b16 %v3141, %v3140
      %v3165 = vpack.c.b16 %v3143, %v3142
      %v3166 = vpack.c.b16 %v3145, %v3144
      %v3167 = vpack.c.b16 %v3147, %v3146
      %v3168 = vpack.c.b16 %v3149, %v3148
      %v3169 = vpack.c.b16 %v3151, %v3150
      %v3170 = vpack.c.b16 %v3153, %v3152
      %v3171 = vpack.c.b16 %v3155, %v3154
      %3172 = vrot.lane.b32.xlu0 %v3156, 64
      %v3173 = vpop.permute.xlu0 %3172
      %3174 = vrot.lane.b32.xlu0 %v3157, 64
      %v3175 = vpop.permute.xlu0 %3174
      %3176 = vrot.lane.b32.xlu0 %v3158, 64
      %v3177 = vpop.permute.xlu0 %3176
      %3178 = vrot.lane.b32.xlu0 %v3159, 64
      %v3179 = vpop.permute.xlu0 %3178
      %3180 = vrot.lane.b32.xlu0 %v3160, 64
      %v3181 = vpop.permute.xlu0 %3180
      %3182 = vrot.lane.b32.xlu0 %v3161, 64
      %v3183 = vpop.permute.xlu0 %3182
      %3184 = vrot.lane.b32.xlu0 %v3162, 64
      %v3185 = vpop.permute.xlu0 %3184
      %3186 = vrot.lane.b32.xlu0 %v3163, 64
      %v3187 = vpop.permute.xlu0 %3186
      %3188 = vrot.lane.b32.xlu0 %v3164, 64
      %v3189 = vpop.permute.xlu0 %3188
      %3190 = vrot.lane.b32.xlu0 %v3165, 64
      %v3191 = vpop.permute.xlu0 %3190
      %3192 = vrot.lane.b32.xlu0 %v3166, 64
      %v3193 = vpop.permute.xlu0 %3192
      %3194 = vrot.lane.b32.xlu0 %v3167, 64
      %v3195 = vpop.permute.xlu0 %3194
      %3196 = vrot.lane.b32.xlu0 %v3168, 64
      %v3197 = vpop.permute.xlu0 %3196
      %3198 = vrot.lane.b32.xlu0 %v3169, 64
      %v3199 = vpop.permute.xlu0 %3198
      %3200 = vrot.lane.b32.xlu0 %v3170, 64
      %v3201 = vpop.permute.xlu0 %3200
      %3202 = vrot.lane.b32.xlu0 %v3171, 64
      %v3203 = vpop.permute.xlu0 %3202
      %v3206 = vsel %vm1181, %v3076, %v3173
      %v3210 = vsel %vm1181, %v3077, %v3175
      %v3214 = vsel %vm1181, %v3078, %v3177
      %v3218 = vsel %vm1181, %v3079, %v3179
      %v3222 = vsel %vm1181, %v3080, %v3181
      %v3226 = vsel %vm1181, %v3081, %v3183
      %v3230 = vsel %vm1181, %v3082, %v3185
      %v3234 = vsel %vm1181, %v3083, %v3187
      %v3238 = vsel %vm1181, %v3084, %v3189
      %v3242 = vsel %vm1181, %v3085, %v3191
      %v3246 = vsel %vm1181, %v3086, %v3193
      %v3250 = vsel %vm1181, %v3087, %v3195
      %v3254 = vsel %vm1181, %v3088, %v3197
      %v3258 = vsel %vm1181, %v3089, %v3199
      %v3262 = vsel %vm1181, %v3090, %v3201
      %v3266 = vsel %vm1181, %v3091, %v3203
      %v3268 = vld [vmem:[%s3 + $0x60] sm:$0xf]
      %v3269 = vld [vmem:[%s3 + $0x64] sm:$0xf]
      %v3270 = vld [vmem:[%s3 + $0x68] sm:$0xf]
      %v3271 = vld [vmem:[%s3 + $0x6c] sm:$0xf]
      %v3272 = vld [vmem:[%s3 + $0x70] sm:$0xf]
      %v3273 = vld [vmem:[%s3 + $0x74] sm:$0xf]
      %v3274 = vld [vmem:[%s3 + $0x78] sm:$0xf]
      %v3275 = vld [vmem:[%s3 + $0x7c] sm:$0xf]
      %v3276 = vld [vmem:[%s3 + $0x80] sm:$0xf]
      %v3277 = vld [vmem:[%s3 + $0x84] sm:$0xf]
      %v3278 = vld [vmem:[%s3 + $0x88] sm:$0xf]
      %v3279 = vld [vmem:[%s3 + $0x8c] sm:$0xf]
      %v3280 = vld [vmem:[%s3 + $0x90] sm:$0xf]
      %v3281 = vld [vmem:[%s3 + $0x94] sm:$0xf]
      %v3282 = vld [vmem:[%s3 + $0x98] sm:$0xf]
      %v3283 = vld [vmem:[%s3 + $0x9c] sm:$0xf]
      %v3300 = vunpack.c.l.b16 %v3268
      %v3301 = vunpack.c.l.b16 %v3269
      %v3302 = vunpack.c.l.b16 %v3270
      %v3303 = vunpack.c.l.b16 %v3271
      %v3304 = vunpack.c.l.b16 %v3272
      %v3305 = vunpack.c.l.b16 %v3273
      %v3306 = vunpack.c.l.b16 %v3274
      %v3307 = vunpack.c.l.b16 %v3275
      %v3308 = vunpack.c.l.b16 %v3276
      %v3309 = vunpack.c.l.b16 %v3277
      %v3310 = vunpack.c.l.b16 %v3278
      %v3311 = vunpack.c.l.b16 %v3279
      %v3312 = vunpack.c.l.b16 %v3280
      %v3313 = vunpack.c.l.b16 %v3281
      %v3314 = vunpack.c.l.b16 %v3282
      %v3315 = vunpack.c.l.b16 %v3283
      %v3316 = vpack.c.b16 %v3301, %v3300
      %v3317 = vpack.c.b16 %v3303, %v3302
      %v3318 = vpack.c.b16 %v3305, %v3304
      %v3319 = vpack.c.b16 %v3307, %v3306
      %v3320 = vpack.c.b16 %v3309, %v3308
      %v3321 = vpack.c.b16 %v3311, %v3310
      %v3322 = vpack.c.b16 %v3313, %v3312
      %v3323 = vpack.c.b16 %v3315, %v3314
      %3332 = vmatprep.subr.bf16.mxu0 0
      %3333 = vmatpush1.bf16.msra.mxu0 %v3316
      %3334 = vmatprep.subr.bf16.mxu0 0
      %3335 = vmatpush1.bf16.msra.mxu0 %v3317
      %3336 = vmatprep.subr.bf16.mxu0 0
      %3337 = vmatpush1.bf16.msra.mxu0 %v3318
      %3338 = vmatprep.subr.bf16.mxu0 0
      %3339 = vmatpush1.bf16.msra.mxu0 %v3319
      %3340 = vmatprep.subr.bf16.mxu0 0
      %3341 = vmatpush1.bf16.msra.mxu0 %v3320
      %3342 = vmatprep.subr.bf16.mxu0 0
      %3343 = vmatpush1.bf16.msra.mxu0 %v3321
      %3344 = vmatprep.subr.bf16.mxu0 0
      %3345 = vmatpush1.bf16.msra.mxu0 %v3322
      %3346 = vmatprep.subr.bf16.mxu0 0
      %3347 = vmatpush1.bf16.msra.mxu0 %v3323
      %3348 = vmatprep.subr.bf16.mxu0 0
      %3349 = vmatpush1.bf16.msra.mxu0 0
      %3350 = vmatprep.subr.bf16.mxu0 0
      %3351 = vmatpush1.bf16.msra.mxu0 0
      %3352 = vmatprep.subr.bf16.mxu0 0
      %3353 = vmatpush1.bf16.msra.mxu0 0
      %3354 = vmatprep.subr.bf16.mxu0 0
      %3355 = vmatpush1.bf16.msra.mxu0 0
      %3356 = vmatprep.subr.bf16.mxu0 0
      %3357 = vmatpush1.bf16.msra.mxu0 0
      %3358 = vmatprep.subr.bf16.mxu0 0
      %3359 = vmatpush1.bf16.msra.mxu0 0
      %3360 = vmatprep.subr.bf16.mxu0 0
      %3361 = vmatpush1.bf16.msra.mxu0 0
      %3362 = vmatprep.subr.bf16.mxu0 0
      %3363 = vmatpush1.bf16.msra.mxu0 0
      %3364 = vmatprep.mubr.bf16.mxu0 0
      %3365 = vmatmul.mubr.bf16.gmra.mrb[0].mxu0 %v3206
      %v3366 = vpop.f32.mrb[0].mxu0
      %v3367 = vadd.f32 %v1075, %v3366
      %v3368 = vpop.f32.mrb[0].mxu0
      %v3369 = vpop.f32.mrb[0].mxu0
      %v3370 = vadd.f32 %v1075, %v3369
      %v3371 = vpop.f32.mrb[0].mxu0
      %3372 = vmatprep.mubr.bf16.mxu0 0
      %3373 = vmatmul.mubr.bf16.gmra.mrb[0].mxu0 %v3210
      %v3374 = vpop.f32.mrb[0].mxu0
      %v3375 = vadd.f32 %v1075, %v3374
      %v3376 = vpop.f32.mrb[0].mxu0
      %v3377 = vpop.f32.mrb[0].mxu0
      %v3378 = vadd.f32 %v1075, %v3377
      %v3379 = vpop.f32.mrb[0].mxu0
      %3380 = vmatprep.mubr.bf16.mxu0 0
      %3381 = vmatmul.mubr.bf16.gmra.mrb[0].mxu0 %v3214
      %v3382 = vpop.f32.mrb[0].mxu0
      %v3383 = vadd.f32 %v1075, %v3382
      %v3384 = vpop.f32.mrb[0].mxu0
      %v3385 = vpop.f32.mrb[0].mxu0
      %v3386 = vadd.f32 %v1075, %v3385
      %v3387 = vpop.f32.mrb[0].mxu0
      %3388 = vmatprep.mubr.bf16.mxu0 0
      %3389 = vmatmul.mubr.bf16.gmra.mrb[0].mxu0 %v3218
      %v3390 = vpop.f32.mrb[0].mxu0
      %v3391 = vadd.f32 %v1075, %v3390
      %v3392 = vpop.f32.mrb[0].mxu0
      %v3393 = vpop.f32.mrb[0].mxu0
      %v3394 = vadd.f32 %v1075, %v3393
      %v3395 = vpop.f32.mrb[0].mxu0
      %3396 = vmatprep.mubr.bf16.mxu0 0
      %3397 = vmatmul.mubr.bf16.gmra.mrb[0].mxu0 %v3222
      %v3398 = vpop.f32.mrb[0].mxu0
      %v3399 = vadd.f32 %v1075, %v3398
      %v3400 = vpop.f32.mrb[0].mxu0
      %v3401 = vpop.f32.mrb[0].mxu0
      %v3402 = vadd.f32 %v1075, %v3401
      %v3403 = vpop.f32.mrb[0].mxu0
      %3404 = vmatprep.mubr.bf16.mxu0 0
      %3405 = vmatmul.mubr.bf16.gmra.mrb[0].mxu0 %v3226
      %v3406 = vpop.f32.mrb[0].mxu0
      %v3407 = vadd.f32 %v1075, %v3406
      %v3408 = vpop.f32.mrb[0].mxu0
      %v3409 = vpop.f32.mrb[0].mxu0
      %v3410 = vadd.f32 %v1075, %v3409
      %v3411 = vpop.f32.mrb[0].mxu0
      %3412 = vmatprep.mubr.bf16.mxu0 0
      %3413 = vmatmul.mubr.bf16.gmra.mrb[0].mxu0 %v3230
      %v3414 = vpop.f32.mrb[0].mxu0
      %v3415 = vadd.f32 %v1075, %v3414
      %v3416 = vpop.f32.mrb[0].mxu0
      %v3417 = vpop.f32.mrb[0].mxu0
      %v3418 = vadd.f32 %v1075, %v3417
      %v3419 = vpop.f32.mrb[0].mxu0
      %3420 = vmatprep.mubr.bf16.mxu0 0
      %3421 = vmatmul.mubr.bf16.gmra.mrb[0].mxu0 %v3234
      %v3422 = vpop.f32.mrb[0].mxu0
      %v3423 = vadd.f32 %v1075, %v3422
      %v3424 = vpop.f32.mrb[0].mxu0
      %v3425 = vpop.f32.mrb[0].mxu0
      %v3426 = vadd.f32 %v1075, %v3425
      %v3427 = vpop.f32.mrb[0].mxu0
      %3428 = vmatprep.mubr.bf16.mxu0 0
      %3429 = vmatmul.mubr.bf16.gmra.mrb[0].mxu0 %v3238
      %v3430 = vpop.f32.mrb[0].mxu0
      %v3431 = vadd.f32 %v1075, %v3430
      %v3432 = vpop.f32.mrb[0].mxu0
      %v3433 = vpop.f32.mrb[0].mxu0
      %v3434 = vadd.f32 %v1075, %v3433
      %v3435 = vpop.f32.mrb[0].mxu0
      %3436 = vmatprep.mubr.bf16.mxu0 0
      %3437 = vmatmul.mubr.bf16.gmra.mrb[0].mxu0 %v3242
      %v3438 = vpop.f32.mrb[0].mxu0
      %v3439 = vadd.f32 %v1075, %v3438
      %v3440 = vpop.f32.mrb[0].mxu0
      %v3441 = vpop.f32.mrb[0].mxu0
      %v3442 = vadd.f32 %v1075, %v3441
      %v3443 = vpop.f32.mrb[0].mxu0
      %3444 = vmatprep.mubr.bf16.mxu0 0
      %3445 = vmatmul.mubr.bf16.gmra.mrb[0].mxu0 %v3246
      %v3446 = vpop.f32.mrb[0].mxu0
      %v3447 = vadd.f32 %v1075, %v3446
      %v3448 = vpop.f32.mrb[0].mxu0
      %v3449 = vpop.f32.mrb[0].mxu0
      %v3450 = vadd.f32 %v1075, %v3449
      %v3451 = vpop.f32.mrb[0].mxu0
      %3452 = vmatprep.mubr.bf16.mxu0 0
      %3453 = vmatmul.mubr.bf16.gmra.mrb[0].mxu0 %v3250
      %v3454 = vpop.f32.mrb[0].mxu0
      %v3455 = vadd.f32 %v1075, %v3454
      %v3456 = vpop.f32.mrb[0].mxu0
      %v3457 = vpop.f32.mrb[0].mxu0
      %v3458 = vadd.f32 %v1075, %v3457
      %v3459 = vpop.f32.mrb[0].mxu0
      %3460 = vmatprep.mubr.bf16.mxu0 0
      %3461 = vmatmul.mubr.bf16.gmra.mrb[0].mxu0 %v3254
      %v3462 = vpop.f32.mrb[0].mxu0
      %v3463 = vadd.f32 %v1075, %v3462
      %v3464 = vpop.f32.mrb[0].mxu0
      %v3465 = vpop.f32.mrb[0].mxu0
      %v3466 = vadd.f32 %v1075, %v3465
      %v3467 = vpop.f32.mrb[0].mxu0
      %3468 = vmatprep.mubr.bf16.mxu0 0
      %3469 = vmatmul.mubr.bf16.gmra.mrb[0].mxu0 %v3258
      %v3470 = vpop.f32.mrb[0].mxu0
      %v3471 = vadd.f32 %v1075, %v3470
      %v3472 = vpop.f32.mrb[0].mxu0
      %v3473 = vpop.f32.mrb[0].mxu0
      %v3474 = vadd.f32 %v1075, %v3473
      %v3475 = vpop.f32.mrb[0].mxu0
      %3476 = vmatprep.mubr.bf16.mxu0 0
      %3477 = vmatmul.mubr.bf16.gmra.mrb[0].mxu0 %v3262
      %v3478 = vpop.f32.mrb[0].mxu0
      %v3479 = vadd.f32 %v1075, %v3478
      %v3480 = vpop.f32.mrb[0].mxu0
      %v3481 = vpop.f32.mrb[0].mxu0
      %v3482 = vadd.f32 %v1075, %v3481
      %v3483 = vpop.f32.mrb[0].mxu0
      %3484 = vmatprep.mubr.bf16.mxu0 0
      %3485 = vmatmul.mubr.bf16.gmra.mrb[0].mxu0 %v3266
      %v3486 = vpop.f32.mrb[0].mxu0
      %v3487 = vadd.f32 %v1075, %v3486
      %v3488 = vpop.f32.mrb[0].mxu0
      %v3489 = vpop.f32.mrb[0].mxu0
      %v3490 = vadd.f32 %v1075, %v3489
      %v3491 = vpop.f32.mrb[0].mxu0
      %3492 = vdwg.mxu0
      %v3493 = vmax.f32 %v3367, 0.0
      %v3494 = vmax.f32 %v3370, 0.0
      %v3495 = vmax.f32 %v3375, 0.0
      %v3496 = vmax.f32 %v3378, 0.0
      %v3497 = vmax.f32 %v3383, 0.0
      %v3498 = vmax.f32 %v3386, 0.0
      %v3499 = vmax.f32 %v3391, 0.0
      %v3500 = vmax.f32 %v3394, 0.0
      %v3501 = vmax.f32 %v3399, 0.0
      %v3502 = vmax.f32 %v3402, 0.0
      %v3503 = vmax.f32 %v3407, 0.0
      %v3504 = vmax.f32 %v3410, 0.0
      %v3505 = vmax.f32 %v3415, 0.0
      %v3506 = vmax.f32 %v3418, 0.0
      %v3507 = vmax.f32 %v3423, 0.0
      %v3508 = vmax.f32 %v3426, 0.0
      %v3509 = vmax.f32 %v3431, 0.0
      %v3510 = vmax.f32 %v3434, 0.0
      %v3511 = vmax.f32 %v3439, 0.0
      %v3512 = vmax.f32 %v3442, 0.0
      %v3513 = vmax.f32 %v3447, 0.0
      %v3514 = vmax.f32 %v3450, 0.0
      %v3515 = vmax.f32 %v3455, 0.0
      %v3516 = vmax.f32 %v3458, 0.0
      %v3517 = vmax.f32 %v3463, 0.0
      %v3518 = vmax.f32 %v3466, 0.0
      %v3519 = vmax.f32 %v3471, 0.0
      %v3520 = vmax.f32 %v3474, 0.0
      %v3521 = vmax.f32 %v3479, 0.0
      %v3522 = vmax.f32 %v3482, 0.0
      %v3523 = vmax.f32 %v3487, 0.0
      %v3524 = vmax.f32 %v3490, 0.0
      %v3525 = vpack.c.bf16 %v3494, %v3493
      %v3526 = vpack.c.bf16 %v3496, %v3495
      %v3527 = vpack.c.bf16 %v3498, %v3497
      %v3528 = vpack.c.bf16 %v3500, %v3499
      %v3529 = vpack.c.bf16 %v3502, %v3501
      %v3530 = vpack.c.bf16 %v3504, %v3503
      %v3531 = vpack.c.bf16 %v3506, %v3505
      %v3532 = vpack.c.bf16 %v3508, %v3507
      %v3533 = vpack.c.bf16 %v3510, %v3509
      %v3534 = vpack.c.bf16 %v3512, %v3511
      %v3535 = vpack.c.bf16 %v3514, %v3513
      %v3536 = vpack.c.bf16 %v3516, %v3515
      %v3537 = vpack.c.bf16 %v3518, %v3517
      %v3538 = vpack.c.bf16 %v3520, %v3519
      %v3539 = vpack.c.bf16 %v3522, %v3521
      %v3540 = vpack.c.bf16 %v3524, %v3523
      %v3542 = vsel %vm1181, %v3525, 0
      %v3545 = vsel %vm1181, %v3526, 0
      %v3548 = vsel %vm1181, %v3527, 0
      %v3551 = vsel %vm1181, %v3528, 0
      %v3554 = vsel %vm1181, %v3529, 0
      %v3557 = vsel %vm1181, %v3530, 0
      %v3560 = vsel %vm1181, %v3531, 0
      %v3563 = vsel %vm1181, %v3532, 0
      %v3566 = vsel %vm1181, %v3533, 0
      %v3569 = vsel %vm1181, %v3534, 0
      %v3572 = vsel %vm1181, %v3535, 0
      %v3575 = vsel %vm1181, %v3536, 0
      %v3578 = vsel %vm1181, %v3537, 0
      %v3581 = vsel %vm1181, %v3538, 0
      %v3584 = vsel %vm1181, %v3539, 0
      %v3587 = vsel %vm1181, %v3540, 0
      %3589 = vmatprep.subr.bf16.mxu0 0
      %3590 = vmatpush1.bf16.msra.mxu0 %v1461
      %3591 = vmatprep.subr.bf16.mxu0 0
      %3592 = vmatpush1.bf16.msra.mxu0 %v1462
      %3593 = vmatprep.subr.bf16.mxu0 0
      %3594 = vmatpush1.bf16.msra.mxu0 %v1463
      %3595 = vmatprep.subr.bf16.mxu0 0
      %3596 = vmatpush1.bf16.msra.mxu0 %v1464
      %3597 = vmatprep.subr.bf16.mxu0 0
      %3598 = vmatpush1.bf16.msra.mxu0 0
      %3599 = vmatprep.subr.bf16.mxu0 0
      %3600 = vmatpush1.bf16.msra.mxu0 0
      %3601 = vmatprep.subr.bf16.mxu0 0
      %3602 = vmatpush1.bf16.msra.mxu0 0
      %3603 = vmatprep.subr.bf16.mxu0 0
      %3604 = vmatpush1.bf16.msra.mxu0 0
      %3605 = vmatprep.subr.bf16.mxu0 0
      %3606 = vmatpush1.bf16.msra.mxu0 0
      %3607 = vmatprep.subr.bf16.mxu0 0
      %3608 = vmatpush1.bf16.msra.mxu0 0
      %3609 = vmatprep.subr.bf16.mxu0 0
      %3610 = vmatpush1.bf16.msra.mxu0 0
      %3611 = vmatprep.subr.bf16.mxu0 0
      %3612 = vmatpush1.bf16.msra.mxu0 0
      %3613 = vmatprep.subr.bf16.mxu0 0
      %3614 = vmatpush1.bf16.msra.mxu0 0
      %3615 = vmatprep.subr.bf16.mxu0 0
      %3616 = vmatpush1.bf16.msra.mxu0 0
      %3617 = vmatprep.subr.bf16.mxu0 0
      %3618 = vmatpush1.bf16.msra.mxu0 0
      %3619 = vmatprep.subr.bf16.mxu0 0
      %3620 = vmatpush1.bf16.msra.mxu0 0
      %3621 = vmatprep.mubr.bf16.mxu0 0
      %3622 = vmatmul.mubr.bf16.gmra.mrb[0].mxu0 %v3542
      %v3623 = vpop.f32.mrb[0].mxu0
      %v3624 = vadd.f32 %v1443, %v3623
      %v3625 = vpop.f32.mrb[0].mxu0
      %v3626 = vpop.f32.mrb[0].mxu0
      %v3627 = vadd.f32 %v1443, %v3626
      %v3628 = vpop.f32.mrb[0].mxu0
      %3629 = vmatprep.mubr.bf16.mxu0 0
      %3630 = vmatmul.mubr.bf16.gmra.mrb[0].mxu0 %v3545
      %v3631 = vpop.f32.mrb[0].mxu0
      %v3632 = vadd.f32 %v1443, %v3631
      %v3633 = vpop.f32.mrb[0].mxu0
      %v3634 = vpop.f32.mrb[0].mxu0
      %v3635 = vadd.f32 %v1443, %v3634
      %v3636 = vpop.f32.mrb[0].mxu0
      %3637 = vmatprep.mubr.bf16.mxu0 0
      %3638 = vmatmul.mubr.bf16.gmra.mrb[0].mxu0 %v3548
      %v3639 = vpop.f32.mrb[0].mxu0
      %v3640 = vadd.f32 %v1443, %v3639
      %v3641 = vpop.f32.mrb[0].mxu0
      %v3642 = vpop.f32.mrb[0].mxu0
      %v3643 = vadd.f32 %v1443, %v3642
      %v3644 = vpop.f32.mrb[0].mxu0
      %3645 = vmatprep.mubr.bf16.mxu0 0
      %3646 = vmatmul.mubr.bf16.gmra.mrb[0].mxu0 %v3551
      %v3647 = vpop.f32.mrb[0].mxu0
      %v3648 = vadd.f32 %v1443, %v3647
      %v3649 = vpop.f32.mrb[0].mxu0
      %v3650 = vpop.f32.mrb[0].mxu0
      %v3651 = vadd.f32 %v1443, %v3650
      %v3652 = vpop.f32.mrb[0].mxu0
      %3653 = vmatprep.mubr.bf16.mxu0 0
      %3654 = vmatmul.mubr.bf16.gmra.mrb[0].mxu0 %v3554
      %v3655 = vpop.f32.mrb[0].mxu0
      %v3656 = vadd.f32 %v1443, %v3655
      %v3657 = vpop.f32.mrb[0].mxu0
      %v3658 = vpop.f32.mrb[0].mxu0
      %v3659 = vadd.f32 %v1443, %v3658
      %v3660 = vpop.f32.mrb[0].mxu0
      %3661 = vmatprep.mubr.bf16.mxu0 0
      %3662 = vmatmul.mubr.bf16.gmra.mrb[0].mxu0 %v3557
      %v3663 = vpop.f32.mrb[0].mxu0
      %v3664 = vadd.f32 %v1443, %v3663
      %v3665 = vpop.f32.mrb[0].mxu0
      %v3666 = vpop.f32.mrb[0].mxu0
      %v3667 = vadd.f32 %v1443, %v3666
      %v3668 = vpop.f32.mrb[0].mxu0
      %3669 = vmatprep.mubr.bf16.mxu0 0
      %3670 = vmatmul.mubr.bf16.gmra.mrb[0].mxu0 %v3560
      %v3671 = vpop.f32.mrb[0].mxu0
      %v3672 = vadd.f32 %v1443, %v3671
      %v3673 = vpop.f32.mrb[0].mxu0
      %v3674 = vpop.f32.mrb[0].mxu0
      %v3675 = vadd.f32 %v1443, %v3674
      %v3676 = vpop.f32.mrb[0].mxu0
      %3677 = vmatprep.mubr.bf16.mxu0 0
      %3678 = vmatmul.mubr.bf16.gmra.mrb[0].mxu0 %v3563
      %v3679 = vpop.f32.mrb[0].mxu0
      %v3680 = vadd.f32 %v1443, %v3679
      %v3681 = vpop.f32.mrb[0].mxu0
      %v3682 = vpop.f32.mrb[0].mxu0
      %v3683 = vadd.f32 %v1443, %v3682
      %v3684 = vpop.f32.mrb[0].mxu0
      %3685 = vmatprep.mubr.bf16.mxu0 0
      %3686 = vmatmul.mubr.bf16.gmra.mrb[0].mxu0 %v3566
      %v3687 = vpop.f32.mrb[0].mxu0
      %v3688 = vadd.f32 %v1443, %v3687
      %v3689 = vpop.f32.mrb[0].mxu0
      %v3690 = vpop.f32.mrb[0].mxu0
      %v3691 = vadd.f32 %v1443, %v3690
      %v3692 = vpop.f32.mrb[0].mxu0
      %3693 = vmatprep.mubr.bf16.mxu0 0
      %3694 = vmatmul.mubr.bf16.gmra.mrb[0].mxu0 %v3569
      %v3695 = vpop.f32.mrb[0].mxu0
      %v3696 = vadd.f32 %v1443, %v3695
      %v3697 = vpop.f32.mrb[0].mxu0
      %v3698 = vpop.f32.mrb[0].mxu0
      %v3699 = vadd.f32 %v1443, %v3698
      %v3700 = vpop.f32.mrb[0].mxu0
      %3701 = vmatprep.mubr.bf16.mxu0 0
      %3702 = vmatmul.mubr.bf16.gmra.mrb[0].mxu0 %v3572
      %v3703 = vpop.f32.mrb[0].mxu0
      %v3704 = vadd.f32 %v1443, %v3703
      %v3705 = vpop.f32.mrb[0].mxu0
      %v3706 = vpop.f32.mrb[0].mxu0
      %v3707 = vadd.f32 %v1443, %v3706
      %v3708 = vpop.f32.mrb[0].mxu0
      %3709 = vmatprep.mubr.bf16.mxu0 0
      %3710 = vmatmul.mubr.bf16.gmra.mrb[0].mxu0 %v3575
      %v3711 = vpop.f32.mrb[0].mxu0
      %v3712 = vadd.f32 %v1443, %v3711
      %v3713 = vpop.f32.mrb[0].mxu0
      %v3714 = vpop.f32.mrb[0].mxu0
      %v3715 = vadd.f32 %v1443, %v3714
      %v3716 = vpop.f32.mrb[0].mxu0
      %3717 = vmatprep.mubr.bf16.mxu0 0
      %3718 = vmatmul.mubr.bf16.gmra.mrb[0].mxu0 %v3578
      %v3719 = vpop.f32.mrb[0].mxu0
      %v3720 = vadd.f32 %v1443, %v3719
      %v3721 = vpop.f32.mrb[0].mxu0
      %v3722 = vpop.f32.mrb[0].mxu0
      %v3723 = vadd.f32 %v1443, %v3722
      %v3724 = vpop.f32.mrb[0].mxu0
      %3725 = vmatprep.mubr.bf16.mxu0 0
      %3726 = vmatmul.mubr.bf16.gmra.mrb[0].mxu0 %v3581
      %v3727 = vpop.f32.mrb[0].mxu0
      %v3728 = vadd.f32 %v1443, %v3727
      %v3729 = vpop.f32.mrb[0].mxu0
      %v3730 = vpop.f32.mrb[0].mxu0
      %v3731 = vadd.f32 %v1443, %v3730
      %v3732 = vpop.f32.mrb[0].mxu0
      %3733 = vmatprep.mubr.bf16.mxu0 0
      %3734 = vmatmul.mubr.bf16.gmra.mrb[0].mxu0 %v3584
      %v3735 = vpop.f32.mrb[0].mxu0
      %v3736 = vadd.f32 %v1443, %v3735
      %v3737 = vpop.f32.mrb[0].mxu0
      %v3738 = vpop.f32.mrb[0].mxu0
      %v3739 = vadd.f32 %v1443, %v3738
      %v3740 = vpop.f32.mrb[0].mxu0
      %3741 = vmatprep.mubr.bf16.mxu0 0
      %3742 = vmatmul.mubr.bf16.gmra.mrb[0].mxu0 %v3587
      %v3743 = vpop.f32.mrb[0].mxu0
      %v3744 = vadd.f32 %v1443, %v3743
      %v3745 = vpop.f32.mrb[0].mxu0
      %v3746 = vpop.f32.mrb[0].mxu0
      %v3747 = vadd.f32 %v1443, %v3746
      %v3748 = vpop.f32.mrb[0].mxu0
      %3749 = vdwg.mxu0
      %v3750 = vmax.f32 %v3624, 0.0
      %v3751 = vmax.f32 %v3627, 0.0
      %v3752 = vmax.f32 %v3632, 0.0
      %v3753 = vmax.f32 %v3635, 0.0
      %v3754 = vmax.f32 %v3640, 0.0
      %v3755 = vmax.f32 %v3643, 0.0
      %v3756 = vmax.f32 %v3648, 0.0
      %v3757 = vmax.f32 %v3651, 0.0
      %v3758 = vmax.f32 %v3656, 0.0
      %v3759 = vmax.f32 %v3659, 0.0
      %v3760 = vmax.f32 %v3664, 0.0
      %v3761 = vmax.f32 %v3667, 0.0
      %v3762 = vmax.f32 %v3672, 0.0
      %v3763 = vmax.f32 %v3675, 0.0
      %v3764 = vmax.f32 %v3680, 0.0
      %v3765 = vmax.f32 %v3683, 0.0
      %v3766 = vmax.f32 %v3688, 0.0
      %v3767 = vmax.f32 %v3691, 0.0
      %v3768 = vmax.f32 %v3696, 0.0
      %v3769 = vmax.f32 %v3699, 0.0
      %v3770 = vmax.f32 %v3704, 0.0
      %v3771 = vmax.f32 %v3707, 0.0
      %v3772 = vmax.f32 %v3712, 0.0
      %v3773 = vmax.f32 %v3715, 0.0
      %v3774 = vmax.f32 %v3720, 0.0
      %v3775 = vmax.f32 %v3723, 0.0
      %v3776 = vmax.f32 %v3728, 0.0
      %v3777 = vmax.f32 %v3731, 0.0
      %v3778 = vmax.f32 %v3736, 0.0
      %v3779 = vmax.f32 %v3739, 0.0
      %v3780 = vmax.f32 %v3744, 0.0
      %v3781 = vmax.f32 %v3747, 0.0
      %s3782 = scalar_lea.vmem %s278, 32
      %3783 = vst [vmem:[%s3782] sm:$0xff] %v3750
      %3784 = vst [vmem:[%s3782 + $0x10] sm:$0xff] %v3751
      %3785 = vst [vmem:[%s3782 + $0x40] sm:$0xff] %v3752
      %3786 = vst [vmem:[%s3782 + $0x50] sm:$0xff] %v3753
      %3787 = vst [vmem:[%s3782 + $0x80] sm:$0xff] %v3754
      %3788 = vst [vmem:[%s3782 + $0x90] sm:$0xff] %v3755
      %3789 = vst [vmem:[%s3782 + $0xc0] sm:$0xff] %v3756
      %3790 = vst [vmem:[%s3782 + $0xd0] sm:$0xff] %v3757
      %3791 = vst [vmem:[%s3782 + $0x100] sm:$0xff] %v3758
      %3792 = vst [vmem:[%s3782 + $0x110] sm:$0xff] %v3759
      %3793 = vst [vmem:[%s3782 + $0x140] sm:$0xff] %v3760
      %3794 = vst [vmem:[%s3782 + $0x150] sm:$0xff] %v3761
      %3795 = vst [vmem:[%s3782 + $0x180] sm:$0xff] %v3762
      %3796 = vst [vmem:[%s3782 + $0x190] sm:$0xff] %v3763
      %3797 = vst [vmem:[%s3782 + $0x1c0] sm:$0xff] %v3764
      %3798 = vst [vmem:[%s3782 + $0x1d0] sm:$0xff] %v3765
      %3799 = vst [vmem:[%s3782 + $0x200] sm:$0xff] %v3766
      %3800 = vst [vmem:[%s3782 + $0x210] sm:$0xff] %v3767
      %3801 = vst [vmem:[%s3782 + $0x240] sm:$0xff] %v3768
      %3802 = vst [vmem:[%s3782 + $0x250] sm:$0xff] %v3769
      %3803 = vst [vmem:[%s3782 + $0x280] sm:$0xff] %v3770
      %3804 = vst [vmem:[%s3782 + $0x290] sm:$0xff] %v3771
      %3805 = vst [vmem:[%s3782 + $0x2c0] sm:$0xff] %v3772
      %3806 = vst [vmem:[%s3782 + $0x2d0] sm:$0xff] %v3773
      %3807 = vst [vmem:[%s3782 + $0x300] sm:$0xff] %v3774
      %3808 = vst [vmem:[%s3782 + $0x310] sm:$0xff] %v3775
      %3809 = vst [vmem:[%s3782 + $0x340] sm:$0xff] %v3776
      %3810 = vst [vmem:[%s3782 + $0x350] sm:$0xff] %v3777
      %3811 = vst [vmem:[%s3782 + $0x380] sm:$0xff] %v3778
      %3812 = vst [vmem:[%s3782 + $0x390] sm:$0xff] %v3779
      %3813 = vst [vmem:[%s3782 + $0x3c0] sm:$0xff] %v3780
      %3814 = vst [vmem:[%s3782 + $0x3d0] sm:$0xff] %v3781
      %v3815 = vld [vmem:[%s2947] sm:$0xf]
      %v3816 = vld [vmem:[%s2947 + $0x4] sm:$0xf]
      %v3817 = vld [vmem:[%s2947 + $0x8] sm:$0x1]
      %v3818 = vld [vmem:[%s2947 + $0xc] sm:$0xf]
      %v3819 = vld [vmem:[%s2947 + $0x10] sm:$0xf]
      %v3820 = vld [vmem:[%s2947 + $0x14] sm:$0x1]
      %v3821 = vld [vmem:[%s2947 + $0x18] sm:$0xf]
      %v3822 = vld [vmem:[%s2947 + $0x1c] sm:$0xf]
      %v3823 = vld [vmem:[%s2947 + $0x20] sm:$0x1]
      %v3824 = vld [vmem:[%s2947 + $0x24] sm:$0xf]
      %v3825 = vld [vmem:[%s2947 + $0x28] sm:$0xf]
      %v3826 = vld [vmem:[%s2947 + $0x2c] sm:$0x1]
      %v3827 = vld [vmem:[%s2947 + $0x30] sm:$0xf]
      %v3828 = vld [vmem:[%s2947 + $0x34] sm:$0xf]
      %v3829 = vld [vmem:[%s2947 + $0x38] sm:$0x1]
      %v3830 = vld [vmem:[%s2947 + $0x3c] sm:$0xf]
      %v3831 = vld [vmem:[%s2947 + $0x40] sm:$0xf]
      %v3832 = vld [vmem:[%s2947 + $0x44] sm:$0x1]
      %v3833 = vld [vmem:[%s2947 + $0x48] sm:$0xf]
      %v3834 = vld [vmem:[%s2947 + $0x4c] sm:$0xf]
      %v3835 = vld [vmem:[%s2947 + $0x50] sm:$0x1]
      %v3836 = vld [vmem:[%s2947 + $0x54] sm:$0xf]
      %v3837 = vld [vmem:[%s2947 + $0x58] sm:$0xf]
      %v3838 = vld [vmem:[%s2947 + $0x5c] sm:$0x1]
      %v3839 = vld [vmem:[%s2947 + $0x60] sm:$0xf]
      %v3840 = vld [vmem:[%s2947 + $0x64] sm:$0xf]
      %v3841 = vld [vmem:[%s2947 + $0x68] sm:$0x1]
      %v3842 = vld [vmem:[%s2947 + $0x6c] sm:$0xf]
      %v3843 = vld [vmem:[%s2947 + $0x70] sm:$0xf]
      %v3844 = vld [vmem:[%s2947 + $0x74] sm:$0x1]
      %v3845 = vld [vmem:[%s2947 + $0x78] sm:$0xf]
      %v3846 = vld [vmem:[%s2947 + $0x7c] sm:$0xf]
      %v3847 = vld [vmem:[%s2947 + $0x80] sm:$0x1]
      %v3848 = vld [vmem:[%s2947 + $0x84] sm:$0xf]
      %v3849 = vld [vmem:[%s2947 + $0x88] sm:$0xf]
      %v3850 = vld [vmem:[%s2947 + $0x8c] sm:$0x1]
      %v3851 = vld [vmem:[%s2947 + $0x90] sm:$0xf]
      %v3852 = vld [vmem:[%s2947 + $0x94] sm:$0xf]
      %v3853 = vld [vmem:[%s2947 + $0x98] sm:$0x1]
      %v3854 = vld [vmem:[%s2947 + $0x9c] sm:$0xf]
      %v3855 = vld [vmem:[%s2947 + $0xa0] sm:$0xf]
      %v3856 = vld [vmem:[%s2947 + $0xa4] sm:$0x1]
      %v3857 = vld [vmem:[%s2947 + $0xa8] sm:$0xf]
      %v3858 = vld [vmem:[%s2947 + $0xac] sm:$0xf]
      %v3859 = vld [vmem:[%s2947 + $0xb0] sm:$0x1]
      %v3860 = vld [vmem:[%s2947 + $0xb4] sm:$0xf]
      %v3861 = vld [vmem:[%s2947 + $0xb8] sm:$0xf]
      %v3862 = vld [vmem:[%s2947 + $0xbc] sm:$0x1]
      %v3864 = vshrl.u32 %v3815, 16
      %v3866 = vrot.slane %v3864, 4
      %v3867 = vshll.u32 %v3815, 16
      %v3869 = vrot.slane %v3867, 5
      %v3870 = vor.u32 %v3866, %v3869
      %v3871 = vrot.slane %v3870, 4
      %v3873 = vshll.u32 %v3816, 16
      %v3875 = vrot.slane %v3873, 5
      %v3876 = vsel %vm1792, %v3871, %v3875
      %v3877 = vshrl.u32 %v3816, 16
      %v3879 = vrot.slane %v3877, 4
      %v3880 = vor.u32 %v3879, %v3875
      %v3881 = vrot.slane %v3880, 4
      %v3883 = vshll.u32 %v3817, 16
      %v3885 = vrot.slane %v3883, 5
      %v3886 = vsel %vm1792, %v3881, %v3885
      %v3888 = vshrl.u32 %v3818, 16
      %v3890 = vrot.slane %v3888, 4
      %v3891 = vshll.u32 %v3818, 16
      %v3893 = vrot.slane %v3891, 5
      %v3894 = vor.u32 %v3890, %v3893
      %v3895 = vrot.slane %v3894, 4
      %v3897 = vshll.u32 %v3819, 16
      %v3899 = vrot.slane %v3897, 5
      %v3900 = vsel %vm1792, %v3895, %v3899
      %v3901 = vshrl.u32 %v3819, 16
      %v3903 = vrot.slane %v3901, 4
      %v3904 = vor.u32 %v3903, %v3899
      %v3905 = vrot.slane %v3904, 4
      %v3907 = vshll.u32 %v3820, 16
      %v3909 = vrot.slane %v3907, 5
      %v3910 = vsel %vm1792, %v3905, %v3909
      %v3912 = vshrl.u32 %v3821, 16
      %v3914 = vrot.slane %v3912, 4
      %v3915 = vshll.u32 %v3821, 16
      %v3917 = vrot.slane %v3915, 5
      %v3918 = vor.u32 %v3914, %v3917
      %v3919 = vrot.slane %v3918, 4
      %v3921 = vshll.u32 %v3822, 16
      %v3923 = vrot.slane %v3921, 5
      %v3924 = vsel %vm1792, %v3919, %v3923
      %v3925 = vshrl.u32 %v3822, 16
      %v3927 = vrot.slane %v3925, 4
      %v3928 = vor.u32 %v3927, %v3923
      %v3929 = vrot.slane %v3928, 4
      %v3931 = vshll.u32 %v3823, 16
      %v3933 = vrot.slane %v3931, 5
      %v3934 = vsel %vm1792, %v3929, %v3933
      %v3936 = vshrl.u32 %v3824, 16
      %v3938 = vrot.slane %v3936, 4
      %v3939 = vshll.u32 %v3824, 16
      %v3941 = vrot.slane %v3939, 5
      %v3942 = vor.u32 %v3938, %v3941
      %v3943 = vrot.slane %v3942, 4
      %v3945 = vshll.u32 %v3825, 16
      %v3947 = vrot.slane %v3945, 5
      %v3948 = vsel %vm1792, %v3943, %v3947
      %v3949 = vshrl.u32 %v3825, 16
      %v3951 = vrot.slane %v3949, 4
      %v3952 = vor.u32 %v3951, %v3947
      %v3953 = vrot.slane %v3952, 4
      %v3955 = vshll.u32 %v3826, 16
      %v3957 = vrot.slane %v3955, 5
      %v3958 = vsel %vm1792, %v3953, %v3957
      %v3960 = vshrl.u32 %v3827, 16
      %v3962 = vrot.slane %v3960, 4
      %v3963 = vshll.u32 %v3827, 16
      %v3965 = vrot.slane %v3963, 5
      %v3966 = vor.u32 %v3962, %v3965
      %v3967 = vrot.slane %v3966, 4
      %v3969 = vshll.u32 %v3828, 16
      %v3971 = vrot.slane %v3969, 5
      %v3972 = vsel %vm1792, %v3967, %v3971
      %v3973 = vshrl.u32 %v3828, 16
      %v3975 = vrot.slane %v3973, 4
      %v3976 = vor.u32 %v3975, %v3971
      %v3977 = vrot.slane %v3976, 4
      %v3979 = vshll.u32 %v3829, 16
      %v3981 = vrot.slane %v3979, 5
      %v3982 = vsel %vm1792, %v3977, %v3981
      %v3984 = vshrl.u32 %v3830, 16
      %v3986 = vrot.slane %v3984, 4
      %v3987 = vshll.u32 %v3830, 16
      %v3989 = vrot.slane %v3987, 5
      %v3990 = vor.u32 %v3986, %v3989
      %v3991 = vrot.slane %v3990, 4
      %v3993 = vshll.u32 %v3831, 16
      %v3995 = vrot.slane %v3993, 5
      %v3996 = vsel %vm1792, %v3991, %v3995
      %v3997 = vshrl.u32 %v3831, 16
      %v3999 = vrot.slane %v3997, 4
      %v4000 = vor.u32 %v3999, %v3995
      %v4001 = vrot.slane %v4000, 4
      %v4003 = vshll.u32 %v3832, 16
      %v4005 = vrot.slane %v4003, 5
      %v4006 = vsel %vm1792, %v4001, %v4005
      %v4008 = vshrl.u32 %v3833, 16
      %v4010 = vrot.slane %v4008, 4
      %v4011 = vshll.u32 %v3833, 16
      %v4013 = vrot.slane %v4011, 5
      %v4014 = vor.u32 %v4010, %v4013
      %v4015 = vrot.slane %v4014, 4
      %v4017 = vshll.u32 %v3834, 16
      %v4019 = vrot.slane %v4017, 5
      %v4020 = vsel %vm1792, %v4015, %v4019
      %v4021 = vshrl.u32 %v3834, 16
      %v4023 = vrot.slane %v4021, 4
      %v4024 = vor.u32 %v4023, %v4019
      %v4025 = vrot.slane %v4024, 4
      %v4027 = vshll.u32 %v3835, 16
      %v4029 = vrot.slane %v4027, 5
      %v4030 = vsel %vm1792, %v4025, %v4029
      %v4032 = vshrl.u32 %v3836, 16
      %v4034 = vrot.slane %v4032, 4
      %v4035 = vshll.u32 %v3836, 16
      %v4037 = vrot.slane %v4035, 5
      %v4038 = vor.u32 %v4034, %v4037
      %v4039 = vrot.slane %v4038, 4
      %v4041 = vshll.u32 %v3837, 16
      %v4043 = vrot.slane %v4041, 5
      %v4044 = vsel %vm1792, %v4039, %v4043
      %v4045 = vshrl.u32 %v3837, 16
      %v4047 = vrot.slane %v4045, 4
      %v4048 = vor.u32 %v4047, %v4043
      %v4049 = vrot.slane %v4048, 4
      %v4051 = vshll.u32 %v3838, 16
      %v4053 = vrot.slane %v4051, 5
      %v4054 = vsel %vm1792, %v4049, %v4053
      %v4056 = vshrl.u32 %v3839, 16
      %v4058 = vrot.slane %v4056, 4
      %v4059 = vshll.u32 %v3839, 16
      %v4061 = vrot.slane %v4059, 5
      %v4062 = vor.u32 %v4058, %v4061
      %v4063 = vrot.slane %v4062, 4
      %v4065 = vshll.u32 %v3840, 16
      %v4067 = vrot.slane %v4065, 5
      %v4068 = vsel %vm1792, %v4063, %v4067
      %v4069 = vshrl.u32 %v3840, 16
      %v4071 = vrot.slane %v4069, 4
      %v4072 = vor.u32 %v4071, %v4067
      %v4073 = vrot.slane %v4072, 4
      %v4075 = vshll.u32 %v3841, 16
      %v4077 = vrot.slane %v4075, 5
      %v4078 = vsel %vm1792, %v4073, %v4077
      %v4080 = vshrl.u32 %v3842, 16
      %v4082 = vrot.slane %v4080, 4
      %v4083 = vshll.u32 %v3842, 16
      %v4085 = vrot.slane %v4083, 5
      %v4086 = vor.u32 %v4082, %v4085
      %v4087 = vrot.slane %v4086, 4
      %v4089 = vshll.u32 %v3843, 16
      %v4091 = vrot.slane %v4089, 5
      %v4092 = vsel %vm1792, %v4087, %v4091
      %v4093 = vshrl.u32 %v3843, 16
      %v4095 = vrot.slane %v4093, 4
      %v4096 = vor.u32 %v4095, %v4091
      %v4097 = vrot.slane %v4096, 4
      %v4099 = vshll.u32 %v3844, 16
      %v4101 = vrot.slane %v4099, 5
      %v4102 = vsel %vm1792, %v4097, %v4101
      %v4104 = vshrl.u32 %v3845, 16
      %v4106 = vrot.slane %v4104, 4
      %v4107 = vshll.u32 %v3845, 16
      %v4109 = vrot.slane %v4107, 5
      %v4110 = vor.u32 %v4106, %v4109
      %v4111 = vrot.slane %v4110, 4
      %v4113 = vshll.u32 %v3846, 16
      %v4115 = vrot.slane %v4113, 5
      %v4116 = vsel %vm1792, %v4111, %v4115
      %v4117 = vshrl.u32 %v3846, 16
      %v4119 = vrot.slane %v4117, 4
      %v4120 = vor.u32 %v4119, %v4115
      %v4121 = vrot.slane %v4120, 4
      %v4123 = vshll.u32 %v3847, 16
      %v4125 = vrot.slane %v4123, 5
      %v4126 = vsel %vm1792, %v4121, %v4125
      %v4128 = vshrl.u32 %v3848, 16
      %v4130 = vrot.slane %v4128, 4
      %v4131 = vshll.u32 %v3848, 16
      %v4133 = vrot.slane %v4131, 5
      %v4134 = vor.u32 %v4130, %v4133
      %v4135 = vrot.slane %v4134, 4
      %v4137 = vshll.u32 %v3849, 16
      %v4139 = vrot.slane %v4137, 5
      %v4140 = vsel %vm1792, %v4135, %v4139
      %v4141 = vshrl.u32 %v3849, 16
      %v4143 = vrot.slane %v4141, 4
      %v4144 = vor.u32 %v4143, %v4139
      %v4145 = vrot.slane %v4144, 4
      %v4147 = vshll.u32 %v3850, 16
      %v4149 = vrot.slane %v4147, 5
      %v4150 = vsel %vm1792, %v4145, %v4149
      %v4152 = vshrl.u32 %v3851, 16
      %v4154 = vrot.slane %v4152, 4
      %v4155 = vshll.u32 %v3851, 16
      %v4157 = vrot.slane %v4155, 5
      %v4158 = vor.u32 %v4154, %v4157
      %v4159 = vrot.slane %v4158, 4
      %v4161 = vshll.u32 %v3852, 16
      %v4163 = vrot.slane %v4161, 5
      %v4164 = vsel %vm1792, %v4159, %v4163
      %v4165 = vshrl.u32 %v3852, 16
      %v4167 = vrot.slane %v4165, 4
      %v4168 = vor.u32 %v4167, %v4163
      %v4169 = vrot.slane %v4168, 4
      %v4171 = vshll.u32 %v3853, 16
      %v4173 = vrot.slane %v4171, 5
      %v4174 = vsel %vm1792, %v4169, %v4173
      %v4176 = vshrl.u32 %v3854, 16
      %v4178 = vrot.slane %v4176, 4
      %v4179 = vshll.u32 %v3854, 16
      %v4181 = vrot.slane %v4179, 5
      %v4182 = vor.u32 %v4178, %v4181
      %v4183 = vrot.slane %v4182, 4
      %v4185 = vshll.u32 %v3855, 16
      %v4187 = vrot.slane %v4185, 5
      %v4188 = vsel %vm1792, %v4183, %v4187
      %v4189 = vshrl.u32 %v3855, 16
      %v4191 = vrot.slane %v4189, 4
      %v4192 = vor.u32 %v4191, %v4187
      %v4193 = vrot.slane %v4192, 4
      %v4195 = vshll.u32 %v3856, 16
      %v4197 = vrot.slane %v4195, 5
      %v4198 = vsel %vm1792, %v4193, %v4197
      %v4200 = vshrl.u32 %v3857, 16
      %v4202 = vrot.slane %v4200, 4
      %v4203 = vshll.u32 %v3857, 16
      %v4205 = vrot.slane %v4203, 5
      %v4206 = vor.u32 %v4202, %v4205
      %v4207 = vrot.slane %v4206, 4
      %v4209 = vshll.u32 %v3858, 16
      %v4211 = vrot.slane %v4209, 5
      %v4212 = vsel %vm1792, %v4207, %v4211
      %v4213 = vshrl.u32 %v3858, 16
      %v4215 = vrot.slane %v4213, 4
      %v4216 = vor.u32 %v4215, %v4211
      %v4217 = vrot.slane %v4216, 4
      %v4219 = vshll.u32 %v3859, 16
      %v4221 = vrot.slane %v4219, 5
      %v4222 = vsel %vm1792, %v4217, %v4221
      %v4224 = vshrl.u32 %v3860, 16
      %v4226 = vrot.slane %v4224, 4
      %v4227 = vshll.u32 %v3860, 16
      %v4229 = vrot.slane %v4227, 5
      %v4230 = vor.u32 %v4226, %v4229
      %v4231 = vrot.slane %v4230, 4
      %v4233 = vshll.u32 %v3861, 16
      %v4235 = vrot.slane %v4233, 5
      %v4236 = vsel %vm1792, %v4231, %v4235
      %v4237 = vshrl.u32 %v3861, 16
      %v4239 = vrot.slane %v4237, 4
      %v4240 = vor.u32 %v4239, %v4235
      %v4241 = vrot.slane %v4240, 4
      %v4243 = vshll.u32 %v3862, 16
      %v4245 = vrot.slane %v4243, 5
      %v4246 = vsel %vm1792, %v4241, %v4245
      %v4247 = vld [vmem:[#allocation2] sm:$0xf]
      %v4248 = vld [vmem:[#allocation2 + $0x4] sm:$0xf]
      %v4249 = vld [vmem:[#allocation2 + $0x8] sm:$0x1]
      %v4250 = vld [vmem:[#allocation2 + $0xc] sm:$0xf]
      %v4251 = vld [vmem:[#allocation2 + $0x10] sm:$0xf]
      %v4252 = vld [vmem:[#allocation2 + $0x14] sm:$0x1]
      %v4253 = vld [vmem:[#allocation2 + $0x18] sm:$0xf]
      %v4254 = vld [vmem:[#allocation2 + $0x1c] sm:$0xf]
      %v4255 = vld [vmem:[#allocation2 + $0x20] sm:$0x1]
      %v4256 = vld [vmem:[#allocation2 + $0x24] sm:$0xf]
      %v4257 = vld [vmem:[#allocation2 + $0x28] sm:$0xf]
      %v4258 = vld [vmem:[#allocation2 + $0x2c] sm:$0x1]
      %v4259 = vld [vmem:[#allocation2 + $0x30] sm:$0xf]
      %v4260 = vld [vmem:[#allocation2 + $0x34] sm:$0xf]
      %v4261 = vld [vmem:[#allocation2 + $0x38] sm:$0x1]
      %v4262 = vld [vmem:[#allocation2 + $0x3c] sm:$0xf]
      %v4263 = vld [vmem:[#allocation2 + $0x40] sm:$0xf]
      %v4264 = vld [vmem:[#allocation2 + $0x44] sm:$0x1]
      %v4265 = vld [vmem:[#allocation2 + $0x48] sm:$0xf]
      %v4266 = vld [vmem:[#allocation2 + $0x4c] sm:$0xf]
      %v4267 = vld [vmem:[#allocation2 + $0x50] sm:$0x1]
      %v4268 = vld [vmem:[#allocation2 + $0x54] sm:$0xf]
      %v4269 = vld [vmem:[#allocation2 + $0x58] sm:$0xf]
      %v4270 = vld [vmem:[#allocation2 + $0x5c] sm:$0x1]
      %v4271 = vld [vmem:[#allocation2 + $0x60] sm:$0xf]
      %v4272 = vld [vmem:[#allocation2 + $0x64] sm:$0xf]
      %v4273 = vld [vmem:[#allocation2 + $0x68] sm:$0x1]
      %v4274 = vld [vmem:[#allocation2 + $0x6c] sm:$0xf]
      %v4275 = vld [vmem:[#allocation2 + $0x70] sm:$0xf]
      %v4276 = vld [vmem:[#allocation2 + $0x74] sm:$0x1]
      %v4277 = vld [vmem:[#allocation2 + $0x78] sm:$0xf]
      %v4278 = vld [vmem:[#allocation2 + $0x7c] sm:$0xf]
      %v4279 = vld [vmem:[#allocation2 + $0x80] sm:$0x1]
      %v4280 = vld [vmem:[#allocation2 + $0x84] sm:$0xf]
      %v4281 = vld [vmem:[#allocation2 + $0x88] sm:$0xf]
      %v4282 = vld [vmem:[#allocation2 + $0x8c] sm:$0x1]
      %v4283 = vld [vmem:[#allocation2 + $0x90] sm:$0xf]
      %v4284 = vld [vmem:[#allocation2 + $0x94] sm:$0xf]
      %v4285 = vld [vmem:[#allocation2 + $0x98] sm:$0x1]
      %v4286 = vld [vmem:[#allocation2 + $0x9c] sm:$0xf]
      %v4287 = vld [vmem:[#allocation2 + $0xa0] sm:$0xf]
      %v4288 = vld [vmem:[#allocation2 + $0xa4] sm:$0x1]
      %v4289 = vld [vmem:[#allocation2 + $0xa8] sm:$0xf]
      %v4290 = vld [vmem:[#allocation2 + $0xac] sm:$0xf]
      %v4291 = vld [vmem:[#allocation2 + $0xb0] sm:$0x1]
      %v4292 = vld [vmem:[#allocation2 + $0xb4] sm:$0xf]
      %v4293 = vld [vmem:[#allocation2 + $0xb8] sm:$0xf]
      %v4294 = vld [vmem:[#allocation2 + $0xbc] sm:$0x1]
      %v4296 = vshrl.u32 %v4247, 16
      %v4298 = vrot.slane %v4296, 4
      %v4299 = vshll.u32 %v4247, 16
      %v4301 = vrot.slane %v4299, 5
      %v4302 = vor.u32 %v4298, %v4301
      %v4303 = vrot.slane %v4302, 4
      %v4305 = vshll.u32 %v4248, 16
      %v4307 = vrot.slane %v4305, 5
      %v4308 = vsel %vm1792, %v4303, %v4307
      %v4309 = vshrl.u32 %v4248, 16
      %v4311 = vrot.slane %v4309, 4
      %v4312 = vor.u32 %v4311, %v4307
      %v4313 = vrot.slane %v4312, 4
      %v4315 = vshll.u32 %v4249, 16
      %v4317 = vrot.slane %v4315, 5
      %v4318 = vsel %vm1792, %v4313, %v4317
      %v4320 = vshrl.u32 %v4250, 16
      %v4322 = vrot.slane %v4320, 4
      %v4323 = vshll.u32 %v4250, 16
      %v4325 = vrot.slane %v4323, 5
      %v4326 = vor.u32 %v4322, %v4325
      %v4327 = vrot.slane %v4326, 4
      %v4329 = vshll.u32 %v4251, 16
      %v4331 = vrot.slane %v4329, 5
      %v4332 = vsel %vm1792, %v4327, %v4331
      %v4333 = vshrl.u32 %v4251, 16
      %v4335 = vrot.slane %v4333, 4
      %v4336 = vor.u32 %v4335, %v4331
      %v4337 = vrot.slane %v4336, 4
      %v4339 = vshll.u32 %v4252, 16
      %v4341 = vrot.slane %v4339, 5
      %v4342 = vsel %vm1792, %v4337, %v4341
      %v4344 = vshrl.u32 %v4253, 16
      %v4346 = vrot.slane %v4344, 4
      %v4347 = vshll.u32 %v4253, 16
      %v4349 = vrot.slane %v4347, 5
      %v4350 = vor.u32 %v4346, %v4349
      %v4351 = vrot.slane %v4350, 4
      %v4353 = vshll.u32 %v4254, 16
      %v4355 = vrot.slane %v4353, 5
      %v4356 = vsel %vm1792, %v4351, %v4355
      %v4357 = vshrl.u32 %v4254, 16
      %v4359 = vrot.slane %v4357, 4
      %v4360 = vor.u32 %v4359, %v4355
      %v4361 = vrot.slane %v4360, 4
      %v4363 = vshll.u32 %v4255, 16
      %v4365 = vrot.slane %v4363, 5
      %v4366 = vsel %vm1792, %v4361, %v4365
      %v4368 = vshrl.u32 %v4256, 16
      %v4370 = vrot.slane %v4368, 4
      %v4371 = vshll.u32 %v4256, 16
      %v4373 = vrot.slane %v4371, 5
      %v4374 = vor.u32 %v4370, %v4373
      %v4375 = vrot.slane %v4374, 4
      %v4377 = vshll.u32 %v4257, 16
      %v4379 = vrot.slane %v4377, 5
      %v4380 = vsel %vm1792, %v4375, %v4379
      %v4381 = vshrl.u32 %v4257, 16
      %v4383 = vrot.slane %v4381, 4
      %v4384 = vor.u32 %v4383, %v4379
      %v4385 = vrot.slane %v4384, 4
      %v4387 = vshll.u32 %v4258, 16
      %v4389 = vrot.slane %v4387, 5
      %v4390 = vsel %vm1792, %v4385, %v4389
      %v4392 = vshrl.u32 %v4259, 16
      %v4394 = vrot.slane %v4392, 4
      %v4395 = vshll.u32 %v4259, 16
      %v4397 = vrot.slane %v4395, 5
      %v4398 = vor.u32 %v4394, %v4397
      %v4399 = vrot.slane %v4398, 4
      %v4401 = vshll.u32 %v4260, 16
      %v4403 = vrot.slane %v4401, 5
      %v4404 = vsel %vm1792, %v4399, %v4403
      %v4405 = vshrl.u32 %v4260, 16
      %v4407 = vrot.slane %v4405, 4
      %v4408 = vor.u32 %v4407, %v4403
      %v4409 = vrot.slane %v4408, 4
      %v4411 = vshll.u32 %v4261, 16
      %v4413 = vrot.slane %v4411, 5
      %v4414 = vsel %vm1792, %v4409, %v4413
      %v4416 = vshrl.u32 %v4262, 16
      %v4418 = vrot.slane %v4416, 4
      %v4419 = vshll.u32 %v4262, 16
      %v4421 = vrot.slane %v4419, 5
      %v4422 = vor.u32 %v4418, %v4421
      %v4423 = vrot.slane %v4422, 4
      %v4425 = vshll.u32 %v4263, 16
      %v4427 = vrot.slane %v4425, 5
      %v4428 = vsel %vm1792, %v4423, %v4427
      %v4429 = vshrl.u32 %v4263, 16
      %v4431 = vrot.slane %v4429, 4
      %v4432 = vor.u32 %v4431, %v4427
      %v4433 = vrot.slane %v4432, 4
      %v4435 = vshll.u32 %v4264, 16
      %v4437 = vrot.slane %v4435, 5
      %v4438 = vsel %vm1792, %v4433, %v4437
      %v4440 = vshrl.u32 %v4265, 16
      %v4442 = vrot.slane %v4440, 4
      %v4443 = vshll.u32 %v4265, 16
      %v4445 = vrot.slane %v4443, 5
      %v4446 = vor.u32 %v4442, %v4445
      %v4447 = vrot.slane %v4446, 4
      %v4449 = vshll.u32 %v4266, 16
      %v4451 = vrot.slane %v4449, 5
      %v4452 = vsel %vm1792, %v4447, %v4451
      %v4453 = vshrl.u32 %v4266, 16
      %v4455 = vrot.slane %v4453, 4
      %v4456 = vor.u32 %v4455, %v4451
      %v4457 = vrot.slane %v4456, 4
      %v4459 = vshll.u32 %v4267, 16
      %v4461 = vrot.slane %v4459, 5
      %v4462 = vsel %vm1792, %v4457, %v4461
      %v4464 = vshrl.u32 %v4268, 16
      %v4466 = vrot.slane %v4464, 4
      %v4467 = vshll.u32 %v4268, 16
      %v4469 = vrot.slane %v4467, 5
      %v4470 = vor.u32 %v4466, %v4469
      %v4471 = vrot.slane %v4470, 4
      %v4473 = vshll.u32 %v4269, 16
      %v4475 = vrot.slane %v4473, 5
      %v4476 = vsel %vm1792, %v4471, %v4475
      %v4477 = vshrl.u32 %v4269, 16
      %v4479 = vrot.slane %v4477, 4
      %v4480 = vor.u32 %v4479, %v4475
      %v4481 = vrot.slane %v4480, 4
      %v4483 = vshll.u32 %v4270, 16
      %v4485 = vrot.slane %v4483, 5
      %v4486 = vsel %vm1792, %v4481, %v4485
      %v4488 = vshrl.u32 %v4271, 16
      %v4490 = vrot.slane %v4488, 4
      %v4491 = vshll.u32 %v4271, 16
      %v4493 = vrot.slane %v4491, 5
      %v4494 = vor.u32 %v4490, %v4493
      %v4495 = vrot.slane %v4494, 4
      %v4497 = vshll.u32 %v4272, 16
      %v4499 = vrot.slane %v4497, 5
      %v4500 = vsel %vm1792, %v4495, %v4499
      %v4501 = vshrl.u32 %v4272, 16
      %v4503 = vrot.slane %v4501, 4
      %v4504 = vor.u32 %v4503, %v4499
      %v4505 = vrot.slane %v4504, 4
      %v4507 = vshll.u32 %v4273, 16
      %v4509 = vrot.slane %v4507, 5
      %v4510 = vsel %vm1792, %v4505, %v4509
      %v4512 = vshrl.u32 %v4274, 16
      %v4514 = vrot.slane %v4512, 4
      %v4515 = vshll.u32 %v4274, 16
      %v4517 = vrot.slane %v4515, 5
      %v4518 = vor.u32 %v4514, %v4517
      %v4519 = vrot.slane %v4518, 4
      %v4521 = vshll.u32 %v4275, 16
      %v4523 = vrot.slane %v4521, 5
      %v4524 = vsel %vm1792, %v4519, %v4523
      %v4525 = vshrl.u32 %v4275, 16
      %v4527 = vrot.slane %v4525, 4
      %v4528 = vor.u32 %v4527, %v4523
      %v4529 = vrot.slane %v4528, 4
      %v4531 = vshll.u32 %v4276, 16
      %v4533 = vrot.slane %v4531, 5
      %v4534 = vsel %vm1792, %v4529, %v4533
      %v4536 = vshrl.u32 %v4277, 16
      %v4538 = vrot.slane %v4536, 4
      %v4539 = vshll.u32 %v4277, 16
      %v4541 = vrot.slane %v4539, 5
      %v4542 = vor.u32 %v4538, %v4541
      %v4543 = vrot.slane %v4542, 4
      %v4545 = vshll.u32 %v4278, 16
      %v4547 = vrot.slane %v4545, 5
      %v4548 = vsel %vm1792, %v4543, %v4547
      %v4549 = vshrl.u32 %v4278, 16
      %v4551 = vrot.slane %v4549, 4
      %v4552 = vor.u32 %v4551, %v4547
      %v4553 = vrot.slane %v4552, 4
      %v4555 = vshll.u32 %v4279, 16
      %v4557 = vrot.slane %v4555, 5
      %v4558 = vsel %vm1792, %v4553, %v4557
      %v4560 = vshrl.u32 %v4280, 16
      %v4562 = vrot.slane %v4560, 4
      %v4563 = vshll.u32 %v4280, 16
      %v4565 = vrot.slane %v4563, 5
      %v4566 = vor.u32 %v4562, %v4565
      %v4567 = vrot.slane %v4566, 4
      %v4569 = vshll.u32 %v4281, 16
      %v4571 = vrot.slane %v4569, 5
      %v4572 = vsel %vm1792, %v4567, %v4571
      %v4573 = vshrl.u32 %v4281, 16
      %v4575 = vrot.slane %v4573, 4
      %v4576 = vor.u32 %v4575, %v4571
      %v4577 = vrot.slane %v4576, 4
      %v4579 = vshll.u32 %v4282, 16
      %v4581 = vrot.slane %v4579, 5
      %v4582 = vsel %vm1792, %v4577, %v4581
      %v4584 = vshrl.u32 %v4283, 16
      %v4586 = vrot.slane %v4584, 4
      %v4587 = vshll.u32 %v4283, 16
      %v4589 = vrot.slane %v4587, 5
      %v4590 = vor.u32 %v4586, %v4589
      %v4591 = vrot.slane %v4590, 4
      %v4593 = vshll.u32 %v4284, 16
      %v4595 = vrot.slane %v4593, 5
      %v4596 = vsel %vm1792, %v4591, %v4595
      %v4597 = vshrl.u32 %v4284, 16
      %v4599 = vrot.slane %v4597, 4
      %v4600 = vor.u32 %v4599, %v4595
      %v4601 = vrot.slane %v4600, 4
      %v4603 = vshll.u32 %v4285, 16
      %v4605 = vrot.slane %v4603, 5
      %v4606 = vsel %vm1792, %v4601, %v4605
      %v4608 = vshrl.u32 %v4286, 16
      %v4610 = vrot.slane %v4608, 4
      %v4611 = vshll.u32 %v4286, 16
      %v4613 = vrot.slane %v4611, 5
      %v4614 = vor.u32 %v4610, %v4613
      %v4615 = vrot.slane %v4614, 4
      %v4617 = vshll.u32 %v4287, 16
      %v4619 = vrot.slane %v4617, 5
      %v4620 = vsel %vm1792, %v4615, %v4619
      %v4621 = vshrl.u32 %v4287, 16
      %v4623 = vrot.slane %v4621, 4
      %v4624 = vor.u32 %v4623, %v4619
      %v4625 = vrot.slane %v4624, 4
      %v4627 = vshll.u32 %v4288, 16
      %v4629 = vrot.slane %v4627, 5
      %v4630 = vsel %vm1792, %v4625, %v4629
      %v4632 = vshrl.u32 %v4289, 16
      %v4634 = vrot.slane %v4632, 4
      %v4635 = vshll.u32 %v4289, 16
      %v4637 = vrot.slane %v4635, 5
      %v4638 = vor.u32 %v4634, %v4637
      %v4639 = vrot.slane %v4638, 4
      %v4641 = vshll.u32 %v4290, 16
      %v4643 = vrot.slane %v4641, 5
      %v4644 = vsel %vm1792, %v4639, %v4643
      %v4645 = vshrl.u32 %v4290, 16
      %v4647 = vrot.slane %v4645, 4
      %v4648 = vor.u32 %v4647, %v4643
      %v4649 = vrot.slane %v4648, 4
      %v4651 = vshll.u32 %v4291, 16
      %v4653 = vrot.slane %v4651, 5
      %v4654 = vsel %vm1792, %v4649, %v4653
      %v4656 = vshrl.u32 %v4292, 16
      %v4658 = vrot.slane %v4656, 4
      %v4659 = vshll.u32 %v4292, 16
      %v4661 = vrot.slane %v4659, 5
      %v4662 = vor.u32 %v4658, %v4661
      %v4663 = vrot.slane %v4662, 4
      %v4665 = vshll.u32 %v4293, 16
      %v4667 = vrot.slane %v4665, 5
      %v4668 = vsel %vm1792, %v4663, %v4667
      %v4669 = vshrl.u32 %v4293, 16
      %v4671 = vrot.slane %v4669, 4
      %v4672 = vor.u32 %v4671, %v4667
      %v4673 = vrot.slane %v4672, 4
      %v4675 = vshll.u32 %v4294, 16
      %v4677 = vrot.slane %v4675, 5
      %v4678 = vsel %vm1792, %v4673, %v4677
      %v4679 = vunpack.c.l.b16 %v3876
      %v4680 = vunpack.c.l.b16 %v3886
      %v4681 = vunpack.c.l.b16 %v3900
      %v4682 = vunpack.c.l.b16 %v3910
      %v4683 = vunpack.c.l.b16 %v3924
      %v4684 = vunpack.c.l.b16 %v3934
      %v4685 = vunpack.c.l.b16 %v3948
      %v4686 = vunpack.c.l.b16 %v3958
      %v4687 = vunpack.c.l.b16 %v3972
      %v4688 = vunpack.c.l.b16 %v3982
      %v4689 = vunpack.c.l.b16 %v3996
      %v4690 = vunpack.c.l.b16 %v4006
      %v4691 = vunpack.c.l.b16 %v4020
      %v4692 = vunpack.c.l.b16 %v4030
      %v4693 = vunpack.c.l.b16 %v4044
      %v4694 = vunpack.c.l.b16 %v4054
      %v4695 = vunpack.c.l.b16 %v4068
      %v4696 = vunpack.c.l.b16 %v4078
      %v4697 = vunpack.c.l.b16 %v4092
      %v4698 = vunpack.c.l.b16 %v4102
      %v4699 = vunpack.c.l.b16 %v4116
      %v4700 = vunpack.c.l.b16 %v4126
      %v4701 = vunpack.c.l.b16 %v4140
      %v4702 = vunpack.c.l.b16 %v4150
      %v4703 = vunpack.c.l.b16 %v4164
      %v4704 = vunpack.c.l.b16 %v4174
      %v4705 = vunpack.c.l.b16 %v4188
      %v4706 = vunpack.c.l.b16 %v4198
      %v4707 = vunpack.c.l.b16 %v4212
      %v4708 = vunpack.c.l.b16 %v4222
      %v4709 = vunpack.c.l.b16 %v4236
      %v4710 = vunpack.c.l.b16 %v4246
      %v4711 = vpack.c.b16 %v4680, %v4679
      %v4712 = vpack.c.b16 %v4682, %v4681
      %v4713 = vpack.c.b16 %v4684, %v4683
      %v4714 = vpack.c.b16 %v4686, %v4685
      %v4715 = vpack.c.b16 %v4688, %v4687
      %v4716 = vpack.c.b16 %v4690, %v4689
      %v4717 = vpack.c.b16 %v4692, %v4691
      %v4718 = vpack.c.b16 %v4694, %v4693
      %v4719 = vpack.c.b16 %v4696, %v4695
      %v4720 = vpack.c.b16 %v4698, %v4697
      %v4721 = vpack.c.b16 %v4700, %v4699
      %v4722 = vpack.c.b16 %v4702, %v4701
      %v4723 = vpack.c.b16 %v4704, %v4703
      %v4724 = vpack.c.b16 %v4706, %v4705
      %v4725 = vpack.c.b16 %v4708, %v4707
      %v4726 = vpack.c.b16 %v4710, %v4709
      %v4759 = vunpack.c.l.b16 %v3815
      %v4760 = vunpack.c.l.b16 %v3816
      %v4761 = vunpack.c.l.b16 %v3818
      %v4762 = vunpack.c.l.b16 %v3819
      %v4763 = vunpack.c.l.b16 %v3821
      %v4764 = vunpack.c.l.b16 %v3822
      %v4765 = vunpack.c.l.b16 %v3824
      %v4766 = vunpack.c.l.b16 %v3825
      %v4767 = vunpack.c.l.b16 %v3827
      %v4768 = vunpack.c.l.b16 %v3828
      %v4769 = vunpack.c.l.b16 %v3830
      %v4770 = vunpack.c.l.b16 %v3831
      %v4771 = vunpack.c.l.b16 %v3833
      %v4772 = vunpack.c.l.b16 %v3834
      %v4773 = vunpack.c.l.b16 %v3836
      %v4774 = vunpack.c.l.b16 %v3837
      %v4775 = vunpack.c.l.b16 %v3839
      %v4776 = vunpack.c.l.b16 %v3840
      %v4777 = vunpack.c.l.b16 %v3842
      %v4778 = vunpack.c.l.b16 %v3843
      %v4779 = vunpack.c.l.b16 %v3845
      %v4780 = vunpack.c.l.b16 %v3846
      %v4781 = vunpack.c.l.b16 %v3848
      %v4782 = vunpack.c.l.b16 %v3849
      %v4783 = vunpack.c.l.b16 %v3851
      %v4784 = vunpack.c.l.b16 %v3852
      %v4785 = vunpack.c.l.b16 %v3854
      %v4786 = vunpack.c.l.b16 %v3855
      %v4787 = vunpack.c.l.b16 %v3857
      %v4788 = vunpack.c.l.b16 %v3858
      %v4789 = vunpack.c.l.b16 %v3860
      %v4790 = vunpack.c.l.b16 %v3861
      %v4791 = vpack.c.b16 %v4760, %v4759
      %v4792 = vpack.c.b16 %v4762, %v4761
      %v4793 = vpack.c.b16 %v4764, %v4763
      %v4794 = vpack.c.b16 %v4766, %v4765
      %v4795 = vpack.c.b16 %v4768, %v4767
      %v4796 = vpack.c.b16 %v4770, %v4769
      %v4797 = vpack.c.b16 %v4772, %v4771
      %v4798 = vpack.c.b16 %v4774, %v4773
      %v4799 = vpack.c.b16 %v4776, %v4775
      %v4800 = vpack.c.b16 %v4778, %v4777
      %v4801 = vpack.c.b16 %v4780, %v4779
      %v4802 = vpack.c.b16 %v4782, %v4781
      %v4803 = vpack.c.b16 %v4784, %v4783
      %v4804 = vpack.c.b16 %v4786, %v4785
      %v4805 = vpack.c.b16 %v4788, %v4787
      %v4806 = vpack.c.b16 %v4790, %v4789
      %4807 = vrot.lane.b32.xlu0 %v4791, 64
      %v4808 = vpop.permute.xlu0 %4807
      %4809 = vrot.lane.b32.xlu0 %v4792, 64
      %v4810 = vpop.permute.xlu0 %4809
      %4811 = vrot.lane.b32.xlu0 %v4793, 64
      %v4812 = vpop.permute.xlu0 %4811
      %4813 = vrot.lane.b32.xlu0 %v4794, 64
      %v4814 = vpop.permute.xlu0 %4813
      %4815 = vrot.lane.b32.xlu0 %v4795, 64
      %v4816 = vpop.permute.xlu0 %4815
      %4817 = vrot.lane.b32.xlu0 %v4796, 64
      %v4818 = vpop.permute.xlu0 %4817
      %4819 = vrot.lane.b32.xlu0 %v4797, 64
      %v4820 = vpop.permute.xlu0 %4819
      %4821 = vrot.lane.b32.xlu0 %v4798, 64
      %v4822 = vpop.permute.xlu0 %4821
      %4823 = vrot.lane.b32.xlu0 %v4799, 64
      %v4824 = vpop.permute.xlu0 %4823
      %4825 = vrot.lane.b32.xlu0 %v4800, 64
      %v4826 = vpop.permute.xlu0 %4825
      %4827 = vrot.lane.b32.xlu0 %v4801, 64
      %v4828 = vpop.permute.xlu0 %4827
      %4829 = vrot.lane.b32.xlu0 %v4802, 64
      %v4830 = vpop.permute.xlu0 %4829
      %4831 = vrot.lane.b32.xlu0 %v4803, 64
      %v4832 = vpop.permute.xlu0 %4831
      %4833 = vrot.lane.b32.xlu0 %v4804, 64
      %v4834 = vpop.permute.xlu0 %4833
      %4835 = vrot.lane.b32.xlu0 %v4805, 64
      %v4836 = vpop.permute.xlu0 %4835
      %4837 = vrot.lane.b32.xlu0 %v4806, 64
      %v4838 = vpop.permute.xlu0 %4837
      %v4839 = vunpack.c.l.b16 %v4308
      %v4840 = vunpack.c.l.b16 %v4318
      %v4841 = vunpack.c.l.b16 %v4332
      %v4842 = vunpack.c.l.b16 %v4342
      %v4843 = vunpack.c.l.b16 %v4356
      %v4844 = vunpack.c.l.b16 %v4366
      %v4845 = vunpack.c.l.b16 %v4380
      %v4846 = vunpack.c.l.b16 %v4390
      %v4847 = vunpack.c.l.b16 %v4404
      %v4848 = vunpack.c.l.b16 %v4414
      %v4849 = vunpack.c.l.b16 %v4428
      %v4850 = vunpack.c.l.b16 %v4438
      %v4851 = vunpack.c.l.b16 %v4452
      %v4852 = vunpack.c.l.b16 %v4462
      %v4853 = vunpack.c.l.b16 %v4476
      %v4854 = vunpack.c.l.b16 %v4486
      %v4855 = vunpack.c.l.b16 %v4500
      %v4856 = vunpack.c.l.b16 %v4510
      %v4857 = vunpack.c.l.b16 %v4524
      %v4858 = vunpack.c.l.b16 %v4534
      %v4859 = vunpack.c.l.b16 %v4548
      %v4860 = vunpack.c.l.b16 %v4558
      %v4861 = vunpack.c.l.b16 %v4572
      %v4862 = vunpack.c.l.b16 %v4582
      %v4863 = vunpack.c.l.b16 %v4596
      %v4864 = vunpack.c.l.b16 %v4606
      %v4865 = vunpack.c.l.b16 %v4620
      %v4866 = vunpack.c.l.b16 %v4630
      %v4867 = vunpack.c.l.b16 %v4644
      %v4868 = vunpack.c.l.b16 %v4654
      %v4869 = vunpack.c.l.b16 %v4668
      %v4870 = vunpack.c.l.b16 %v4678
      %v4871 = vpack.c.b16 %v4840, %v4839
      %v4872 = vpack.c.b16 %v4842, %v4841
      %v4873 = vpack.c.b16 %v4844, %v4843
      %v4874 = vpack.c.b16 %v4846, %v4845
      %v4875 = vpack.c.b16 %v4848, %v4847
      %v4876 = vpack.c.b16 %v4850, %v4849
      %v4877 = vpack.c.b16 %v4852, %v4851
      %v4878 = vpack.c.b16 %v4854, %v4853
      %v4879 = vpack.c.b16 %v4856, %v4855
      %v4880 = vpack.c.b16 %v4858, %v4857
      %v4881 = vpack.c.b16 %v4860, %v4859
      %v4882 = vpack.c.b16 %v4862, %v4861
      %v4883 = vpack.c.b16 %v4864, %v4863
      %v4884 = vpack.c.b16 %v4866, %v4865
      %v4885 = vpack.c.b16 %v4868, %v4867
      %v4886 = vpack.c.b16 %v4870, %v4869
      %v4919 = vunpack.c.l.b16 %v4247
      %v4920 = vunpack.c.l.b16 %v4248
      %v4921 = vunpack.c.l.b16 %v4250
      %v4922 = vunpack.c.l.b16 %v4251
      %v4923 = vunpack.c.l.b16 %v4253
      %v4924 = vunpack.c.l.b16 %v4254
      %v4925 = vunpack.c.l.b16 %v4256
      %v4926 = vunpack.c.l.b16 %v4257
      %v4927 = vunpack.c.l.b16 %v4259
      %v4928 = vunpack.c.l.b16 %v4260
      %v4929 = vunpack.c.l.b16 %v4262
      %v4930 = vunpack.c.l.b16 %v4263
      %v4931 = vunpack.c.l.b16 %v4265
      %v4932 = vunpack.c.l.b16 %v4266
      %v4933 = vunpack.c.l.b16 %v4268
      %v4934 = vunpack.c.l.b16 %v4269
      %v4935 = vunpack.c.l.b16 %v4271
      %v4936 = vunpack.c.l.b16 %v4272
      %v4937 = vunpack.c.l.b16 %v4274
      %v4938 = vunpack.c.l.b16 %v4275
      %v4939 = vunpack.c.l.b16 %v4277
      %v4940 = vunpack.c.l.b16 %v4278
      %v4941 = vunpack.c.l.b16 %v4280
      %v4942 = vunpack.c.l.b16 %v4281
      %v4943 = vunpack.c.l.b16 %v4283
      %v4944 = vunpack.c.l.b16 %v4284
      %v4945 = vunpack.c.l.b16 %v4286
      %v4946 = vunpack.c.l.b16 %v4287
      %v4947 = vunpack.c.l.b16 %v4289
      %v4948 = vunpack.c.l.b16 %v4290
      %v4949 = vunpack.c.l.b16 %v4292
      %v4950 = vunpack.c.l.b16 %v4293
      %v4951 = vpack.c.b16 %v4920, %v4919
      %v4952 = vpack.c.b16 %v4922, %v4921
      %v4953 = vpack.c.b16 %v4924, %v4923
      %v4954 = vpack.c.b16 %v4926, %v4925
      %v4955 = vpack.c.b16 %v4928, %v4927
      %v4956 = vpack.c.b16 %v4930, %v4929
      %v4957 = vpack.c.b16 %v4932, %v4931
      %v4958 = vpack.c.b16 %v4934, %v4933
      %v4959 = vpack.c.b16 %v4936, %v4935
      %v4960 = vpack.c.b16 %v4938, %v4937
      %v4961 = vpack.c.b16 %v4940, %v4939
      %v4962 = vpack.c.b16 %v4942, %v4941
      %v4963 = vpack.c.b16 %v4944, %v4943
      %v4964 = vpack.c.b16 %v4946, %v4945
      %v4965 = vpack.c.b16 %v4948, %v4947
      %v4966 = vpack.c.b16 %v4950, %v4949
      %4967 = vrot.lane.b32.xlu0 %v4951, 64
      %v4968 = vpop.permute.xlu0 %4967
      %4969 = vrot.lane.b32.xlu0 %v4952, 64
      %v4970 = vpop.permute.xlu0 %4969
      %4971 = vrot.lane.b32.xlu0 %v4953, 64
      %v4972 = vpop.permute.xlu0 %4971
      %4973 = vrot.lane.b32.xlu0 %v4954, 64
      %v4974 = vpop.permute.xlu0 %4973
      %4975 = vrot.lane.b32.xlu0 %v4955, 64
      %v4976 = vpop.permute.xlu0 %4975
      %4977 = vrot.lane.b32.xlu0 %v4956, 64
      %v4978 = vpop.permute.xlu0 %4977
      %4979 = vrot.lane.b32.xlu0 %v4957, 64
      %v4980 = vpop.permute.xlu0 %4979
      %4981 = vrot.lane.b32.xlu0 %v4958, 64
      %v4982 = vpop.permute.xlu0 %4981
      %4983 = vrot.lane.b32.xlu0 %v4959, 64
      %v4984 = vpop.permute.xlu0 %4983
      %4985 = vrot.lane.b32.xlu0 %v4960, 64
      %v4986 = vpop.permute.xlu0 %4985
      %4987 = vrot.lane.b32.xlu0 %v4961, 64
      %v4988 = vpop.permute.xlu0 %4987
      %4989 = vrot.lane.b32.xlu0 %v4962, 64
      %v4990 = vpop.permute.xlu0 %4989
      %4991 = vrot.lane.b32.xlu0 %v4963, 64
      %v4992 = vpop.permute.xlu0 %4991
      %4993 = vrot.lane.b32.xlu0 %v4964, 64
      %v4994 = vpop.permute.xlu0 %4993
      %4995 = vrot.lane.b32.xlu0 %v4965, 64
      %v4996 = vpop.permute.xlu0 %4995
      %4997 = vrot.lane.b32.xlu0 %v4966, 64
      %v4998 = vpop.permute.xlu0 %4997
      %v5001 = vsel %vm1181, %v4711, %v4808
      %v5005 = vsel %vm1181, %v4712, %v4810
      %v5009 = vsel %vm1181, %v4713, %v4812
      %v5013 = vsel %vm1181, %v4714, %v4814
      %v5017 = vsel %vm1181, %v4715, %v4816
      %v5021 = vsel %vm1181, %v4716, %v4818
      %v5025 = vsel %vm1181, %v4717, %v4820
      %v5029 = vsel %vm1181, %v4718, %v4822
      %v5033 = vsel %vm1181, %v4719, %v4824
      %v5037 = vsel %vm1181, %v4720, %v4826
      %v5041 = vsel %vm1181, %v4721, %v4828
      %v5045 = vsel %vm1181, %v4722, %v4830
      %v5049 = vsel %vm1181, %v4723, %v4832
      %v5053 = vsel %vm1181, %v4724, %v4834
      %v5057 = vsel %vm1181, %v4725, %v4836
      %v5061 = vsel %vm1181, %v4726, %v4838
      %v5065 = vsel %vm1181, %v4871, %v4968
      %v5069 = vsel %vm1181, %v4872, %v4970
      %v5073 = vsel %vm1181, %v4873, %v4972
      %v5077 = vsel %vm1181, %v4874, %v4974
      %v5081 = vsel %vm1181, %v4875, %v4976
      %v5085 = vsel %vm1181, %v4876, %v4978
      %v5089 = vsel %vm1181, %v4877, %v4980
      %v5093 = vsel %vm1181, %v4878, %v4982
      %v5097 = vsel %vm1181, %v4879, %v4984
      %v5101 = vsel %vm1181, %v4880, %v4986
      %v5105 = vsel %vm1181, %v4881, %v4988
      %v5109 = vsel %vm1181, %v4882, %v4990
      %v5113 = vsel %vm1181, %v4883, %v4992
      %v5117 = vsel %vm1181, %v4884, %v4994
      %v5121 = vsel %vm1181, %v4885, %v4996
      %v5125 = vsel %vm1181, %v4886, %v4998
      %v5127 = vld [vmem:[%s3 + $0xa0] sm:$0xf]
      %v5128 = vld [vmem:[%s3 + $0xa4] sm:$0xf]
      %v5129 = vld [vmem:[%s3 + $0xa8] sm:$0xf]
      %v5130 = vld [vmem:[%s3 + $0xac] sm:$0xf]
      %v5131 = vld [vmem:[%s3 + $0xb0] sm:$0xf]
      %v5132 = vld [vmem:[%s3 + $0xb4] sm:$0xf]
      %v5133 = vld [vmem:[%s3 + $0xb8] sm:$0xf]
      %v5134 = vld [vmem:[%s3 + $0xbc] sm:$0xf]
      %v5135 = vld [vmem:[%s3 + $0xc0] sm:$0xf]
      %v5136 = vld [vmem:[%s3 + $0xc4] sm:$0xf]
      %v5137 = vld [vmem:[%s3 + $0xc8] sm:$0xf]
      %v5138 = vld [vmem:[%s3 + $0xcc] sm:$0xf]
      %v5139 = vld [vmem:[%s3 + $0xd0] sm:$0xf]
      %v5140 = vld [vmem:[%s3 + $0xd4] sm:$0xf]
      %v5141 = vld [vmem:[%s3 + $0xd8] sm:$0xf]
      %v5142 = vld [vmem:[%s3 + $0xdc] sm:$0xf]
      %v5143 = vld [vmem:[%s3 + $0xe0] sm:$0xf]
      %v5144 = vld [vmem:[%s3 + $0xe4] sm:$0xf]
      %v5145 = vld [vmem:[%s3 + $0xe8] sm:$0xf]
      %v5146 = vld [vmem:[%s3 + $0xec] sm:$0xf]
      %v5147 = vld [vmem:[%s3 + $0xf0] sm:$0xf]
      %v5148 = vld [vmem:[%s3 + $0xf4] sm:$0xf]
      %v5149 = vld [vmem:[%s3 + $0xf8] sm:$0xf]
      %v5150 = vld [vmem:[%s3 + $0xfc] sm:$0xf]
      %v5151 = vld [vmem:[%s3 + $0x100] sm:$0xf]
      %v5152 = vld [vmem:[%s3 + $0x104] sm:$0xf]
      %v5153 = vld [vmem:[%s3 + $0x108] sm:$0xf]
      %v5154 = vld [vmem:[%s3 + $0x10c] sm:$0xf]
      %v5155 = vld [vmem:[%s3 + $0x110] sm:$0xf]
      %v5156 = vld [vmem:[%s3 + $0x114] sm:$0xf]
      %v5157 = vld [vmem:[%s3 + $0x118] sm:$0xf]
      %v5158 = vld [vmem:[%s3 + $0x11c] sm:$0xf]
      %v5191 = vunpack.c.l.b16 %v5127
      %v5192 = vunpack.c.l.b16 %v5128
      %v5193 = vunpack.c.l.b16 %v5129
      %v5194 = vunpack.c.l.b16 %v5130
      %v5195 = vunpack.c.l.b16 %v5131
      %v5196 = vunpack.c.l.b16 %v5132
      %v5197 = vunpack.c.l.b16 %v5133
      %v5198 = vunpack.c.l.b16 %v5134
      %v5199 = vunpack.c.l.b16 %v5135
      %v5200 = vunpack.c.l.b16 %v5136
      %v5201 = vunpack.c.l.b16 %v5137
      %v5202 = vunpack.c.l.b16 %v5138
      %v5203 = vunpack.c.l.b16 %v5139
      %v5204 = vunpack.c.l.b16 %v5140
      %v5205 = vunpack.c.l.b16 %v5141
      %v5206 = vunpack.c.l.b16 %v5142
      %v5207 = vunpack.c.l.b16 %v5143
      %v5208 = vunpack.c.l.b16 %v5144
      %v5209 = vunpack.c.l.b16 %v5145
      %v5210 = vunpack.c.l.b16 %v5146
      %v5211 = vunpack.c.l.b16 %v5147
      %v5212 = vunpack.c.l.b16 %v5148
      %v5213 = vunpack.c.l.b16 %v5149
      %v5214 = vunpack.c.l.b16 %v5150
      %v5215 = vunpack.c.l.b16 %v5151
      %v5216 = vunpack.c.l.b16 %v5152
      %v5217 = vunpack.c.l.b16 %v5153
      %v5218 = vunpack.c.l.b16 %v5154
      %v5219 = vunpack.c.l.b16 %v5155
      %v5220 = vunpack.c.l.b16 %v5156
      %v5221 = vunpack.c.l.b16 %v5157
      %v5222 = vunpack.c.l.b16 %v5158
      %v5223 = vpack.c.b16 %v5192, %v5191
      %v5224 = vpack.c.b16 %v5194, %v5193
      %v5225 = vpack.c.b16 %v5196, %v5195
      %v5226 = vpack.c.b16 %v5198, %v5197
      %v5227 = vpack.c.b16 %v5200, %v5199
      %v5228 = vpack.c.b16 %v5202, %v5201
      %v5229 = vpack.c.b16 %v5204, %v5203
      %v5230 = vpack.c.b16 %v5206, %v5205
      %v5231 = vpack.c.b16 %v5208, %v5207
      %v5232 = vpack.c.b16 %v5210, %v5209
      %v5233 = vpack.c.b16 %v5212, %v5211
      %v5234 = vpack.c.b16 %v5214, %v5213
      %v5235 = vpack.c.b16 %v5216, %v5215
      %v5236 = vpack.c.b16 %v5218, %v5217
      %v5237 = vpack.c.b16 %v5220, %v5219
      %v5238 = vpack.c.b16 %v5222, %v5221
      %5255 = vmatprep.subr.bf16.mxu0 0
      %5256 = vmatpush1.bf16.msra.mxu0 %v5223
      %5257 = vmatprep.subr.bf16.mxu0 0
      %5258 = vmatpush1.bf16.msra.mxu0 %v5224
      %5259 = vmatprep.subr.bf16.mxu0 0
      %5260 = vmatpush1.bf16.msra.mxu0 %v5225
      %5261 = vmatprep.subr.bf16.mxu0 0
      %5262 = vmatpush1.bf16.msra.mxu0 %v5226
      %5263 = vmatprep.subr.bf16.mxu0 0
      %5264 = vmatpush1.bf16.msra.mxu0 %v5227
      %5265 = vmatprep.subr.bf16.mxu0 0
      %5266 = vmatpush1.bf16.msra.mxu0 %v5228
      %5267 = vmatprep.subr.bf16.mxu0 0
      %5268 = vmatpush1.bf16.msra.mxu0 %v5229
      %5269 = vmatprep.subr.bf16.mxu0 0
      %5270 = vmatpush1.bf16.msra.mxu0 %v5230
      %5271 = vmatprep.subr.bf16.mxu0 0
      %5272 = vmatpush1.bf16.msra.mxu0 %v5231
      %5273 = vmatprep.subr.bf16.mxu0 0
      %5274 = vmatpush1.bf16.msra.mxu0 %v5232
      %5275 = vmatprep.subr.bf16.mxu0 0
      %5276 = vmatpush1.bf16.msra.mxu0 %v5233
      %5277 = vmatprep.subr.bf16.mxu0 0
      %5278 = vmatpush1.bf16.msra.mxu0 %v5234
      %5279 = vmatprep.subr.bf16.mxu0 0
      %5280 = vmatpush1.bf16.msra.mxu0 %v5235
      %5281 = vmatprep.subr.bf16.mxu0 0
      %5282 = vmatpush1.bf16.msra.mxu0 %v5236
      %5283 = vmatprep.subr.bf16.mxu0 0
      %5284 = vmatpush1.bf16.msra.mxu0 %v5237
      %5285 = vmatprep.subr.bf16.mxu0 0
      %5286 = vmatpush1.bf16.msra.mxu0 %v5238
      %5287 = vmatprep.mubr.bf16.mxu0 %v5065
      %5288 = vmatmul.mubr.bf16.gmra.mrb[0].mxu0 %v5001
      %v5289 = vpop.f32.mrb[0].mxu0
      %v5290 = vadd.f32 %v1075, %v5289
      %v5291 = vpop.f32.mrb[0].mxu0
      %v5292 = vpop.f32.mrb[0].mxu0
      %v5293 = vadd.f32 %v1075, %v5292
      %v5294 = vpop.f32.mrb[0].mxu0
      %5295 = vmatprep.mubr.bf16.mxu0 %v5069
      %5296 = vmatmul.mubr.bf16.gmra.mrb[0].mxu0 %v5005
      %v5297 = vpop.f32.mrb[0].mxu0
      %v5298 = vadd.f32 %v1075, %v5297
      %v5299 = vpop.f32.mrb[0].mxu0
      %v5300 = vpop.f32.mrb[0].mxu0
      %v5301 = vadd.f32 %v1075, %v5300
      %v5302 = vpop.f32.mrb[0].mxu0
      %5303 = vmatprep.mubr.bf16.mxu0 %v5073
      %5304 = vmatmul.mubr.bf16.gmra.mrb[0].mxu0 %v5009
      %v5305 = vpop.f32.mrb[0].mxu0
      %v5306 = vadd.f32 %v1075, %v5305
      %v5307 = vpop.f32.mrb[0].mxu0
      %v5308 = vpop.f32.mrb[0].mxu0
      %v5309 = vadd.f32 %v1075, %v5308
      %v5310 = vpop.f32.mrb[0].mxu0
      %5311 = vmatprep.mubr.bf16.mxu0 %v5077
      %5312 = vmatmul.mubr.bf16.gmra.mrb[0].mxu0 %v5013
      %v5313 = vpop.f32.mrb[0].mxu0
      %v5314 = vadd.f32 %v1075, %v5313
      %v5315 = vpop.f32.mrb[0].mxu0
      %v5316 = vpop.f32.mrb[0].mxu0
      %v5317 = vadd.f32 %v1075, %v5316
      %v5318 = vpop.f32.mrb[0].mxu0
      %5319 = vmatprep.mubr.bf16.mxu0 %v5081
      %5320 = vmatmul.mubr.bf16.gmra.mrb[0].mxu0 %v5017
      %v5321 = vpop.f32.mrb[0].mxu0
      %v5322 = vadd.f32 %v1075, %v5321
      %v5323 = vpop.f32.mrb[0].mxu0
      %v5324 = vpop.f32.mrb[0].mxu0
      %v5325 = vadd.f32 %v1075, %v5324
      %v5326 = vpop.f32.mrb[0].mxu0
      %5327 = vmatprep.mubr.bf16.mxu0 %v5085
      %5328 = vmatmul.mubr.bf16.gmra.mrb[0].mxu0 %v5021
      %v5329 = vpop.f32.mrb[0].mxu0
      %v5330 = vadd.f32 %v1075, %v5329
      %v5331 = vpop.f32.mrb[0].mxu0
      %v5332 = vpop.f32.mrb[0].mxu0
      %v5333 = vadd.f32 %v1075, %v5332
      %v5334 = vpop.f32.mrb[0].mxu0
      %5335 = vmatprep.mubr.bf16.mxu0 %v5089
      %5336 = vmatmul.mubr.bf16.gmra.mrb[0].mxu0 %v5025
      %v5337 = vpop.f32.mrb[0].mxu0
      %v5338 = vadd.f32 %v1075, %v5337
      %v5339 = vpop.f32.mrb[0].mxu0
      %v5340 = vpop.f32.mrb[0].mxu0
      %v5341 = vadd.f32 %v1075, %v5340
      %v5342 = vpop.f32.mrb[0].mxu0
      %5343 = vmatprep.mubr.bf16.mxu0 %v5093
      %5344 = vmatmul.mubr.bf16.gmra.mrb[0].mxu0 %v5029
      %v5345 = vpop.f32.mrb[0].mxu0
      %v5346 = vadd.f32 %v1075, %v5345
      %v5347 = vpop.f32.mrb[0].mxu0
      %v5348 = vpop.f32.mrb[0].mxu0
      %v5349 = vadd.f32 %v1075, %v5348
      %v5350 = vpop.f32.mrb[0].mxu0
      %5351 = vmatprep.mubr.bf16.mxu0 %v5097
      %5352 = vmatmul.mubr.bf16.gmra.mrb[0].mxu0 %v5033
      %v5353 = vpop.f32.mrb[0].mxu0
      %v5354 = vadd.f32 %v1075, %v5353
      %v5355 = vpop.f32.mrb[0].mxu0
      %v5356 = vpop.f32.mrb[0].mxu0
      %v5357 = vadd.f32 %v1075, %v5356
      %v5358 = vpop.f32.mrb[0].mxu0
      %5359 = vmatprep.mubr.bf16.mxu0 %v5101
      %5360 = vmatmul.mubr.bf16.gmra.mrb[0].mxu0 %v5037
      %v5361 = vpop.f32.mrb[0].mxu0
      %v5362 = vadd.f32 %v1075, %v5361
      %v5363 = vpop.f32.mrb[0].mxu0
      %v5364 = vpop.f32.mrb[0].mxu0
      %v5365 = vadd.f32 %v1075, %v5364
      %v5366 = vpop.f32.mrb[0].mxu0
      %5367 = vmatprep.mubr.bf16.mxu0 %v5105
      %5368 = vmatmul.mubr.bf16.gmra.mrb[0].mxu0 %v5041
      %v5369 = vpop.f32.mrb[0].mxu0
      %v5370 = vadd.f32 %v1075, %v5369
      %v5371 = vpop.f32.mrb[0].mxu0
      %v5372 = vpop.f32.mrb[0].mxu0
      %v5373 = vadd.f32 %v1075, %v5372
      %v5374 = vpop.f32.mrb[0].mxu0
      %5375 = vmatprep.mubr.bf16.mxu0 %v5109
      %5376 = vmatmul.mubr.bf16.gmra.mrb[0].mxu0 %v5045
      %v5377 = vpop.f32.mrb[0].mxu0
      %v5378 = vadd.f32 %v1075, %v5377
      %v5379 = vpop.f32.mrb[0].mxu0
      %v5380 = vpop.f32.mrb[0].mxu0
      %v5381 = vadd.f32 %v1075, %v5380
      %v5382 = vpop.f32.mrb[0].mxu0
      %5383 = vmatprep.mubr.bf16.mxu0 %v5113
      %5384 = vmatmul.mubr.bf16.gmra.mrb[0].mxu0 %v5049
      %v5385 = vpop.f32.mrb[0].mxu0
      %v5386 = vadd.f32 %v1075, %v5385
      %v5387 = vpop.f32.mrb[0].mxu0
      %v5388 = vpop.f32.mrb[0].mxu0
      %v5389 = vadd.f32 %v1075, %v5388
      %v5390 = vpop.f32.mrb[0].mxu0
      %5391 = vmatprep.mubr.bf16.mxu0 %v5117
      %5392 = vmatmul.mubr.bf16.gmra.mrb[0].mxu0 %v5053
      %v5393 = vpop.f32.mrb[0].mxu0
      %v5394 = vadd.f32 %v1075, %v5393
      %v5395 = vpop.f32.mrb[0].mxu0
      %v5396 = vpop.f32.mrb[0].mxu0
      %v5397 = vadd.f32 %v1075, %v5396
      %v5398 = vpop.f32.mrb[0].mxu0
      %5399 = vmatprep.mubr.bf16.mxu0 %v5121
      %5400 = vmatmul.mubr.bf16.gmra.mrb[0].mxu0 %v5057
      %v5401 = vpop.f32.mrb[0].mxu0
      %v5402 = vadd.f32 %v1075, %v5401
      %v5403 = vpop.f32.mrb[0].mxu0
      %v5404 = vpop.f32.mrb[0].mxu0
      %v5405 = vadd.f32 %v1075, %v5404
      %v5406 = vpop.f32.mrb[0].mxu0
      %5407 = vmatprep.mubr.bf16.mxu0 %v5125
      %5408 = vmatmul.mubr.bf16.gmra.mrb[0].mxu0 %v5061
      %v5409 = vpop.f32.mrb[0].mxu0
      %v5410 = vadd.f32 %v1075, %v5409
      %v5411 = vpop.f32.mrb[0].mxu0
      %v5412 = vpop.f32.mrb[0].mxu0
      %v5413 = vadd.f32 %v1075, %v5412
      %v5414 = vpop.f32.mrb[0].mxu0
      %5415 = vdwg.mxu0
      %v5416 = vmax.f32 %v5290, 0.0
      %v5417 = vmax.f32 %v5293, 0.0
      %v5418 = vmax.f32 %v5298, 0.0
      %v5419 = vmax.f32 %v5301, 0.0
      %v5420 = vmax.f32 %v5306, 0.0
      %v5421 = vmax.f32 %v5309, 0.0
      %v5422 = vmax.f32 %v5314, 0.0
      %v5423 = vmax.f32 %v5317, 0.0
      %v5424 = vmax.f32 %v5322, 0.0
      %v5425 = vmax.f32 %v5325, 0.0
      %v5426 = vmax.f32 %v5330, 0.0
      %v5427 = vmax.f32 %v5333, 0.0
      %v5428 = vmax.f32 %v5338, 0.0
      %v5429 = vmax.f32 %v5341, 0.0
      %v5430 = vmax.f32 %v5346, 0.0
      %v5431 = vmax.f32 %v5349, 0.0
      %v5432 = vmax.f32 %v5354, 0.0
      %v5433 = vmax.f32 %v5357, 0.0
      %v5434 = vmax.f32 %v5362, 0.0
      %v5435 = vmax.f32 %v5365, 0.0
      %v5436 = vmax.f32 %v5370, 0.0
      %v5437 = vmax.f32 %v5373, 0.0
      %v5438 = vmax.f32 %v5378, 0.0
      %v5439 = vmax.f32 %v5381, 0.0
      %v5440 = vmax.f32 %v5386, 0.0
      %v5441 = vmax.f32 %v5389, 0.0
      %v5442 = vmax.f32 %v5394, 0.0
      %v5443 = vmax.f32 %v5397, 0.0
      %v5444 = vmax.f32 %v5402, 0.0
      %v5445 = vmax.f32 %v5405, 0.0
      %v5446 = vmax.f32 %v5410, 0.0
      %v5447 = vmax.f32 %v5413, 0.0
      %v5448 = vpack.c.bf16 %v5417, %v5416
      %v5449 = vpack.c.bf16 %v5419, %v5418
      %v5450 = vpack.c.bf16 %v5421, %v5420
      %v5451 = vpack.c.bf16 %v5423, %v5422
      %v5452 = vpack.c.bf16 %v5425, %v5424
      %v5453 = vpack.c.bf16 %v5427, %v5426
      %v5454 = vpack.c.bf16 %v5429, %v5428
      %v5455 = vpack.c.bf16 %v5431, %v5430
      %v5456 = vpack.c.bf16 %v5433, %v5432
      %v5457 = vpack.c.bf16 %v5435, %v5434
      %v5458 = vpack.c.bf16 %v5437, %v5436
      %v5459 = vpack.c.bf16 %v5439, %v5438
      %v5460 = vpack.c.bf16 %v5441, %v5440
      %v5461 = vpack.c.bf16 %v5443, %v5442
      %v5462 = vpack.c.bf16 %v5445, %v5444
      %v5463 = vpack.c.bf16 %v5447, %v5446
      %v5465 = vsel %vm1181, %v5448, 0
      %v5468 = vsel %vm1181, %v5449, 0
      %v5471 = vsel %vm1181, %v5450, 0
      %v5474 = vsel %vm1181, %v5451, 0
      %v5477 = vsel %vm1181, %v5452, 0
      %v5480 = vsel %vm1181, %v5453, 0
      %v5483 = vsel %vm1181, %v5454, 0
      %v5486 = vsel %vm1181, %v5455, 0
      %v5489 = vsel %vm1181, %v5456, 0
      %v5492 = vsel %vm1181, %v5457, 0
      %v5495 = vsel %vm1181, %v5458, 0
      %v5498 = vsel %vm1181, %v5459, 0
      %v5501 = vsel %vm1181, %v5460, 0
      %v5504 = vsel %vm1181, %v5461, 0
      %v5507 = vsel %vm1181, %v5462, 0
      %v5510 = vsel %vm1181, %v5463, 0
      %5512 = vmatprep.subr.bf16.mxu0 0
      %5513 = vmatpush1.bf16.msra.mxu0 %v1461
      %5514 = vmatprep.subr.bf16.mxu0 0
      %5515 = vmatpush1.bf16.msra.mxu0 %v1462
      %5516 = vmatprep.subr.bf16.mxu0 0
      %5517 = vmatpush1.bf16.msra.mxu0 %v1463
      %5518 = vmatprep.subr.bf16.mxu0 0
      %5519 = vmatpush1.bf16.msra.mxu0 %v1464
      %5520 = vmatprep.subr.bf16.mxu0 0
      %5521 = vmatpush1.bf16.msra.mxu0 0
      %5522 = vmatprep.subr.bf16.mxu0 0
      %5523 = vmatpush1.bf16.msra.mxu0 0
      %5524 = vmatprep.subr.bf16.mxu0 0
      %5525 = vmatpush1.bf16.msra.mxu0 0
      %5526 = vmatprep.subr.bf16.mxu0 0
      %5527 = vmatpush1.bf16.msra.mxu0 0
      %5528 = vmatprep.subr.bf16.mxu0 0
      %5529 = vmatpush1.bf16.msra.mxu0 0
      %5530 = vmatprep.subr.bf16.mxu0 0
      %5531 = vmatpush1.bf16.msra.mxu0 0
      %5532 = vmatprep.subr.bf16.mxu0 0
      %5533 = vmatpush1.bf16.msra.mxu0 0
      %5534 = vmatprep.subr.bf16.mxu0 0
      %5535 = vmatpush1.bf16.msra.mxu0 0
      %5536 = vmatprep.subr.bf16.mxu0 0
      %5537 = vmatpush1.bf16.msra.mxu0 0
      %5538 = vmatprep.subr.bf16.mxu0 0
      %5539 = vmatpush1.bf16.msra.mxu0 0
      %5540 = vmatprep.subr.bf16.mxu0 0
      %5541 = vmatpush1.bf16.msra.mxu0 0
      %5542 = vmatprep.subr.bf16.mxu0 0
      %5543 = vmatpush1.bf16.msra.mxu0 0
      %5544 = vmatprep.mubr.bf16.mxu0 0
      %5545 = vmatmul.mubr.bf16.gmra.mrb[0].mxu0 %v5465
      %v5546 = vpop.f32.mrb[0].mxu0
      %v5547 = vadd.f32 %v1443, %v5546
      %v5548 = vpop.f32.mrb[0].mxu0
      %v5549 = vpop.f32.mrb[0].mxu0
      %v5550 = vadd.f32 %v1443, %v5549
      %v5551 = vpop.f32.mrb[0].mxu0
      %5552 = vmatprep.mubr.bf16.mxu0 0
      %5553 = vmatmul.mubr.bf16.gmra.mrb[0].mxu0 %v5468
      %v5554 = vpop.f32.mrb[0].mxu0
      %v5555 = vadd.f32 %v1443, %v5554
      %v5556 = vpop.f32.mrb[0].mxu0
      %v5557 = vpop.f32.mrb[0].mxu0
      %v5558 = vadd.f32 %v1443, %v5557
      %v5559 = vpop.f32.mrb[0].mxu0
      %5560 = vmatprep.mubr.bf16.mxu0 0
      %5561 = vmatmul.mubr.bf16.gmra.mrb[0].mxu0 %v5471
      %v5562 = vpop.f32.mrb[0].mxu0
      %v5563 = vadd.f32 %v1443, %v5562
      %v5564 = vpop.f32.mrb[0].mxu0
      %v5565 = vpop.f32.mrb[0].mxu0
      %v5566 = vadd.f32 %v1443, %v5565
      %v5567 = vpop.f32.mrb[0].mxu0
      %5568 = vmatprep.mubr.bf16.mxu0 0
      %5569 = vmatmul.mubr.bf16.gmra.mrb[0].mxu0 %v5474
      %v5570 = vpop.f32.mrb[0].mxu0
      %v5571 = vadd.f32 %v1443, %v5570
      %v5572 = vpop.f32.mrb[0].mxu0
      %v5573 = vpop.f32.mrb[0].mxu0
      %v5574 = vadd.f32 %v1443, %v5573
      %v5575 = vpop.f32.mrb[0].mxu0
      %5576 = vmatprep.mubr.bf16.mxu0 0
      %5577 = vmatmul.mubr.bf16.gmra.mrb[0].mxu0 %v5477
      %v5578 = vpop.f32.mrb[0].mxu0
      %v5579 = vadd.f32 %v1443, %v5578
      %v5580 = vpop.f32.mrb[0].mxu0
      %v5581 = vpop.f32.mrb[0].mxu0
      %v5582 = vadd.f32 %v1443, %v5581
      %v5583 = vpop.f32.mrb[0].mxu0
      %5584 = vmatprep.mubr.bf16.mxu0 0
      %5585 = vmatmul.mubr.bf16.gmra.mrb[0].mxu0 %v5480
      %v5586 = vpop.f32.mrb[0].mxu0
      %v5587 = vadd.f32 %v1443, %v5586
      %v5588 = vpop.f32.mrb[0].mxu0
      %v5589 = vpop.f32.mrb[0].mxu0
      %v5590 = vadd.f32 %v1443, %v5589
      %v5591 = vpop.f32.mrb[0].mxu0
      %5592 = vmatprep.mubr.bf16.mxu0 0
      %5593 = vmatmul.mubr.bf16.gmra.mrb[0].mxu0 %v5483
      %v5594 = vpop.f32.mrb[0].mxu0
      %v5595 = vadd.f32 %v1443, %v5594
      %v5596 = vpop.f32.mrb[0].mxu0
      %v5597 = vpop.f32.mrb[0].mxu0
      %v5598 = vadd.f32 %v1443, %v5597
      %v5599 = vpop.f32.mrb[0].mxu0
      %5600 = vmatprep.mubr.bf16.mxu0 0
      %5601 = vmatmul.mubr.bf16.gmra.mrb[0].mxu0 %v5486
      %v5602 = vpop.f32.mrb[0].mxu0
      %v5603 = vadd.f32 %v1443, %v5602
      %v5604 = vpop.f32.mrb[0].mxu0
      %v5605 = vpop.f32.mrb[0].mxu0
      %v5606 = vadd.f32 %v1443, %v5605
      %v5607 = vpop.f32.mrb[0].mxu0
      %5608 = vmatprep.mubr.bf16.mxu0 0
      %5609 = vmatmul.mubr.bf16.gmra.mrb[0].mxu0 %v5489
      %v5610 = vpop.f32.mrb[0].mxu0
      %v5611 = vadd.f32 %v1443, %v5610
      %v5612 = vpop.f32.mrb[0].mxu0
      %v5613 = vpop.f32.mrb[0].mxu0
      %v5614 = vadd.f32 %v1443, %v5613
      %v5615 = vpop.f32.mrb[0].mxu0
      %5616 = vmatprep.mubr.bf16.mxu0 0
      %5617 = vmatmul.mubr.bf16.gmra.mrb[0].mxu0 %v5492
      %v5618 = vpop.f32.mrb[0].mxu0
      %v5619 = vadd.f32 %v1443, %v5618
      %v5620 = vpop.f32.mrb[0].mxu0
      %v5621 = vpop.f32.mrb[0].mxu0
      %v5622 = vadd.f32 %v1443, %v5621
      %v5623 = vpop.f32.mrb[0].mxu0
      %5624 = vmatprep.mubr.bf16.mxu0 0
      %5625 = vmatmul.mubr.bf16.gmra.mrb[0].mxu0 %v5495
      %v5626 = vpop.f32.mrb[0].mxu0
      %v5627 = vadd.f32 %v1443, %v5626
      %v5628 = vpop.f32.mrb[0].mxu0
      %v5629 = vpop.f32.mrb[0].mxu0
      %v5630 = vadd.f32 %v1443, %v5629
      %v5631 = vpop.f32.mrb[0].mxu0
      %5632 = vmatprep.mubr.bf16.mxu0 0
      %5633 = vmatmul.mubr.bf16.gmra.mrb[0].mxu0 %v5498
      %v5634 = vpop.f32.mrb[0].mxu0
      %v5635 = vadd.f32 %v1443, %v5634
      %v5636 = vpop.f32.mrb[0].mxu0
      %v5637 = vpop.f32.mrb[0].mxu0
      %v5638 = vadd.f32 %v1443, %v5637
      %v5639 = vpop.f32.mrb[0].mxu0
      %5640 = vmatprep.mubr.bf16.mxu0 0
      %5641 = vmatmul.mubr.bf16.gmra.mrb[0].mxu0 %v5501
      %v5642 = vpop.f32.mrb[0].mxu0
      %v5643 = vadd.f32 %v1443, %v5642
      %v5644 = vpop.f32.mrb[0].mxu0
      %v5645 = vpop.f32.mrb[0].mxu0
      %v5646 = vadd.f32 %v1443, %v5645
      %v5647 = vpop.f32.mrb[0].mxu0
      %5648 = vmatprep.mubr.bf16.mxu0 0
      %5649 = vmatmul.mubr.bf16.gmra.mrb[0].mxu0 %v5504
      %v5650 = vpop.f32.mrb[0].mxu0
      %v5651 = vadd.f32 %v1443, %v5650
      %v5652 = vpop.f32.mrb[0].mxu0
      %v5653 = vpop.f32.mrb[0].mxu0
      %v5654 = vadd.f32 %v1443, %v5653
      %v5655 = vpop.f32.mrb[0].mxu0
      %5656 = vmatprep.mubr.bf16.mxu0 0
      %5657 = vmatmul.mubr.bf16.gmra.mrb[0].mxu0 %v5507
      %v5658 = vpop.f32.mrb[0].mxu0
      %v5659 = vadd.f32 %v1443, %v5658
      %v5660 = vpop.f32.mrb[0].mxu0
      %v5661 = vpop.f32.mrb[0].mxu0
      %v5662 = vadd.f32 %v1443, %v5661
      %v5663 = vpop.f32.mrb[0].mxu0
      %5664 = vmatprep.mubr.bf16.mxu0 0
      %5665 = vmatmul.mubr.bf16.gmra.mrb[0].mxu0 %v5510
      %v5666 = vpop.f32.mrb[0].mxu0
      %v5667 = vadd.f32 %v1443, %v5666
      %v5668 = vpop.f32.mrb[0].mxu0
      %v5669 = vpop.f32.mrb[0].mxu0
      %v5670 = vadd.f32 %v1443, %v5669
      %v5671 = vpop.f32.mrb[0].mxu0
      %5672 = vdwg.mxu0
      %v5673 = vmax.f32 %v5547, 0.0
      %v5674 = vmax.f32 %v5550, 0.0
      %v5675 = vmax.f32 %v5555, 0.0
      %v5676 = vmax.f32 %v5558, 0.0
      %v5677 = vmax.f32 %v5563, 0.0
      %v5678 = vmax.f32 %v5566, 0.0
      %v5679 = vmax.f32 %v5571, 0.0
      %v5680 = vmax.f32 %v5574, 0.0
      %v5681 = vmax.f32 %v5579, 0.0
      %v5682 = vmax.f32 %v5582, 0.0
      %v5683 = vmax.f32 %v5587, 0.0
      %v5684 = vmax.f32 %v5590, 0.0
      %v5685 = vmax.f32 %v5595, 0.0
      %v5686 = vmax.f32 %v5598, 0.0
      %v5687 = vmax.f32 %v5603, 0.0
      %v5688 = vmax.f32 %v5606, 0.0
      %v5689 = vmax.f32 %v5611, 0.0
      %v5690 = vmax.f32 %v5614, 0.0
      %v5691 = vmax.f32 %v5619, 0.0
      %v5692 = vmax.f32 %v5622, 0.0
      %v5693 = vmax.f32 %v5627, 0.0
      %v5694 = vmax.f32 %v5630, 0.0
      %v5695 = vmax.f32 %v5635, 0.0
      %v5696 = vmax.f32 %v5638, 0.0
      %v5697 = vmax.f32 %v5643, 0.0
      %v5698 = vmax.f32 %v5646, 0.0
      %v5699 = vmax.f32 %v5651, 0.0
      %v5700 = vmax.f32 %v5654, 0.0
      %v5701 = vmax.f32 %v5659, 0.0
      %v5702 = vmax.f32 %v5662, 0.0
      %v5703 = vmax.f32 %v5667, 0.0
      %v5704 = vmax.f32 %v5670, 0.0
      %5705 = vst [vmem:[%s3782 + $0x8] sm:$0xff] %v5673
      %5706 = vst [vmem:[%s3782 + $0x18] sm:$0xff] %v5674
      %5707 = vst [vmem:[%s3782 + $0x48] sm:$0xff] %v5675
      %5708 = vst [vmem:[%s3782 + $0x58] sm:$0xff] %v5676
      %5709 = vst [vmem:[%s3782 + $0x88] sm:$0xff] %v5677
      %5710 = vst [vmem:[%s3782 + $0x98] sm:$0xff] %v5678
      %5711 = vst [vmem:[%s3782 + $0xc8] sm:$0xff] %v5679
      %5712 = vst [vmem:[%s3782 + $0xd8] sm:$0xff] %v5680
      %5713 = vst [vmem:[%s3782 + $0x108] sm:$0xff] %v5681
      %5714 = vst [vmem:[%s3782 + $0x118] sm:$0xff] %v5682
      %5715 = vst [vmem:[%s3782 + $0x148] sm:$0xff] %v5683
      %5716 = vst [vmem:[%s3782 + $0x158] sm:$0xff] %v5684
      %5717 = vst [vmem:[%s3782 + $0x188] sm:$0xff] %v5685
      %5718 = vst [vmem:[%s3782 + $0x198] sm:$0xff] %v5686
      %5719 = vst [vmem:[%s3782 + $0x1c8] sm:$0xff] %v5687
      %5720 = vst [vmem:[%s3782 + $0x1d8] sm:$0xff] %v5688
      %5721 = vst [vmem:[%s3782 + $0x208] sm:$0xff] %v5689
      %5722 = vst [vmem:[%s3782 + $0x218] sm:$0xff] %v5690
      %5723 = vst [vmem:[%s3782 + $0x248] sm:$0xff] %v5691
      %5724 = vst [vmem:[%s3782 + $0x258] sm:$0xff] %v5692
      %5725 = vst [vmem:[%s3782 + $0x288] sm:$0xff] %v5693
      %5726 = vst [vmem:[%s3782 + $0x298] sm:$0xff] %v5694
      %5727 = vst [vmem:[%s3782 + $0x2c8] sm:$0xff] %v5695
      %5728 = vst [vmem:[%s3782 + $0x2d8] sm:$0xff] %v5696
      %5729 = vst [vmem:[%s3782 + $0x308] sm:$0xff] %v5697
      %5730 = vst [vmem:[%s3782 + $0x318] sm:$0xff] %v5698
      %5731 = vst [vmem:[%s3782 + $0x348] sm:$0xff] %v5699
      %5732 = vst [vmem:[%s3782 + $0x358] sm:$0xff] %v5700
      %5733 = vst [vmem:[%s3782 + $0x388] sm:$0xff] %v5701
      %5734 = vst [vmem:[%s3782 + $0x398] sm:$0xff] %v5702
      %5735 = vst [vmem:[%s3782 + $0x3c8] sm:$0xff] %v5703
      %5736 = vst [vmem:[%s3782 + $0x3d8] sm:$0xff] %v5704
      %p5737 = scmp.lt.s32.totalorder %s18, 1
      %s5738 = scalar_select %p5737, %s18, 1
      %s5739 = smul.addr %s5738, 128
      %s5740 = smul.addr %s5739, 8
      %s5741 = scalar_lea.vmem %s7, %s5740
      // Predicated region
      $region49: #{decoder_link_forward.1} parent=47 // pred_check
        %p5742 = pneg %p188
      $region50: #{decoder_link_forward.1} parent=47 // pred_check_branch
        %5744 = sbr.rel (%p5742) target = $region52
      $region51: #{decoder_link_forward.1} parent=47 // pred_region
        _
      $region52: #{decoder_link_forward.1} parent=47 // pred_fallthru
        _
    $region48: #{decoder_link_forward.1} parent=5 // pred_fallthru
      _
    %p5745 = scmp.le.s32.totalorder 2, %s13
    // Predicated region
    $region53: #{decoder_link_forward.1} parent=5 // pred_check
      %p5746 = pneg %p5745
    $region54: #{decoder_link_forward.1} parent=5 // pred_check_branch
      %5748 = sbr.rel (%p5746) target = $region56
    $region55: #{decoder_link_forward.1} parent=5 // pred_region
      %s5749 = ssub.s32 %s13, 2
      // Predicated region
      $region57: #{decoder_link_forward.1} parent=55 // pred_check
        %p5750 = pneg %p194
      $region58: #{decoder_link_forward.1} parent=55 // pred_check_branch
        %5752 = sbr.rel (%p5750) target = $region60
      $region59: #{decoder_link_forward.1} parent=55 // pred_region
        %p5753 = scmp.lt.s32.totalorder %s19, 1
        %s5754 = scalar_select %p5753, %s19, 1
        %s5755 = smul.addr %s5754, 128
        %s5756 = smul.addr %s5755, 8
        %s5757 = scalar_lea.vmem %s7, %s5756
      $region60: #{decoder_link_forward.1} parent=55 // pred_fallthru
        _
    $region56: #{decoder_link_forward.1} parent=5 // pred_fallthru
      _
  $region6: #{decoder_link_forward.1} parent=0 // loop_footer
    %s17 = sadd.s32 1, %s13
  $region7: #{decoder_link_forward.1} parent=0 // loop_footer_branch
    %12 = sbr.rel target = $region3
  $region8: #{decoder_link_forward.1} parent=0 // loop_exit
    _

</llo_original>
